<compile_context>
chip_gen: v5e
topology: v5e:2x2
jax: 0.10.0
libtpu: 0.0.40
codegen_flags: <defaults>
</compile_context>

<pallas_src>
import math
import functools

import jax
import jax.numpy as jnp
from jax.experimental import pallas as pl
from jax.experimental.pallas import tpu as pltpu


# ----------------------------------------------------------------------------
# In-kernel helpers (traced inside the Pallas body)
# ----------------------------------------------------------------------------

def _layernorm(y, g, b):
    mean = jnp.mean(y, axis=-1, keepdims=True)
    var = jnp.mean(jnp.square(y - mean), axis=-1, keepdims=True)
    return (y - mean) * jax.lax.rsqrt(var + 1e-5) * g + b


def _sdpa(q, k, v, nhead):
    """Batched-head scaled-dot-product attention. q:(S,E) k,v:(Sk,E) f32 -> (S,E) f32."""
    S, E = q.shape
    Sk = k.shape[0]
    Dh = E // nhead
    scale = 1.0 / math.sqrt(Dh)
    bf = jnp.bfloat16
    # one relayout each way instead of 2*nhead lane extracts + concat
    q3 = jnp.transpose(q.reshape(S, nhead, Dh), (1, 0, 2)).astype(bf)    # (H, S, Dh)
    k3 = jnp.transpose(k.reshape(Sk, nhead, Dh), (1, 0, 2)).astype(bf)   # (H, Sk, Dh)
    v3 = jnp.transpose(v.reshape(Sk, nhead, Dh), (1, 0, 2)).astype(bf)   # (H, Sk, Dh)
    s = jnp.einsum("hqd,hkd->hqk", q3, k3,
                   preferred_element_type=jnp.float32) * scale           # (H, S, Sk) f32
    s = s - jnp.max(s, axis=-1, keepdims=True)
    p = jnp.exp(s)
    p = p / jnp.sum(p, axis=-1, keepdims=True)      # exact divide (parity with softmax)
    o = jnp.einsum("hqk,hkd->hqd", p.astype(bf), v3,
                   preferred_element_type=jnp.float32)                   # (H, S, Dh) f32
    return jnp.transpose(o, (1, 0, 2)).reshape(S, E)


# ----------------------------------------------------------------------------
# Fused decoder kernel: grid = (batch, layer). The output block (indexed by batch only)
# stays resident in VMEM across the layer axis and carries the activation layer-to-layer.
# ----------------------------------------------------------------------------

def _decoder_kernel(x_ref, mem_ref,
                    sa_wqkv_ref, sa_bqkv_ref, sa_wo_ref, sa_bo_ref,
                    n1_g_ref, n1_b_ref,
                    ca_wq_ref, ca_bq_ref, ca_wkv_ref, ca_bkv_ref,
                    ca_wo_ref, ca_bo_ref,
                    n2_g_ref, n2_b_ref,
                    w1_ref, b1_ref, w2_ref, b2_ref,
                    n3_g_ref, n3_b_ref,
                    o_ref, *, nhead):
    l = pl.program_id(1)
    bf = jnp.bfloat16

    @pl.when(l == 0)
    def _():
        o_ref[...] = x_ref[...]

    tgt = o_ref[...]          # (S, E) f32 — carried activation
    mem = mem_ref[...]        # (Sk, E) f32
    E = tgt.shape[-1]

    # ---- self-attention sub-layer: fused (E, 3E) qkv projection ----
    qkv = jnp.dot(tgt.astype(bf), sa_wqkv_ref[...],
                  preferred_element_type=jnp.float32) + sa_bqkv_ref[...]
    q, k, v = qkv[:, :E], qkv[:, E:2 * E], qkv[:, 2 * E:]
    attn = _sdpa(q, k, v, nhead)
    proj = jnp.dot(attn.astype(bf), sa_wo_ref[...],
                   preferred_element_type=jnp.float32) + sa_bo_ref[...]
    tgt = _layernorm(tgt + proj, n1_g_ref[...], n1_b_ref[...])

    # ---- cross-attention sub-layer: q from tgt, fused (E, 2E) kv from memory ----
    q = jnp.dot(tgt.astype(bf), ca_wq_ref[...],
                preferred_element_type=jnp.float32) + ca_bq_ref[...]
    kv = jnp.dot(mem.astype(bf), ca_wkv_ref[...],
                 preferred_element_type=jnp.float32) + ca_bkv_ref[...]
    k, v = kv[:, :E], kv[:, E:]
    attn = _sdpa(q, k, v, nhead)
    proj = jnp.dot(attn.astype(bf), ca_wo_ref[...],
                   preferred_element_type=jnp.float32) + ca_bo_ref[...]
    tgt = _layernorm(tgt + proj, n2_g_ref[...], n2_b_ref[...])

    # ---- feed-forward sub-layer ----
    h = jnp.dot(tgt.astype(bf), w1_ref[...],
                preferred_element_type=jnp.float32) + b1_ref[...]
    h = jnp.maximum(h, 0.0)
    ff = jnp.dot(h.astype(bf), w2_ref[...],
                 preferred_element_type=jnp.float32) + b2_ref[...]
    tgt = _layernorm(tgt + ff, n3_g_ref[...], n3_b_ref[...])

    o_ref[...] = tgt


def transformer_decoder_pallas(tgt, memory, params, nhead):
    """tgt: (B, S, E) f32, memory: (B, Sk, E) f32, params: layer-stacked dict -> (B, S, E)."""
    B, S, E = tgt.shape
    Sk = memory.shape[1]
    L = params["sa_wqkv"].shape[0]
    F = params["w1"].shape[-1]

    def wspec(shape):   # layer-indexed (stacked) parameter, constant over batch axis
        return pl.BlockSpec((None,) + shape, lambda b, l: (l,) + (0,) * len(shape))

    in_specs = [
        pl.BlockSpec((None, S, E), lambda b, l: (b, 0, 0)),     # tgt
        pl.BlockSpec((None, Sk, E), lambda b, l: (b, 0, 0)),    # memory
        wspec((E, 3 * E)), wspec((1, 3 * E)),                   # sa_wqkv, sa_bqkv
        wspec((E, E)), wspec((1, E)),                           # sa_wo, sa_bo
        wspec((1, E)), wspec((1, E)),                           # norm1 gamma/beta
        wspec((E, E)), wspec((1, E)),                           # ca_wq, ca_bq
        wspec((E, 2 * E)), wspec((1, 2 * E)),                   # ca_wkv, ca_bkv
        wspec((E, E)), wspec((1, E)),                           # ca_wo, ca_bo
        wspec((1, E)), wspec((1, E)),                           # norm2 gamma/beta
        wspec((E, F)), wspec((1, F)),                           # w1, b1
        wspec((F, E)), wspec((1, E)),                           # w2, b2
        wspec((1, E)), wspec((1, E)),                           # norm3 gamma/beta
    ]

    kern = functools.partial(_decoder_kernel, nhead=nhead)
    return pl.pallas_call(
        kern,
        out_shape=jax.ShapeDtypeStruct((B, S, E), jnp.float32),
        grid=(B, L),
        in_specs=in_specs,
        out_specs=pl.BlockSpec((None, S, E), lambda b, l: (b, 0, 0)),
        compiler_params=pltpu.CompilerParams(
            dimension_semantics=("parallel", "arbitrary"),
            vmem_limit_bytes=48 * 1024 * 1024),
    )(tgt, memory,
      params["sa_wqkv"], params["sa_bqkv"], params["sa_wo"], params["sa_bo"],
      params["n1_g"], params["n1_b"],
      params["ca_wq"], params["ca_bq"], params["ca_wkv"], params["ca_bkv"],
      params["ca_wo"], params["ca_bo"],
      params["n2_g"], params["n2_b"],
      params["w1"], params["b1"], params["w2"], params["b2"],
      params["n3_g"], params["n3_b"])


# ----------------------------------------------------------------------------
# Deterministic synthetic parameters.
# Weights are pre-transposed to (K, N) layout and pre-cast to bf16 (MXU-native);
# biases / LayerNorm affine stay f32.
# ----------------------------------------------------------------------------

def _normal(key, shape, scale=0.05):
    return scale * jax.random.normal(key, shape, dtype=jnp.float32)


def _init_mha(key, E):
    ks = jax.random.split(key, 4)
    # PyTorch layout: in_proj_weight (3E, E) rows [Wq; Wk; Wv]; y = x @ W.T + b.
    w_in = _normal(ks[0], (3 * E, E))
    b_in = _normal(ks[1], (3 * E,))
    wo = _normal(ks[2], (E, E))
    bo = _normal(ks[3], (E,))
    return w_in, b_in, wo, bo


def init_decoder_layer(key, E, F):
    bf = jnp.bfloat16
    ks = jax.random.split(key, 6)
    sa_w_in, sa_b_in, sa_wo, sa_bo = _init_mha(ks[0], E)
    ca_w_in, ca_b_in, ca_wo, ca_bo = _init_mha(ks[1], E)
    w1 = _normal(ks[2], (F, E))
    b1 = _normal(ks[3], (F,))
    w2 = _normal(ks[4], (E, F))
    b2 = _normal(ks[5], (E,))
    return {
        "sa_wqkv": jnp.transpose(sa_w_in).astype(bf),          # (E, 3E) cols [q|k|v]
        "sa_bqkv": sa_b_in.reshape(1, -1),
        "sa_wo": jnp.transpose(sa_wo).astype(bf),              # (E, E)
        "sa_bo": sa_bo.reshape(1, -1),
        "n1_g": jnp.ones((1, E), jnp.float32),
        "n1_b": jnp.zeros((1, E), jnp.float32),
        "ca_wq": jnp.transpose(ca_w_in[:E]).astype(bf),        # (E, E)
        "ca_bq": ca_b_in[:E].reshape(1, -1),
        "ca_wkv": jnp.transpose(ca_w_in[E:]).astype(bf),       # (E, 2E) cols [k|v]
        "ca_bkv": ca_b_in[E:].reshape(1, -1),
        "ca_wo": jnp.transpose(ca_wo).astype(bf),              # (E, E)
        "ca_bo": ca_bo.reshape(1, -1),
        "n2_g": jnp.ones((1, E), jnp.float32),
        "n2_b": jnp.zeros((1, E), jnp.float32),
        "w1": jnp.transpose(w1).astype(bf),                    # (E, F)
        "b1": b1.reshape(1, -1),
        "w2": jnp.transpose(w2).astype(bf),                    # (F, E)
        "b2": b2.reshape(1, -1),
        "n3_g": jnp.ones((1, E), jnp.float32),
        "n3_b": jnp.zeros((1, E), jnp.float32),
    }


def stack_layers(layer_params):
    keys = layer_params[0].keys()
    return {k: jnp.stack([lp[k] for lp in layer_params], axis=0) for k in keys}


# ----------------------------------------------------------------------------
# Driver
# ----------------------------------------------------------------------------

if __name__ == "__main__":
    d_model = 32
    nhead = 4
    num_layers = 2
    d_ff = 64
    batch = 2
    tgt_seq = 8
    mem_seq = 8

    root = jax.random.PRNGKey(0)
    k_params, k_tgt, k_mem = jax.random.split(root, 3)
    layer_keys = jax.random.split(k_params, num_layers)
    params = stack_layers([init_decoder_layer(k, d_model, d_ff) for k in layer_keys])

    tgt = jax.random.normal(k_tgt, (batch, tgt_seq, d_model), dtype=jnp.float32)
    memory = jax.random.normal(k_mem, (batch, mem_seq, d_model), dtype=jnp.float32)

    fwd = jax.jit(functools.partial(transformer_decoder_pallas, nhead=nhead))
    out = fwd(tgt, memory, params)
    out = jax.block_until_ready(out)

    assert out.shape == (batch, tgt_seq, d_model), out.shape
    assert bool(jnp.all(jnp.isfinite(out)))
    print("KERNEL_OK")
</pallas_src>

<mosaic_0001>
module attributes {stable_mosaic.version = 11 : i64} {
  func.func @_decoder_kernel(%arg0: i32, %arg1: i32, %arg2: memref<1x8x32xf32, #tpu.memory_space<vmem>>, %arg3: memref<1x8x32xf32, #tpu.memory_space<vmem>>, %arg4: memref<1x32x96xbf16, #tpu.memory_space<vmem>>, %arg5: memref<1x1x96xf32, #tpu.memory_space<vmem>>, %arg6: memref<1x32x32xbf16, #tpu.memory_space<vmem>>, %arg7: memref<1x1x32xf32, #tpu.memory_space<vmem>>, %arg8: memref<1x1x32xf32, #tpu.memory_space<vmem>>, %arg9: memref<1x1x32xf32, #tpu.memory_space<vmem>>, %arg10: memref<1x32x32xbf16, #tpu.memory_space<vmem>>, %arg11: memref<1x1x32xf32, #tpu.memory_space<vmem>>, %arg12: memref<1x32x64xbf16, #tpu.memory_space<vmem>>, %arg13: memref<1x1x64xf32, #tpu.memory_space<vmem>>, %arg14: memref<1x32x32xbf16, #tpu.memory_space<vmem>>, %arg15: memref<1x1x32xf32, #tpu.memory_space<vmem>>, %arg16: memref<1x1x32xf32, #tpu.memory_space<vmem>>, %arg17: memref<1x1x32xf32, #tpu.memory_space<vmem>>, %arg18: memref<1x32x64xbf16, #tpu.memory_space<vmem>>, %arg19: memref<1x1x64xf32, #tpu.memory_space<vmem>>, %arg20: memref<1x64x32xbf16, #tpu.memory_space<vmem>>, %arg21: memref<1x1x32xf32, #tpu.memory_space<vmem>>, %arg22: memref<1x1x32xf32, #tpu.memory_space<vmem>>, %arg23: memref<1x1x32xf32, #tpu.memory_space<vmem>>, %arg24: memref<1x8x32xf32, #tpu.memory_space<vmem>>) attributes {dimension_semantics = [#tpu.dimension_semantics<parallel>, #tpu.dimension_semantics<arbitrary>], iteration_bounds = array<i64: 2, 2>, scalar_prefetch = 0 : i64, scratch_operands = 0 : i64, tpu.core_type = #tpu.core_type<tc>, window_params = [{transform_indices = @transform_0, window_bounds = array<i64: 1, 8, 32>}, {transform_indices = @transform_1, window_bounds = array<i64: 1, 8, 32>}, {transform_indices = @transform_2, window_bounds = array<i64: 1, 32, 96>}, {transform_indices = @transform_3, window_bounds = array<i64: 1, 1, 96>}, {transform_indices = @transform_4, window_bounds = array<i64: 1, 32, 32>}, {transform_indices = @transform_5, window_bounds = array<i64: 1, 1, 32>}, {transform_indices = @transform_6, window_bounds = array<i64: 1, 1, 32>}, {transform_indices = @transform_7, window_bounds = array<i64: 1, 1, 32>}, {transform_indices = @transform_8, window_bounds = array<i64: 1, 32, 32>}, {transform_indices = @transform_9, window_bounds = array<i64: 1, 1, 32>}, {transform_indices = @transform_10, window_bounds = array<i64: 1, 32, 64>}, {transform_indices = @transform_11, window_bounds = array<i64: 1, 1, 64>}, {transform_indices = @transform_12, window_bounds = array<i64: 1, 32, 32>}, {transform_indices = @transform_13, window_bounds = array<i64: 1, 1, 32>}, {transform_indices = @transform_14, window_bounds = array<i64: 1, 1, 32>}, {transform_indices = @transform_15, window_bounds = array<i64: 1, 1, 32>}, {transform_indices = @transform_16, window_bounds = array<i64: 1, 32, 64>}, {transform_indices = @transform_17, window_bounds = array<i64: 1, 1, 64>}, {transform_indices = @transform_18, window_bounds = array<i64: 1, 64, 32>}, {transform_indices = @transform_19, window_bounds = array<i64: 1, 1, 32>}, {transform_indices = @transform_20, window_bounds = array<i64: 1, 1, 32>}, {transform_indices = @transform_21, window_bounds = array<i64: 1, 1, 32>}, {transform_indices = @transform_22, window_bounds = array<i64: 1, 8, 32>}]} {
    %c0_i32 = arith.constant 0 : i32
    %0 = arith.cmpi eq, %arg1, %c0_i32 : i32
    %1 = arith.extui %0 : i1 to i32
    %c0_i32_0 = arith.constant 0 : i32
    %2 = arith.cmpi ne, %1, %c0_i32_0 : i32
    scf.if %2 {
      %c0_101 = arith.constant 0 : index
      %c0_102 = arith.constant 0 : index
      %c0_103 = arith.constant 0 : index
      %204 = vector.load %arg2[%c0_101, %c0_102, %c0_103] : memref<1x8x32xf32, #tpu.memory_space<vmem>>, vector<1x8x32xf32>
      %205 = vector.shape_cast %204 : vector<1x8x32xf32> to vector<8x32xf32>
      %c0_104 = arith.constant 0 : index
      %c0_105 = arith.constant 0 : index
      %c0_106 = arith.constant 0 : index
      %206 = vector.load %arg24[%c0_104, %c0_105, %c0_106] : memref<1x8x32xf32, #tpu.memory_space<vmem>>, vector<1x8x32xf32>
      %207 = vector.shape_cast %206 : vector<1x8x32xf32> to vector<8x32xf32>
      %208 = vector.shape_cast %205 : vector<8x32xf32> to vector<1x8x32xf32>
      tpu.vector_store %arg24[%c0_104, %c0_105, %c0_106], %208 {strides = array<i32>} : memref<1x8x32xf32, #tpu.memory_space<vmem>>, vector<1x8x32xf32>,
    } else {
    }
    %c0 = arith.constant 0 : index
    %c0_1 = arith.constant 0 : index
    %c0_2 = arith.constant 0 : index
    %3 = vector.load %arg24[%c0, %c0_1, %c0_2] : memref<1x8x32xf32, #tpu.memory_space<vmem>>, vector<1x8x32xf32>
    %4 = vector.shape_cast %3 : vector<1x8x32xf32> to vector<8x32xf32>
    %c0_3 = arith.constant 0 : index
    %c0_4 = arith.constant 0 : index
    %c0_5 = arith.constant 0 : index
    %5 = vector.load %arg3[%c0_3, %c0_4, %c0_5] : memref<1x8x32xf32, #tpu.memory_space<vmem>>, vector<1x8x32xf32>
    %6 = vector.shape_cast %5 : vector<1x8x32xf32> to vector<8x32xf32>
    %7 = arith.truncf %4 : vector<8x32xf32> to vector<8x32xbf16>
    %c0_6 = arith.constant 0 : index
    %c0_7 = arith.constant 0 : index
    %c0_8 = arith.constant 0 : index
    %8 = vector.load %arg4[%c0_6, %c0_7, %c0_8] : memref<1x32x96xbf16, #tpu.memory_space<vmem>>, vector<1x32x96xbf16>
    %9 = vector.shape_cast %8 : vector<1x32x96xbf16> to vector<32x96xbf16>
    %cst = arith.constant dense<0.000000e+00> : vector<8x96xf32>
    %10 = tpu.matmul %7, %9, %cst {dimension_numbers = #tpu.dot_dimension_numbers<[1], [0], [0], [1], [0, 0, 1, 1], [], []>} : vector<8x32xbf16>, vector<32x96xbf16>, vector<8x96xf32> -> vector<8x96xf32>
    %c0_9 = arith.constant 0 : index
    %c0_10 = arith.constant 0 : index
    %c0_11 = arith.constant 0 : index
    %11 = vector.load %arg5[%c0_9, %c0_10, %c0_11] : memref<1x1x96xf32, #tpu.memory_space<vmem>>, vector<1x1x96xf32>
    %12 = vector.shape_cast %11 : vector<1x1x96xf32> to vector<1x96xf32>
    %13 = vector.broadcast %12 : vector<1x96xf32> to vector<8x96xf32>
    %14 = arith.addf %10, %13 : vector<8x96xf32>
    %15 = vector.extract_strided_slice %14 {offsets = [0, 0], sizes = [8, 32], strides = [1, 1]} : vector<8x96xf32> to vector<8x32xf32>
    %16 = vector.extract_strided_slice %14 {offsets = [0, 32], sizes = [8, 32], strides = [1, 1]} : vector<8x96xf32> to vector<8x32xf32>
    %17 = vector.extract_strided_slice %14 {offsets = [0, 64], sizes = [8, 32], strides = [1, 1]} : vector<8x96xf32> to vector<8x32xf32>
    %18 = vector.shape_cast %15 : vector<8x32xf32> to vector<8x4x8xf32>
    %19 = tpu.transpose %18, [1, 0, 2] : vector<8x4x8xf32> -> vector<4x8x8xf32>
    %20 = arith.truncf %19 : vector<4x8x8xf32> to vector<4x8x8xbf16>
    %21 = vector.shape_cast %16 : vector<8x32xf32> to vector<8x4x8xf32>
    %22 = tpu.transpose %21, [1, 0, 2] : vector<8x4x8xf32> -> vector<4x8x8xf32>
    %23 = arith.truncf %22 : vector<4x8x8xf32> to vector<4x8x8xbf16>
    %24 = vector.shape_cast %17 : vector<8x32xf32> to vector<8x4x8xf32>
    %25 = tpu.transpose %24, [1, 0, 2] : vector<8x4x8xf32> -> vector<4x8x8xf32>
    %26 = arith.truncf %25 : vector<4x8x8xf32> to vector<4x8x8xbf16>
    "tpu.trace_start"() <{level = 10 : i32, message = "hqd,hkd->hqk"}> : () -> ()
    %cst_12 = arith.constant dense<0.000000e+00> : vector<4x8x8xf32>
    %27 = tpu.matmul %20, %23, %cst_12 {dimension_numbers = #tpu.dot_dimension_numbers<[2], [2], [1], [1], [0, 0, 0, 1, 1, 1], [0], [0]>} : vector<4x8x8xbf16>, vector<4x8x8xbf16>, vector<4x8x8xf32> -> vector<4x8x8xf32>
    "tpu.trace_stop"() : () -> ()
    %cst_13 = arith.constant 0.353553385 : f32
    %28 = vector.broadcast %cst_13 : f32 to vector<4x8x8xf32>
    %29 = arith.mulf %27, %28 : vector<4x8x8xf32>
    %cst_14 = arith.constant dense<0xFF800000> : vector<4x8xf32>
    %30 = vector.multi_reduction <maximumf>, %29, %cst_14 [2] : vector<4x8x8xf32> to vector<4x8xf32>
    %31 = vector.shape_cast %30 : vector<4x8xf32> to vector<4x8x1xf32>
    %32 = vector.broadcast %31 : vector<4x8x1xf32> to vector<4x8x8xf32>
    %33 = arith.subf %29, %32 : vector<4x8x8xf32>
    %34 = math.exp %33 : vector<4x8x8xf32>
    %cst_15 = arith.constant dense<0.000000e+00> : vector<4x8xf32>
    %35 = vector.multi_reduction <add>, %34, %cst_15 [2] : vector<4x8x8xf32> to vector<4x8xf32>
    %36 = vector.shape_cast %35 : vector<4x8xf32> to vector<4x8x1xf32>
    %37 = vector.broadcast %36 : vector<4x8x1xf32> to vector<4x8x8xf32>
    %38 = arith.divf %34, %37 : vector<4x8x8xf32>
    %39 = arith.truncf %38 : vector<4x8x8xf32> to vector<4x8x8xbf16>
    "tpu.trace_start"() <{level = 10 : i32, message = "hqk,hkd->hqd"}> : () -> ()
    %cst_16 = arith.constant dense<0.000000e+00> : vector<4x8x8xf32>
    %40 = tpu.matmul %39, %26, %cst_16 {dimension_numbers = #tpu.dot_dimension_numbers<[2], [1], [1], [2], [0, 0, 0, 1, 1, 2], [0], [0]>} : vector<4x8x8xbf16>, vector<4x8x8xbf16>, vector<4x8x8xf32> -> vector<4x8x8xf32>
    "tpu.trace_stop"() : () -> ()
    %41 = tpu.transpose %40, [1, 0, 2] : vector<4x8x8xf32> -> vector<8x4x8xf32>
    %42 = vector.shape_cast %41 : vector<8x4x8xf32> to vector<8x32xf32>
    %43 = arith.truncf %42 : vector<8x32xf32> to vector<8x32xbf16>
    %c0_17 = arith.constant 0 : index
    %c0_18 = arith.constant 0 : index
    %c0_19 = arith.constant 0 : index
    %44 = vector.load %arg6[%c0_17, %c0_18, %c0_19] : memref<1x32x32xbf16, #tpu.memory_space<vmem>>, vector<1x32x32xbf16>
    %45 = vector.shape_cast %44 : vector<1x32x32xbf16> to vector<32x32xbf16>
    %cst_20 = arith.constant dense<0.000000e+00> : vector<8x32xf32>
    %46 = tpu.matmul %43, %45, %cst_20 {dimension_numbers = #tpu.dot_dimension_numbers<[1], [0], [0], [1], [0, 0, 1, 1], [], []>} : vector<8x32xbf16>, vector<32x32xbf16>, vector<8x32xf32> -> vector<8x32xf32>
    %c0_21 = arith.constant 0 : index
    %c0_22 = arith.constant 0 : index
    %c0_23 = arith.constant 0 : index
    %47 = vector.load %arg7[%c0_21, %c0_22, %c0_23] : memref<1x1x32xf32, #tpu.memory_space<vmem>>, vector<1x1x32xf32>
    %48 = vector.shape_cast %47 : vector<1x1x32xf32> to vector<1x32xf32>
    %49 = vector.broadcast %48 : vector<1x32xf32> to vector<8x32xf32>
    %50 = arith.addf %46, %49 : vector<8x32xf32>
    %51 = arith.addf %4, %50 : vector<8x32xf32>
    %c0_24 = arith.constant 0 : index
    %c0_25 = arith.constant 0 : index
    %c0_26 = arith.constant 0 : index
    %52 = vector.load %arg8[%c0_24, %c0_25, %c0_26] : memref<1x1x32xf32, #tpu.memory_space<vmem>>, vector<1x1x32xf32>
    %53 = vector.shape_cast %52 : vector<1x1x32xf32> to vector<1x32xf32>
    %c0_27 = arith.constant 0 : index
    %c0_28 = arith.constant 0 : index
    %c0_29 = arith.constant 0 : index
    %54 = vector.load %arg9[%c0_27, %c0_28, %c0_29] : memref<1x1x32xf32, #tpu.memory_space<vmem>>, vector<1x1x32xf32>
    %55 = vector.shape_cast %54 : vector<1x1x32xf32> to vector<1x32xf32>
    %cst_30 = arith.constant dense<0.000000e+00> : vector<8xf32>
    %56 = vector.multi_reduction <add>, %51, %cst_30 [1] : vector<8x32xf32> to vector<8xf32>
    %57 = vector.shape_cast %56 : vector<8xf32> to vector<8x1xf32>
    %cst_31 = arith.constant 3.200000e+01 : f32
    %58 = vector.broadcast %cst_31 : f32 to vector<8x1xf32>
    %59 = arith.divf %57, %58 : vector<8x1xf32>
    %60 = vector.broadcast %59 : vector<8x1xf32> to vector<8x32xf32>
    %61 = arith.subf %51, %60 : vector<8x32xf32>
    %62 = arith.mulf %61, %61 : vector<8x32xf32>
    %cst_32 = arith.constant dense<0.000000e+00> : vector<8xf32>
    %63 = vector.multi_reduction <add>, %62, %cst_32 [1] : vector<8x32xf32> to vector<8xf32>
    %64 = vector.shape_cast %63 : vector<8xf32> to vector<8x1xf32>
    %cst_33 = arith.constant 3.200000e+01 : f32
    %65 = vector.broadcast %cst_33 : f32 to vector<8x1xf32>
    %66 = arith.divf %64, %65 : vector<8x1xf32>
    %67 = vector.broadcast %59 : vector<8x1xf32> to vector<8x32xf32>
    %68 = arith.subf %51, %67 : vector<8x32xf32>
    %cst_34 = arith.constant 9.99999974E-6 : f32
    %69 = vector.broadcast %cst_34 : f32 to vector<8x1xf32>
    %70 = arith.addf %66, %69 : vector<8x1xf32>
    %71 = math.rsqrt %70 : vector<8x1xf32>
    %72 = vector.broadcast %71 : vector<8x1xf32> to vector<8x32xf32>
    %73 = arith.mulf %68, %72 : vector<8x32xf32>
    %74 = vector.broadcast %53 : vector<1x32xf32> to vector<8x32xf32>
    %75 = arith.mulf %73, %74 : vector<8x32xf32>
    %76 = vector.broadcast %55 : vector<1x32xf32> to vector<8x32xf32>
    %77 = arith.addf %75, %76 : vector<8x32xf32>
    %78 = arith.truncf %77 : vector<8x32xf32> to vector<8x32xbf16>
    %c0_35 = arith.constant 0 : index
    %c0_36 = arith.constant 0 : index
    %c0_37 = arith.constant 0 : index
    %79 = vector.load %arg10[%c0_35, %c0_36, %c0_37] : memref<1x32x32xbf16, #tpu.memory_space<vmem>>, vector<1x32x32xbf16>
    %80 = vector.shape_cast %79 : vector<1x32x32xbf16> to vector<32x32xbf16>
    %cst_38 = arith.constant dense<0.000000e+00> : vector<8x32xf32>
    %81 = tpu.matmul %78, %80, %cst_38 {dimension_numbers = #tpu.dot_dimension_numbers<[1], [0], [0], [1], [0, 0, 1, 1], [], []>} : vector<8x32xbf16>, vector<32x32xbf16>, vector<8x32xf32> -> vector<8x32xf32>
    %c0_39 = arith.constant 0 : index
    %c0_40 = arith.constant 0 : index
    %c0_41 = arith.constant 0 : index
    %82 = vector.load %arg11[%c0_39, %c0_40, %c0_41] : memref<1x1x32xf32, #tpu.memory_space<vmem>>, vector<1x1x32xf32>
    %83 = vector.shape_cast %82 : vector<1x1x32xf32> to vector<1x32xf32>
    %84 = vector.broadcast %83 : vector<1x32xf32> to vector<8x32xf32>
    %85 = arith.addf %81, %84 : vector<8x32xf32>
    %86 = arith.truncf %6 : vector<8x32xf32> to vector<8x32xbf16>
    %c0_42 = arith.constant 0 : index
    %c0_43 = arith.constant 0 : index
    %c0_44 = arith.constant 0 : index
    %87 = vector.load %arg12[%c0_42, %c0_43, %c0_44] : memref<1x32x64xbf16, #tpu.memory_space<vmem>>, vector<1x32x64xbf16>
    %88 = vector.shape_cast %87 : vector<1x32x64xbf16> to vector<32x64xbf16>
    %cst_45 = arith.constant dense<0.000000e+00> : vector<8x64xf32>
    %89 = tpu.matmul %86, %88, %cst_45 {dimension_numbers = #tpu.dot_dimension_numbers<[1], [0], [0], [1], [0, 0, 1, 1], [], []>} : vector<8x32xbf16>, vector<32x64xbf16>, vector<8x64xf32> -> vector<8x64xf32>
    %c0_46 = arith.constant 0 : index
    %c0_47 = arith.constant 0 : index
    %c0_48 = arith.constant 0 : index
    %90 = vector.load %arg13[%c0_46, %c0_47, %c0_48] : memref<1x1x64xf32, #tpu.memory_space<vmem>>, vector<1x1x64xf32>
    %91 = vector.shape_cast %90 : vector<1x1x64xf32> to vector<1x64xf32>
    %92 = vector.broadcast %91 : vector<1x64xf32> to vector<8x64xf32>
    %93 = arith.addf %89, %92 : vector<8x64xf32>
    %94 = vector.extract_strided_slice %93 {offsets = [0, 0], sizes = [8, 32], strides = [1, 1]} : vector<8x64xf32> to vector<8x32xf32>
    %95 = vector.extract_strided_slice %93 {offsets = [0, 32], sizes = [8, 32], strides = [1, 1]} : vector<8x64xf32> to vector<8x32xf32>
    %96 = vector.shape_cast %85 : vector<8x32xf32> to vector<8x4x8xf32>
    %97 = tpu.transpose %96, [1, 0, 2] : vector<8x4x8xf32> -> vector<4x8x8xf32>
    %98 = arith.truncf %97 : vector<4x8x8xf32> to vector<4x8x8xbf16>
    %99 = vector.shape_cast %94 : vector<8x32xf32> to vector<8x4x8xf32>
    %100 = tpu.transpose %99, [1, 0, 2] : vector<8x4x8xf32> -> vector<4x8x8xf32>
    %101 = arith.truncf %100 : vector<4x8x8xf32> to vector<4x8x8xbf16>
    %102 = vector.shape_cast %95 : vector<8x32xf32> to vector<8x4x8xf32>
    %103 = tpu.transpose %102, [1, 0, 2] : vector<8x4x8xf32> -> vector<4x8x8xf32>
    %104 = arith.truncf %103 : vector<4x8x8xf32> to vector<4x8x8xbf16>
    "tpu.trace_start"() <{level = 10 : i32, message = "hqd,hkd->hqk"}> : () -> ()
    %cst_49 = arith.constant dense<0.000000e+00> : vector<4x8x8xf32>
    %105 = tpu.matmul %98, %101, %cst_49 {dimension_numbers = #tpu.dot_dimension_numbers<[2], [2], [1], [1], [0, 0, 0, 1, 1, 1], [0], [0]>} : vector<4x8x8xbf16>, vector<4x8x8xbf16>, vector<4x8x8xf32> -> vector<4x8x8xf32>
    "tpu.trace_stop"() : () -> ()
    %cst_50 = arith.constant 0.353553385 : f32
    %106 = vector.broadcast %cst_50 : f32 to vector<4x8x8xf32>
    %107 = arith.mulf %105, %106 : vector<4x8x8xf32>
    %cst_51 = arith.constant dense<0xFF800000> : vector<4x8xf32>
    %108 = vector.multi_reduction <maximumf>, %107, %cst_51 [2] : vector<4x8x8xf32> to vector<4x8xf32>
    %109 = vector.shape_cast %108 : vector<4x8xf32> to vector<4x8x1xf32>
    %110 = vector.broadcast %109 : vector<4x8x1xf32> to vector<4x8x8xf32>
    %111 = arith.subf %107, %110 : vector<4x8x8xf32>
    %112 = math.exp %111 : vector<4x8x8xf32>
    %cst_52 = arith.constant dense<0.000000e+00> : vector<4x8xf32>
    %113 = vector.multi_reduction <add>, %112, %cst_52 [2] : vector<4x8x8xf32> to vector<4x8xf32>
    %114 = vector.shape_cast %113 : vector<4x8xf32> to vector<4x8x1xf32>
    %115 = vector.broadcast %114 : vector<4x8x1xf32> to vector<4x8x8xf32>
    %116 = arith.divf %112, %115 : vector<4x8x8xf32>
    %117 = arith.truncf %116 : vector<4x8x8xf32> to vector<4x8x8xbf16>
    "tpu.trace_start"() <{level = 10 : i32, message = "hqk,hkd->hqd"}> : () -> ()
    %cst_53 = arith.constant dense<0.000000e+00> : vector<4x8x8xf32>
    %118 = tpu.matmul %117, %104, %cst_53 {dimension_numbers = #tpu.dot_dimension_numbers<[2], [1], [1], [2], [0, 0, 0, 1, 1, 2], [0], [0]>} : vector<4x8x8xbf16>, vector<4x8x8xbf16>, vector<4x8x8xf32> -> vector<4x8x8xf32>
    "tpu.trace_stop"() : () -> ()
    %119 = tpu.transpose %118, [1, 0, 2] : vector<4x8x8xf32> -> vector<8x4x8xf32>
    %120 = vector.shape_cast %119 : vector<8x4x8xf32> to vector<8x32xf32>
    %121 = arith.truncf %120 : vector<8x32xf32> to vector<8x32xbf16>
    %c0_54 = arith.constant 0 : index
    %c0_55 = arith.constant 0 : index
    %c0_56 = arith.constant 0 : index
    %122 = vector.load %arg14[%c0_54, %c0_55, %c0_56] : memref<1x32x32xbf16, #tpu.memory_space<vmem>>, vector<1x32x32xbf16>
    %123 = vector.shape_cast %122 : vector<1x32x32xbf16> to vector<32x32xbf16>
    %cst_57 = arith.constant dense<0.000000e+00> : vector<8x32xf32>
    %124 = tpu.matmul %121, %123, %cst_57 {dimension_numbers = #tpu.dot_dimension_numbers<[1], [0], [0], [1], [0, 0, 1, 1], [], []>} : vector<8x32xbf16>, vector<32x32xbf16>, vector<8x32xf32> -> vector<8x32xf32>
    %c0_58 = arith.constant 0 : index
    %c0_59 = arith.constant 0 : index
    %c0_60 = arith.constant 0 : index
    %125 = vector.load %arg15[%c0_58, %c0_59, %c0_60] : memref<1x1x32xf32, #tpu.memory_space<vmem>>, vector<1x1x32xf32>
    %126 = vector.shape_cast %125 : vector<1x1x32xf32> to vector<1x32xf32>
    %127 = vector.broadcast %126 : vector<1x32xf32> to vector<8x32xf32>
    %128 = arith.addf %124, %127 : vector<8x32xf32>
    %129 = arith.addf %77, %128 : vector<8x32xf32>
    %c0_61 = arith.constant 0 : index
    %c0_62 = arith.constant 0 : index
    %c0_63 = arith.constant 0 : index
    %130 = vector.load %arg16[%c0_61, %c0_62, %c0_63] : memref<1x1x32xf32, #tpu.memory_space<vmem>>, vector<1x1x32xf32>
    %131 = vector.shape_cast %130 : vector<1x1x32xf32> to vector<1x32xf32>
    %c0_64 = arith.constant 0 : index
    %c0_65 = arith.constant 0 : index
    %c0_66 = arith.constant 0 : index
    %132 = vector.load %arg17[%c0_64, %c0_65, %c0_66] : memref<1x1x32xf32, #tpu.memory_space<vmem>>, vector<1x1x32xf32>
    %133 = vector.shape_cast %132 : vector<1x1x32xf32> to vector<1x32xf32>
    %cst_67 = arith.constant dense<0.000000e+00> : vector<8xf32>
    %134 = vector.multi_reduction <add>, %129, %cst_67 [1] : vector<8x32xf32> to vector<8xf32>
    %135 = vector.shape_cast %134 : vector<8xf32> to vector<8x1xf32>
    %cst_68 = arith.constant 3.200000e+01 : f32
    %136 = vector.broadcast %cst_68 : f32 to vector<8x1xf32>
    %137 = arith.divf %135, %136 : vector<8x1xf32>
    %138 = vector.broadcast %137 : vector<8x1xf32> to vector<8x32xf32>
    %139 = arith.subf %129, %138 : vector<8x32xf32>
    %140 = arith.mulf %139, %139 : vector<8x32xf32>
    %cst_69 = arith.constant dense<0.000000e+00> : vector<8xf32>
    %141 = vector.multi_reduction <add>, %140, %cst_69 [1] : vector<8x32xf32> to vector<8xf32>
    %142 = vector.shape_cast %141 : vector<8xf32> to vector<8x1xf32>
    %cst_70 = arith.constant 3.200000e+01 : f32
    %143 = vector.broadcast %cst_70 : f32 to vector<8x1xf32>
    %144 = arith.divf %142, %143 : vector<8x1xf32>
    %145 = vector.broadcast %137 : vector<8x1xf32> to vector<8x32xf32>
    %146 = arith.subf %129, %145 : vector<8x32xf32>
    %cst_71 = arith.constant 9.99999974E-6 : f32
    %147 = vector.broadcast %cst_71 : f32 to vector<8x1xf32>
    %148 = arith.addf %144, %147 : vector<8x1xf32>
    %149 = math.rsqrt %148 : vector<8x1xf32>
    %150 = vector.broadcast %149 : vector<8x1xf32> to vector<8x32xf32>
    %151 = arith.mulf %146, %150 : vector<8x32xf32>
    %152 = vector.broadcast %131 : vector<1x32xf32> to vector<8x32xf32>
    %153 = arith.mulf %151, %152 : vector<8x32xf32>
    %154 = vector.broadcast %133 : vector<1x32xf32> to vector<8x32xf32>
    %155 = arith.addf %153, %154 : vector<8x32xf32>
    %156 = arith.truncf %155 : vector<8x32xf32> to vector<8x32xbf16>
    %c0_72 = arith.constant 0 : index
    %c0_73 = arith.constant 0 : index
    %c0_74 = arith.constant 0 : index
    %157 = vector.load %arg18[%c0_72, %c0_73, %c0_74] : memref<1x32x64xbf16, #tpu.memory_space<vmem>>, vector<1x32x64xbf16>
    %158 = vector.shape_cast %157 : vector<1x32x64xbf16> to vector<32x64xbf16>
    %cst_75 = arith.constant dense<0.000000e+00> : vector<8x64xf32>
    %159 = tpu.matmul %156, %158, %cst_75 {dimension_numbers = #tpu.dot_dimension_numbers<[1], [0], [0], [1], [0, 0, 1, 1], [], []>} : vector<8x32xbf16>, vector<32x64xbf16>, vector<8x64xf32> -> vector<8x64xf32>
    %c0_76 = arith.constant 0 : index
    %c0_77 = arith.constant 0 : index
    %c0_78 = arith.constant 0 : index
    %160 = vector.load %arg19[%c0_76, %c0_77, %c0_78] : memref<1x1x64xf32, #tpu.memory_space<vmem>>, vector<1x1x64xf32>
    %161 = vector.shape_cast %160 : vector<1x1x64xf32> to vector<1x64xf32>
    %162 = vector.broadcast %161 : vector<1x64xf32> to vector<8x64xf32>
    %163 = arith.addf %159, %162 : vector<8x64xf32>
    %cst_79 = arith.constant 0.000000e+00 : f32
    %164 = vector.broadcast %cst_79 : f32 to vector<8x64xf32>
    %165 = arith.maximumf %163, %164 : vector<8x64xf32>
    %166 = arith.truncf %165 : vector<8x64xf32> to vector<8x64xbf16>
    %c0_80 = arith.constant 0 : index
    %c0_81 = arith.constant 0 : index
    %c0_82 = arith.constant 0 : index
    %167 = vector.load %arg20[%c0_80, %c0_81, %c0_82] : memref<1x64x32xbf16, #tpu.memory_space<vmem>>, vector<1x64x32xbf16>
    %168 = vector.shape_cast %167 : vector<1x64x32xbf16> to vector<64x32xbf16>
    %cst_83 = arith.constant dense<0.000000e+00> : vector<8x32xf32>
    %169 = tpu.matmul %166, %168, %cst_83 {dimension_numbers = #tpu.dot_dimension_numbers<[1], [0], [0], [1], [0, 0, 1, 1], [], []>} : vector<8x64xbf16>, vector<64x32xbf16>, vector<8x32xf32> -> vector<8x32xf32>
    %c0_84 = arith.constant 0 : index
    %c0_85 = arith.constant 0 : index
    %c0_86 = arith.constant 0 : index
    %170 = vector.load %arg21[%c0_84, %c0_85, %c0_86] : memref<1x1x32xf32, #tpu.memory_space<vmem>>, vector<1x1x32xf32>
    %171 = vector.shape_cast %170 : vector<1x1x32xf32> to vector<1x32xf32>
    %172 = vector.broadcast %171 : vector<1x32xf32> to vector<8x32xf32>
    %173 = arith.addf %169, %172 : vector<8x32xf32>
    %174 = arith.addf %155, %173 : vector<8x32xf32>
    %c0_87 = arith.constant 0 : index
    %c0_88 = arith.constant 0 : index
    %c0_89 = arith.constant 0 : index
    %175 = vector.load %arg22[%c0_87, %c0_88, %c0_89] : memref<1x1x32xf32, #tpu.memory_space<vmem>>, vector<1x1x32xf32>
    %176 = vector.shape_cast %175 : vector<1x1x32xf32> to vector<1x32xf32>
    %c0_90 = arith.constant 0 : index
    %c0_91 = arith.constant 0 : index
    %c0_92 = arith.constant 0 : index
    %177 = vector.load %arg23[%c0_90, %c0_91, %c0_92] : memref<1x1x32xf32, #tpu.memory_space<vmem>>, vector<1x1x32xf32>
    %178 = vector.shape_cast %177 : vector<1x1x32xf32> to vector<1x32xf32>
    %cst_93 = arith.constant dense<0.000000e+00> : vector<8xf32>
    %179 = vector.multi_reduction <add>, %174, %cst_93 [1] : vector<8x32xf32> to vector<8xf32>
    %180 = vector.shape_cast %179 : vector<8xf32> to vector<8x1xf32>
    %cst_94 = arith.constant 3.200000e+01 : f32
    %181 = vector.broadcast %cst_94 : f32 to vector<8x1xf32>
    %182 = arith.divf %180, %181 : vector<8x1xf32>
    %183 = vector.broadcast %182 : vector<8x1xf32> to vector<8x32xf32>
    %184 = arith.subf %174, %183 : vector<8x32xf32>
    %185 = arith.mulf %184, %184 : vector<8x32xf32>
    %cst_95 = arith.constant dense<0.000000e+00> : vector<8xf32>
    %186 = vector.multi_reduction <add>, %185, %cst_95 [1] : vector<8x32xf32> to vector<8xf32>
    %187 = vector.shape_cast %186 : vector<8xf32> to vector<8x1xf32>
    %cst_96 = arith.constant 3.200000e+01 : f32
    %188 = vector.broadcast %cst_96 : f32 to vector<8x1xf32>
    %189 = arith.divf %187, %188 : vector<8x1xf32>
    %190 = vector.broadcast %182 : vector<8x1xf32> to vector<8x32xf32>
    %191 = arith.subf %174, %190 : vector<8x32xf32>
    %cst_97 = arith.constant 9.99999974E-6 : f32
    %192 = vector.broadcast %cst_97 : f32 to vector<8x1xf32>
    %193 = arith.addf %189, %192 : vector<8x1xf32>
    %194 = math.rsqrt %193 : vector<8x1xf32>
    %195 = vector.broadcast %194 : vector<8x1xf32> to vector<8x32xf32>
    %196 = arith.mulf %191, %195 : vector<8x32xf32>
    %197 = vector.broadcast %176 : vector<1x32xf32> to vector<8x32xf32>
    %198 = arith.mulf %196, %197 : vector<8x32xf32>
    %199 = vector.broadcast %178 : vector<1x32xf32> to vector<8x32xf32>
    %200 = arith.addf %198, %199 : vector<8x32xf32>
    %c0_98 = arith.constant 0 : index
    %c0_99 = arith.constant 0 : index
    %c0_100 = arith.constant 0 : index
    %201 = vector.load %arg24[%c0_98, %c0_99, %c0_100] : memref<1x8x32xf32, #tpu.memory_space<vmem>>, vector<1x8x32xf32>
    %202 = vector.shape_cast %201 : vector<1x8x32xf32> to vector<8x32xf32>
    %203 = vector.shape_cast %200 : vector<8x32xf32> to vector<1x8x32xf32>
    tpu.vector_store %arg24[%c0_98, %c0_99, %c0_100], %203 {strides = array<i32>} : memref<1x8x32xf32, #tpu.memory_space<vmem>>, vector<1x8x32xf32>,
    return
  }
  func.func @transform_0(%arg0: i32, %arg1: i32) -> (i32, i32, i32) {
    %c0_i32 = arith.constant 0 : i32
    %c0_i32_0 = arith.constant 0 : i32
    %c0_i32_1 = arith.constant 0 : i32
    return %arg0, %c0_i32, %c0_i32_0 : i32, i32, i32
  }
  func.func @transform_1(%arg0: i32, %arg1: i32) -> (i32, i32, i32) {
    %c0_i32 = arith.constant 0 : i32
    %c0_i32_0 = arith.constant 0 : i32
    %c0_i32_1 = arith.constant 0 : i32
    return %arg0, %c0_i32, %c0_i32_0 : i32, i32, i32
  }
  func.func @transform_2(%arg0: i32, %arg1: i32) -> (i32, i32, i32) {
    %c0_i32 = arith.constant 0 : i32
    %c0_i32_0 = arith.constant 0 : i32
    %c0_i32_1 = arith.constant 0 : i32
    return %arg1, %c0_i32, %c0_i32_0 : i32, i32, i32
  }
  func.func @transform_3(%arg0: i32, %arg1: i32) -> (i32, i32, i32) {
    %c0_i32 = arith.constant 0 : i32
    %c0_i32_0 = arith.constant 0 : i32
    %c0_i32_1 = arith.constant 0 : i32
    return %arg1, %c0_i32, %c0_i32_0 : i32, i32, i32
  }
  func.func @transform_4(%arg0: i32, %arg1: i32) -> (i32, i32, i32) {
    %c0_i32 = arith.constant 0 : i32
    %c0_i32_0 = arith.constant 0 : i32
    %c0_i32_1 = arith.constant 0 : i32
    return %arg1, %c0_i32, %c0_i32_0 : i32, i32, i32
  }
  func.func @transform_5(%arg0: i32, %arg1: i32) -> (i32, i32, i32) {
    %c0_i32 = arith.constant 0 : i32
    %c0_i32_0 = arith.constant 0 : i32
    %c0_i32_1 = arith.constant 0 : i32
    return %arg1, %c0_i32, %c0_i32_0 : i32, i32, i32
  }
  func.func @transform_6(%arg0: i32, %arg1: i32) -> (i32, i32, i32) {
    %c0_i32 = arith.constant 0 : i32
    %c0_i32_0 = arith.constant 0 : i32
    %c0_i32_1 = arith.constant 0 : i32
    return %arg1, %c0_i32, %c0_i32_0 : i32, i32, i32
  }
  func.func @transform_7(%arg0: i32, %arg1: i32) -> (i32, i32, i32) {
    %c0_i32 = arith.constant 0 : i32
    %c0_i32_0 = arith.constant 0 : i32
    %c0_i32_1 = arith.constant 0 : i32
    return %arg1, %c0_i32, %c0_i32_0 : i32, i32, i32
  }
  func.func @transform_8(%arg0: i32, %arg1: i32) -> (i32, i32, i32) {
    %c0_i32 = arith.constant 0 : i32
    %c0_i32_0 = arith.constant 0 : i32
    %c0_i32_1 = arith.constant 0 : i32
    return %arg1, %c0_i32, %c0_i32_0 : i32, i32, i32
  }
  func.func @transform_9(%arg0: i32, %arg1: i32) -> (i32, i32, i32) {
    %c0_i32 = arith.constant 0 : i32
    %c0_i32_0 = arith.constant 0 : i32
    %c0_i32_1 = arith.constant 0 : i32
    return %arg1, %c0_i32, %c0_i32_0 : i32, i32, i32
  }
  func.func @transform_10(%arg0: i32, %arg1: i32) -> (i32, i32, i32) {
    %c0_i32 = arith.constant 0 : i32
    %c0_i32_0 = arith.constant 0 : i32
    %c0_i32_1 = arith.constant 0 : i32
    return %arg1, %c0_i32, %c0_i32_0 : i32, i32, i32
  }
  func.func @transform_11(%arg0: i32, %arg1: i32) -> (i32, i32, i32) {
    %c0_i32 = arith.constant 0 : i32
    %c0_i32_0 = arith.constant 0 : i32
    %c0_i32_1 = arith.constant 0 : i32
    return %arg1, %c0_i32, %c0_i32_0 : i32, i32, i32
  }
  func.func @transform_12(%arg0: i32, %arg1: i32) -> (i32, i32, i32) {
    %c0_i32 = arith.constant 0 : i32
    %c0_i32_0 = arith.constant 0 : i32
    %c0_i32_1 = arith.constant 0 : i32
    return %arg1, %c0_i32, %c0_i32_0 : i32, i32, i32
  }
  func.func @transform_13(%arg0: i32, %arg1: i32) -> (i32, i32, i32) {
    %c0_i32 = arith.constant 0 : i32
    %c0_i32_0 = arith.constant 0 : i32
    %c0_i32_1 = arith.constant 0 : i32
    return %arg1, %c0_i32, %c0_i32_0 : i32, i32, i32
  }
  func.func @transform_14(%arg0: i32, %arg1: i32) -> (i32, i32, i32) {
    %c0_i32 = arith.constant 0 : i32
    %c0_i32_0 = arith.constant 0 : i32
    %c0_i32_1 = arith.constant 0 : i32
    return %arg1, %c0_i32, %c0_i32_0 : i32, i32, i32
  }
  func.func @transform_15(%arg0: i32, %arg1: i32) -> (i32, i32, i32) {
    %c0_i32 = arith.constant 0 : i32
    %c0_i32_0 = arith.constant 0 : i32
    %c0_i32_1 = arith.constant 0 : i32
    return %arg1, %c0_i32, %c0_i32_0 : i32, i32, i32
  }
  func.func @transform_16(%arg0: i32, %arg1: i32) -> (i32, i32, i32) {
    %c0_i32 = arith.constant 0 : i32
    %c0_i32_0 = arith.constant 0 : i32
    %c0_i32_1 = arith.constant 0 : i32
    return %arg1, %c0_i32, %c0_i32_0 : i32, i32, i32
  }
  func.func @transform_17(%arg0: i32, %arg1: i32) -> (i32, i32, i32) {
    %c0_i32 = arith.constant 0 : i32
    %c0_i32_0 = arith.constant 0 : i32
    %c0_i32_1 = arith.constant 0 : i32
    return %arg1, %c0_i32, %c0_i32_0 : i32, i32, i32
  }
  func.func @transform_18(%arg0: i32, %arg1: i32) -> (i32, i32, i32) {
    %c0_i32 = arith.constant 0 : i32
    %c0_i32_0 = arith.constant 0 : i32
    %c0_i32_1 = arith.constant 0 : i32
    return %arg1, %c0_i32, %c0_i32_0 : i32, i32, i32
  }
  func.func @transform_19(%arg0: i32, %arg1: i32) -> (i32, i32, i32) {
    %c0_i32 = arith.constant 0 : i32
    %c0_i32_0 = arith.constant 0 : i32
    %c0_i32_1 = arith.constant 0 : i32
    return %arg1, %c0_i32, %c0_i32_0 : i32, i32, i32
  }
  func.func @transform_20(%arg0: i32, %arg1: i32) -> (i32, i32, i32) {
    %c0_i32 = arith.constant 0 : i32
    %c0_i32_0 = arith.constant 0 : i32
    %c0_i32_1 = arith.constant 0 : i32
    return %arg1, %c0_i32, %c0_i32_0 : i32, i32, i32
  }
  func.func @transform_21(%arg0: i32, %arg1: i32) -> (i32, i32, i32) {
    %c0_i32 = arith.constant 0 : i32
    %c0_i32_0 = arith.constant 0 : i32
    %c0_i32_1 = arith.constant 0 : i32
    return %arg1, %c0_i32, %c0_i32_0 : i32, i32, i32
  }
  func.func @transform_22(%arg0: i32, %arg1: i32) -> (i32, i32, i32) {
    %c0_i32 = arith.constant 0 : i32
    %c0_i32_0 = arith.constant 0 : i32
    %c0_i32_1 = arith.constant 0 : i32
    return %arg0, %c0_i32, %c0_i32_0 : i32, i32, i32
  }
}

</mosaic_0001>

<llo_original>
// kernel: transformer_decoder_pallas.1
$region0: #{transformer_decoder_pallas.1}
  #allocation0 [shape = 'u32[]', space=smem, size = 0x4, offset = 0x4, fixed_abs, tag = 'smem constant byte address 0x4 - core index']
  #allocation1 [shape = 'u32[72,128]{1,0:T(1,128)}', space=vmem, size = 0x9000, scoped, tag = 'internal scratch']
  %s0 = inlined_call_operand.hbm [shape: f32[2,8,32], index: 0, kind: input, shape index: {}]
  %s1 = inlined_call_operand.hbm [shape: f32[2,8,32], index: 1, kind: input, shape index: {}]
  %s2 = inlined_call_operand.vmem [shape: bf16[2,32,96], index: 2, kind: input, shape index: {}]
  %s3 = inlined_call_operand.vmem [shape: f32[2,1,96], index: 3, kind: input, shape index: {}]
  %s4 = inlined_call_operand.vmem [shape: bf16[2,32,32], index: 4, kind: input, shape index: {}]
  %s5 = inlined_call_operand.vmem [shape: f32[2,1,32], index: 5, kind: input, shape index: {}]
  %s6 = inlined_call_operand.vmem [shape: f32[2,1,32], index: 6, kind: input, shape index: {}]
  %s7 = inlined_call_operand.vmem [shape: f32[2,1,32], index: 7, kind: input, shape index: {}]
  %s8 = inlined_call_operand.vmem [shape: bf16[2,32,32], index: 8, kind: input, shape index: {}]
  %s9 = inlined_call_operand.hbm [shape: f32[2,1,32], index: 9, kind: input, shape index: {}]
  %s10 = inlined_call_operand.hbm [shape: bf16[2,32,64], index: 10, kind: input, shape index: {}]
  %s11 = inlined_call_operand.hbm [shape: f32[2,1,64], index: 11, kind: input, shape index: {}]
  %s12 = inlined_call_operand.hbm [shape: bf16[2,32,32], index: 12, kind: input, shape index: {}]
  %s13 = inlined_call_operand.hbm [shape: f32[2,1,32], index: 13, kind: input, shape index: {}]
  %s14 = inlined_call_operand.vmem [shape: f32[2,1,32], index: 14, kind: input, shape index: {}]
  %s15 = inlined_call_operand.hbm [shape: f32[2,1,32], index: 15, kind: input, shape index: {}]
  %s16 = inlined_call_operand.hbm [shape: bf16[2,32,64], index: 16, kind: input, shape index: {}]
  %s17 = inlined_call_operand.hbm [shape: f32[2,1,64], index: 17, kind: input, shape index: {}]
  %s18 = inlined_call_operand.vmem [shape: bf16[2,64,32], index: 18, kind: input, shape index: {}]
  %s19 = inlined_call_operand.hbm [shape: f32[2,1,32], index: 19, kind: input, shape index: {}]
  %s20 = inlined_call_operand.vmem [shape: f32[2,1,32], index: 20, kind: input, shape index: {}]
  %s21 = inlined_call_operand.hbm [shape: f32[2,1,32], index: 21, kind: input, shape index: {}]
  %s22 = inlined_call_operand.hbm [shape: f32[2,8,32], index: 22, kind: output, shape index: {}]
  %s23 = sld [smem:[#allocation0]]
  $region173: #{transformer_decoder_pallas.1} parent=0
    _
  %s25 = ssub.s32 1, %s23
  %s26 = scalar_select 0, %s25, %s23
  $region1: #{transformer_decoder_pallas.1} parent=0
    #allocation2 [shape = 'u8[8192]{0}', space=vmem, size = 0x2000, scoped, tag = 'input window, operand 0']
    #allocation3 [shape = 's32[2]{0}', space=sflag, size = 0x8, scoped, tag = 'scoped memory for transformer_decoder_pallas.1']
    #allocation4 [shape = 's32[2]{0}', space=sflag, size = 0x8, scoped, tag = 'scoped memory for transformer_decoder_pallas.1']
    #allocation5 [shape = 'u8[8192]{0}', space=vmem, size = 0x2000, scoped, tag = 'input window, operand 1']
    #allocation6 [shape = 's32[2]{0}', space=sflag, size = 0x8, scoped, tag = 'scoped memory for transformer_decoder_pallas.1']
    #allocation7 [shape = 'u8[1024]{0}', space=vmem, size = 0x400, scoped, tag = 'input window, operand 9']
    #allocation8 [shape = 'u8[16384]{0}', space=vmem, size = 0x4000, scoped, tag = 'input window, operand 10']
    #allocation9 [shape = 's32[2]{0}', space=sflag, size = 0x8, scoped, tag = 'scoped memory for transformer_decoder_pallas.1']
    #allocation10 [shape = 'u8[1024]{0}', space=vmem, size = 0x400, scoped, tag = 'input window, operand 11']
    #allocation11 [shape = 'u8[16384]{0}', space=vmem, size = 0x4000, scoped, tag = 'input window, operand 12']
    #allocation12 [shape = 's32[2]{0}', space=sflag, size = 0x8, scoped, tag = 'scoped memory for transformer_decoder_pallas.1']
    #allocation13 [shape = 'u8[1024]{0}', space=vmem, size = 0x400, scoped, tag = 'input window, operand 13']
    #allocation14 [shape = 'u8[1024]{0}', space=vmem, size = 0x400, scoped, tag = 'input window, operand 15']
    #allocation15 [shape = 's32[2]{0}', space=sflag, size = 0x8, scoped, tag = 'scoped memory for transformer_decoder_pallas.1']
    #allocation16 [shape = 'u8[16384]{0}', space=vmem, size = 0x4000, scoped, tag = 'input window, operand 16']
    #allocation17 [shape = 'u8[1024]{0}', space=vmem, size = 0x400, scoped, tag = 'input window, operand 17']
    #allocation18 [shape = 's32[2]{0}', space=sflag, size = 0x8, scoped, tag = 'scoped memory for transformer_decoder_pallas.1']
    #allocation19 [shape = 'u8[1024]{0}', space=vmem, size = 0x400, scoped, tag = 'input window, operand 19']
    #allocation20 [shape = 'u8[1024]{0}', space=vmem, size = 0x400, scoped, tag = 'input window, operand 21']
    #allocation21 [shape = 's32[2]{0}', space=sflag, size = 0x8, scoped, tag = 'scoped memory for transformer_decoder_pallas.1']
    #allocation22 [shape = 'u8[8192]{0}', space=vmem, size = 0x2000, scoped, tag = 'output window, operand 0']
    %27 = vsyncpa [#allocation3], 0
    %s28 = scalar_lea.sflag [#allocation3], 1
    %29 = vsyncpa %s28, 0
    %30 = vsyncpa [#allocation6], 0
    %s31 = scalar_lea.sflag [#allocation6], 1
    %32 = vsyncpa %s31, 0
    %33 = vsyncpa [#allocation9], 0
    %s34 = scalar_lea.sflag [#allocation9], 1
    %35 = vsyncpa %s34, 0
    %36 = vsyncpa [#allocation12], 0
    %s37 = scalar_lea.sflag [#allocation12], 1
    %38 = vsyncpa %s37, 0
    %39 = vsyncpa [#allocation15], 0
    %s40 = scalar_lea.sflag [#allocation15], 1
    %41 = vsyncpa %s40, 0
    %42 = vsyncpa [#allocation18], 0
    %s43 = scalar_lea.sflag [#allocation18], 1
    %44 = vsyncpa %s43, 0
    %45 = vsyncpa [#allocation21], 0
    %s46 = scalar_lea.sflag [#allocation21], 1
    %47 = vsyncpa %s46, 0
    %48 = vsyncpa [#allocation4], 0
    %s49 = scalar_lea.sflag [#allocation4], 1
    %50 = vsyncpa %s49, 0
    loop: start=0, step=1, limit=6
    $region2: #{transformer_decoder_pallas.1} parent=1 // loop_pre_header
      _
    $region3: #{transformer_decoder_pallas.1} parent=1 // loop_header
      %s52 = sphi 0, %s56
      %p53 = scmp.ge.s32.totalorder %s52, 6
      %s59 = sphi 0, %s71
      %s60 = sphi 0, %s67
      %s61 = sphi 0, %s59
      %s62 = sphi 0, %s60
      %s63 = sphi 0, %s61
      %s64 = sphi 0, %s62
      %s74 = sphi 0, %s76
      %s77 = sphi 0, %s74
      %s78 = sphi 0, %s77
      %s94 = sphi 0, %s78
      %s100 = sphi 0, %s102
      %s103 = sphi 0, %s100
      %s104 = sphi 0, %s103
      %s120 = sphi 0, %s104
      %s126 = sphi 0, %s128
      %s129 = sphi 0, %s126
      %s130 = sphi 0, %s129
      %s146 = sphi 0, %s130
      %s152 = sphi 0, %s154
      %s155 = sphi 0, %s152
      %s156 = sphi 0, %s155
      %s172 = sphi 0, %s156
      %s178 = sphi 0, %s180
      %s181 = sphi 0, %s178
      %s182 = sphi 0, %s181
      %s198 = sphi 0, %s182
      %s204 = sphi 0, %s206
      %s207 = sphi 0, %s204
      %s208 = sphi 0, %s207
      %s224 = sphi 0, %s208
      %s230 = sphi 0, %s232
      %s233 = sphi 0, %s230
      %s234 = sphi 0, %s233
      %s250 = sphi 0, %s234
      %s256 = sphi 0, %s258
      %s259 = sphi 0, %s256
      %s260 = sphi 0, %s259
      %s276 = sphi 0, %s260
      %s282 = sphi 0, %s284
      %s285 = sphi 0, %s282
      %s286 = sphi 0, %s285
      %s302 = sphi 0, %s286
      %s308 = sphi 0, %s310
      %s311 = sphi 0, %s308
      %s312 = sphi 0, %s311
      %s328 = sphi 0, %s312
      %s334 = sphi 0, %s336
      %s337 = sphi 0, %s334
      %s338 = sphi 0, %s337
      %s354 = sphi 0, %s338
      %s360 = sphi 0, %s362
      %s363 = sphi 0, %s360
      %s364 = sphi 0, %s363
      %s380 = sphi 0, %s364
      %s386 = sphi 0, %s388
      %s389 = sphi 0, %s386
      %s390 = sphi 0, %s389
      %s406 = sphi 0, %s390
      %s412 = sphi 0, %s414
      %s415 = sphi 0, %s412
      %s416 = sphi 0, %s415
      %s432 = sphi 0, %s416
      %s438 = sphi 0, %s440
      %s441 = sphi 0, %s438
      %s442 = sphi 0, %s441
      %s458 = sphi 0, %s442
      %s464 = sphi 0, %s466
      %s467 = sphi 0, %s464
      %s468 = sphi 0, %s467
      %s484 = sphi 0, %s468
      %s490 = sphi 0, %s492
      %s493 = sphi 0, %s490
      %s494 = sphi 0, %s493
      %s510 = sphi 0, %s494
      %s516 = sphi 0, %s518
      %s519 = sphi 0, %s516
      %s520 = sphi 0, %s519
      %s536 = sphi 0, %s520
      %s542 = sphi 0, %s544
      %s545 = sphi 0, %s542
      %s546 = sphi 0, %s545
      %s562 = sphi 0, %s546
      %s568 = sphi 0, %s570
      %s571 = sphi 0, %s568
      %s572 = sphi 0, %s571
      %s588 = sphi 0, %s572
      %s594 = sphi 0, %s596
      %s597 = sphi 0, %s594
      %s598 = sphi 0, %s597
      %s614 = sphi 0, %s598
      %s620 = sphi 0, %s622
      %s623 = sphi 0, %s620
      %s624 = sphi 0, %s623
      %s640 = sphi 0, %s624
      %s646 = sphi 0, %s648
      %s649 = sphi 0, %s646
      %s650 = sphi 0, %s649
      %s666 = sphi 0, %s650
    $region4: #{transformer_decoder_pallas.1} parent=1 // loop_header_branch
      %55 = sbr.rel (%p53) target = $region8
    $region5: #{transformer_decoder_pallas.1} parent=1 // loop_body
      %s57 = ssub.s32 %s52, 1
      %s58 = ssub.s32 %s52, 2
      %s65 = sadd.s32 1, %s60
      %p66 = scmp.ge.s32.totalorder %s65, 2
      %s67 = scalar_select %p66, 0, %s65
      %s68 = sadd.s32 1, %s59
      %s69 = scalar_select %p66, %s68, %s59
      %p70 = scmp.ge.s32.totalorder %s69, 2
      %s71 = scalar_select %p70, 0, %s69
      %s72 = ssub.s32 %s59, %s71
      %p73 = scmp.eq.s32.totalorder %s72, 0
      %s75 = sadd.s32 %s74, 1
      %s76 = scalar_select %p73, %s74, %s75
      %p79 = pneg %p73
      %p80 = scmp.eq.s32.totalorder %s52, 3
      %p81 = por %p79, %p80
      %p82 = scmp.ne.s32.totalorder %s74, %s77
      %p83 = scmp.eq.s32.totalorder %s52, 0
      %p84 = por %p82, %p83
      %p85 = scmp.ne.s32.totalorder %s74, %s77
      %p86 = scmp.eq.s32.totalorder %s57, 3
      %p87 = por %p85, %p86
      %p88 = scmp.ne.s32.totalorder %s77, %s78
      %p89 = scmp.eq.s32.totalorder %s57, 0
      %p90 = por %p88, %p89
      %p91 = scmp.ne.s32.totalorder %s77, %s78
      %p92 = scmp.eq.s32.totalorder %s58, 3
      %p93 = por %p91, %p92
      %p95 = scmp.ne.s32.totalorder %s78, %s94
      %p96 = scmp.eq.s32.totalorder %s58, 0
      %p97 = por %p95, %p96
      %s98 = ssub.s32 %s59, %s71
      %p99 = scmp.eq.s32.totalorder %s98, 0
      %s101 = sadd.s32 %s100, 1
      %s102 = scalar_select %p99, %s100, %s101
      %p105 = pneg %p99
      %p106 = scmp.eq.s32.totalorder %s52, 3
      %p107 = por %p105, %p106
      %p108 = scmp.ne.s32.totalorder %s100, %s103
      %p109 = scmp.eq.s32.totalorder %s52, 0
      %p110 = por %p108, %p109
      %p111 = scmp.ne.s32.totalorder %s100, %s103
      %p112 = scmp.eq.s32.totalorder %s57, 3
      %p113 = por %p111, %p112
      %p114 = scmp.ne.s32.totalorder %s103, %s104
      %p115 = scmp.eq.s32.totalorder %s57, 0
      %p116 = por %p114, %p115
      %p117 = scmp.ne.s32.totalorder %s103, %s104
      %p118 = scmp.eq.s32.totalorder %s58, 3
      %p119 = por %p117, %p118
      %p121 = scmp.ne.s32.totalorder %s104, %s120
      %p122 = scmp.eq.s32.totalorder %s58, 0
      %p123 = por %p121, %p122
      %s124 = ssub.s32 %s60, %s67
      %p125 = scmp.eq.s32.totalorder %s124, 0
      %s127 = sadd.s32 %s126, 1
      %s128 = scalar_select %p125, %s126, %s127
      %p131 = pneg %p125
      %p132 = scmp.eq.s32.totalorder %s52, 3
      %p133 = por %p131, %p132
      %p134 = scmp.ne.s32.totalorder %s126, %s129
      %p135 = scmp.eq.s32.totalorder %s52, 0
      %p136 = por %p134, %p135
      %p137 = scmp.ne.s32.totalorder %s126, %s129
      %p138 = scmp.eq.s32.totalorder %s57, 3
      %p139 = por %p137, %p138
      %p140 = scmp.ne.s32.totalorder %s129, %s130
      %p141 = scmp.eq.s32.totalorder %s57, 0
      %p142 = por %p140, %p141
      %p143 = scmp.ne.s32.totalorder %s129, %s130
      %p144 = scmp.eq.s32.totalorder %s58, 3
      %p145 = por %p143, %p144
      %p147 = scmp.ne.s32.totalorder %s130, %s146
      %p148 = scmp.eq.s32.totalorder %s58, 0
      %p149 = por %p147, %p148
      %s150 = ssub.s32 %s60, %s67
      %p151 = scmp.eq.s32.totalorder %s150, 0
      %s153 = sadd.s32 %s152, 1
      %s154 = scalar_select %p151, %s152, %s153
      %p157 = pneg %p151
      %p158 = scmp.eq.s32.totalorder %s52, 3
      %p159 = por %p157, %p158
      %p160 = scmp.ne.s32.totalorder %s152, %s155
      %p161 = scmp.eq.s32.totalorder %s52, 0
      %p162 = por %p160, %p161
      %p163 = scmp.ne.s32.totalorder %s152, %s155
      %p164 = scmp.eq.s32.totalorder %s57, 3
      %p165 = por %p163, %p164
      %p166 = scmp.ne.s32.totalorder %s155, %s156
      %p167 = scmp.eq.s32.totalorder %s57, 0
      %p168 = por %p166, %p167
      %p169 = scmp.ne.s32.totalorder %s155, %s156
      %p170 = scmp.eq.s32.totalorder %s58, 3
      %p171 = por %p169, %p170
      %p173 = scmp.ne.s32.totalorder %s156, %s172
      %p174 = scmp.eq.s32.totalorder %s58, 0
      %p175 = por %p173, %p174
      %s176 = ssub.s32 %s60, %s67
      %p177 = scmp.eq.s32.totalorder %s176, 0
      %s179 = sadd.s32 %s178, 1
      %s180 = scalar_select %p177, %s178, %s179
      %p183 = pneg %p177
      %p184 = scmp.eq.s32.totalorder %s52, 3
      %p185 = por %p183, %p184
      %p186 = scmp.ne.s32.totalorder %s178, %s181
      %p187 = scmp.eq.s32.totalorder %s52, 0
      %p188 = por %p186, %p187
      %p189 = scmp.ne.s32.totalorder %s178, %s181
      %p190 = scmp.eq.s32.totalorder %s57, 3
      %p191 = por %p189, %p190
      %p192 = scmp.ne.s32.totalorder %s181, %s182
      %p193 = scmp.eq.s32.totalorder %s57, 0
      %p194 = por %p192, %p193
      %p195 = scmp.ne.s32.totalorder %s181, %s182
      %p196 = scmp.eq.s32.totalorder %s58, 3
      %p197 = por %p195, %p196
      %p199 = scmp.ne.s32.totalorder %s182, %s198
      %p200 = scmp.eq.s32.totalorder %s58, 0
      %p201 = por %p199, %p200
      %s202 = ssub.s32 %s60, %s67
      %p203 = scmp.eq.s32.totalorder %s202, 0
      %s205 = sadd.s32 %s204, 1
      %s206 = scalar_select %p203, %s204, %s205
      %p209 = pneg %p203
      %p210 = scmp.eq.s32.totalorder %s52, 3
      %p211 = por %p209, %p210
      %p212 = scmp.ne.s32.totalorder %s204, %s207
      %p213 = scmp.eq.s32.totalorder %s52, 0
      %p214 = por %p212, %p213
      %p215 = scmp.ne.s32.totalorder %s204, %s207
      %p216 = scmp.eq.s32.totalorder %s57, 3
      %p217 = por %p215, %p216
      %p218 = scmp.ne.s32.totalorder %s207, %s208
      %p219 = scmp.eq.s32.totalorder %s57, 0
      %p220 = por %p218, %p219
      %p221 = scmp.ne.s32.totalorder %s207, %s208
      %p222 = scmp.eq.s32.totalorder %s58, 3
      %p223 = por %p221, %p222
      %p225 = scmp.ne.s32.totalorder %s208, %s224
      %p226 = scmp.eq.s32.totalorder %s58, 0
      %p227 = por %p225, %p226
      %s228 = ssub.s32 %s60, %s67
      %p229 = scmp.eq.s32.totalorder %s228, 0
      %s231 = sadd.s32 %s230, 1
      %s232 = scalar_select %p229, %s230, %s231
      %p235 = pneg %p229
      %p236 = scmp.eq.s32.totalorder %s52, 3
      %p237 = por %p235, %p236
      %p238 = scmp.ne.s32.totalorder %s230, %s233
      %p239 = scmp.eq.s32.totalorder %s52, 0
      %p240 = por %p238, %p239
      %p241 = scmp.ne.s32.totalorder %s230, %s233
      %p242 = scmp.eq.s32.totalorder %s57, 3
      %p243 = por %p241, %p242
      %p244 = scmp.ne.s32.totalorder %s233, %s234
      %p245 = scmp.eq.s32.totalorder %s57, 0
      %p246 = por %p244, %p245
      %p247 = scmp.ne.s32.totalorder %s233, %s234
      %p248 = scmp.eq.s32.totalorder %s58, 3
      %p249 = por %p247, %p248
      %p251 = scmp.ne.s32.totalorder %s234, %s250
      %p252 = scmp.eq.s32.totalorder %s58, 0
      %p253 = por %p251, %p252
      %s254 = ssub.s32 %s60, %s67
      %p255 = scmp.eq.s32.totalorder %s254, 0
      %s257 = sadd.s32 %s256, 1
      %s258 = scalar_select %p255, %s256, %s257
      %p261 = pneg %p255
      %p262 = scmp.eq.s32.totalorder %s52, 3
      %p263 = por %p261, %p262
      %p264 = scmp.ne.s32.totalorder %s256, %s259
      %p265 = scmp.eq.s32.totalorder %s52, 0
      %p266 = por %p264, %p265
      %p267 = scmp.ne.s32.totalorder %s256, %s259
      %p268 = scmp.eq.s32.totalorder %s57, 3
      %p269 = por %p267, %p268
      %p270 = scmp.ne.s32.totalorder %s259, %s260
      %p271 = scmp.eq.s32.totalorder %s57, 0
      %p272 = por %p270, %p271
      %p273 = scmp.ne.s32.totalorder %s259, %s260
      %p274 = scmp.eq.s32.totalorder %s58, 3
      %p275 = por %p273, %p274
      %p277 = scmp.ne.s32.totalorder %s260, %s276
      %p278 = scmp.eq.s32.totalorder %s58, 0
      %p279 = por %p277, %p278
      %s280 = ssub.s32 %s60, %s67
      %p281 = scmp.eq.s32.totalorder %s280, 0
      %s283 = sadd.s32 %s282, 1
      %s284 = scalar_select %p281, %s282, %s283
      %p287 = pneg %p281
      %p288 = scmp.eq.s32.totalorder %s52, 3
      %p289 = por %p287, %p288
      %p290 = scmp.ne.s32.totalorder %s282, %s285
      %p291 = scmp.eq.s32.totalorder %s52, 0
      %p292 = por %p290, %p291
      %p293 = scmp.ne.s32.totalorder %s282, %s285
      %p294 = scmp.eq.s32.totalorder %s57, 3
      %p295 = por %p293, %p294
      %p296 = scmp.ne.s32.totalorder %s285, %s286
      %p297 = scmp.eq.s32.totalorder %s57, 0
      %p298 = por %p296, %p297
      %p299 = scmp.ne.s32.totalorder %s285, %s286
      %p300 = scmp.eq.s32.totalorder %s58, 3
      %p301 = por %p299, %p300
      %p303 = scmp.ne.s32.totalorder %s286, %s302
      %p304 = scmp.eq.s32.totalorder %s58, 0
      %p305 = por %p303, %p304
      %s306 = ssub.s32 %s60, %s67
      %p307 = scmp.eq.s32.totalorder %s306, 0
      %s309 = sadd.s32 %s308, 1
      %s310 = scalar_select %p307, %s308, %s309
      %p313 = pneg %p307
      %p314 = scmp.eq.s32.totalorder %s52, 3
      %p315 = por %p313, %p314
      %p316 = scmp.ne.s32.totalorder %s308, %s311
      %p317 = scmp.eq.s32.totalorder %s52, 0
      %p318 = por %p316, %p317
      %p319 = scmp.ne.s32.totalorder %s308, %s311
      %p320 = scmp.eq.s32.totalorder %s57, 3
      %p321 = por %p319, %p320
      %p322 = scmp.ne.s32.totalorder %s311, %s312
      %p323 = scmp.eq.s32.totalorder %s57, 0
      %p324 = por %p322, %p323
      %p325 = scmp.ne.s32.totalorder %s311, %s312
      %p326 = scmp.eq.s32.totalorder %s58, 3
      %p327 = por %p325, %p326
      %p329 = scmp.ne.s32.totalorder %s312, %s328
      %p330 = scmp.eq.s32.totalorder %s58, 0
      %p331 = por %p329, %p330
      %s332 = ssub.s32 %s60, %s67
      %p333 = scmp.eq.s32.totalorder %s332, 0
      %s335 = sadd.s32 %s334, 1
      %s336 = scalar_select %p333, %s334, %s335
      %p339 = pneg %p333
      %p340 = scmp.eq.s32.totalorder %s52, 3
      %p341 = por %p339, %p340
      %p342 = scmp.ne.s32.totalorder %s334, %s337
      %p343 = scmp.eq.s32.totalorder %s52, 0
      %p344 = por %p342, %p343
      %p345 = scmp.ne.s32.totalorder %s334, %s337
      %p346 = scmp.eq.s32.totalorder %s57, 3
      %p347 = por %p345, %p346
      %p348 = scmp.ne.s32.totalorder %s337, %s338
      %p349 = scmp.eq.s32.totalorder %s57, 0
      %p350 = por %p348, %p349
      %p351 = scmp.ne.s32.totalorder %s337, %s338
      %p352 = scmp.eq.s32.totalorder %s58, 3
      %p353 = por %p351, %p352
      %p355 = scmp.ne.s32.totalorder %s338, %s354
      %p356 = scmp.eq.s32.totalorder %s58, 0
      %p357 = por %p355, %p356
      %s358 = ssub.s32 %s60, %s67
      %p359 = scmp.eq.s32.totalorder %s358, 0
      %s361 = sadd.s32 %s360, 1
      %s362 = scalar_select %p359, %s360, %s361
      %p365 = pneg %p359
      %p366 = scmp.eq.s32.totalorder %s52, 3
      %p367 = por %p365, %p366
      %p368 = scmp.ne.s32.totalorder %s360, %s363
      %p369 = scmp.eq.s32.totalorder %s52, 0
      %p370 = por %p368, %p369
      %p371 = scmp.ne.s32.totalorder %s360, %s363
      %p372 = scmp.eq.s32.totalorder %s57, 3
      %p373 = por %p371, %p372
      %p374 = scmp.ne.s32.totalorder %s363, %s364
      %p375 = scmp.eq.s32.totalorder %s57, 0
      %p376 = por %p374, %p375
      %p377 = scmp.ne.s32.totalorder %s363, %s364
      %p378 = scmp.eq.s32.totalorder %s58, 3
      %p379 = por %p377, %p378
      %p381 = scmp.ne.s32.totalorder %s364, %s380
      %p382 = scmp.eq.s32.totalorder %s58, 0
      %p383 = por %p381, %p382
      %s384 = ssub.s32 %s60, %s67
      %p385 = scmp.eq.s32.totalorder %s384, 0
      %s387 = sadd.s32 %s386, 1
      %s388 = scalar_select %p385, %s386, %s387
      %p391 = pneg %p385
      %p392 = scmp.eq.s32.totalorder %s52, 3
      %p393 = por %p391, %p392
      %p394 = scmp.ne.s32.totalorder %s386, %s389
      %p395 = scmp.eq.s32.totalorder %s52, 0
      %p396 = por %p394, %p395
      %p397 = scmp.ne.s32.totalorder %s386, %s389
      %p398 = scmp.eq.s32.totalorder %s57, 3
      %p399 = por %p397, %p398
      %p400 = scmp.ne.s32.totalorder %s389, %s390
      %p401 = scmp.eq.s32.totalorder %s57, 0
      %p402 = por %p400, %p401
      %p403 = scmp.ne.s32.totalorder %s389, %s390
      %p404 = scmp.eq.s32.totalorder %s58, 3
      %p405 = por %p403, %p404
      %p407 = scmp.ne.s32.totalorder %s390, %s406
      %p408 = scmp.eq.s32.totalorder %s58, 0
      %p409 = por %p407, %p408
      %s410 = ssub.s32 %s60, %s67
      %p411 = scmp.eq.s32.totalorder %s410, 0
      %s413 = sadd.s32 %s412, 1
      %s414 = scalar_select %p411, %s412, %s413
      %p417 = pneg %p411
      %p418 = scmp.eq.s32.totalorder %s52, 3
      %p419 = por %p417, %p418
      %p420 = scmp.ne.s32.totalorder %s412, %s415
      %p421 = scmp.eq.s32.totalorder %s52, 0
      %p422 = por %p420, %p421
      %p423 = scmp.ne.s32.totalorder %s412, %s415
      %p424 = scmp.eq.s32.totalorder %s57, 3
      %p425 = por %p423, %p424
      %p426 = scmp.ne.s32.totalorder %s415, %s416
      %p427 = scmp.eq.s32.totalorder %s57, 0
      %p428 = por %p426, %p427
      %p429 = scmp.ne.s32.totalorder %s415, %s416
      %p430 = scmp.eq.s32.totalorder %s58, 3
      %p431 = por %p429, %p430
      %p433 = scmp.ne.s32.totalorder %s416, %s432
      %p434 = scmp.eq.s32.totalorder %s58, 0
      %p435 = por %p433, %p434
      %s436 = ssub.s32 %s60, %s67
      %p437 = scmp.eq.s32.totalorder %s436, 0
      %s439 = sadd.s32 %s438, 1
      %s440 = scalar_select %p437, %s438, %s439
      %p443 = pneg %p437
      %p444 = scmp.eq.s32.totalorder %s52, 3
      %p445 = por %p443, %p444
      %p446 = scmp.ne.s32.totalorder %s438, %s441
      %p447 = scmp.eq.s32.totalorder %s52, 0
      %p448 = por %p446, %p447
      %p449 = scmp.ne.s32.totalorder %s438, %s441
      %p450 = scmp.eq.s32.totalorder %s57, 3
      %p451 = por %p449, %p450
      %p452 = scmp.ne.s32.totalorder %s441, %s442
      %p453 = scmp.eq.s32.totalorder %s57, 0
      %p454 = por %p452, %p453
      %p455 = scmp.ne.s32.totalorder %s441, %s442
      %p456 = scmp.eq.s32.totalorder %s58, 3
      %p457 = por %p455, %p456
      %p459 = scmp.ne.s32.totalorder %s442, %s458
      %p460 = scmp.eq.s32.totalorder %s58, 0
      %p461 = por %p459, %p460
      %s462 = ssub.s32 %s60, %s67
      %p463 = scmp.eq.s32.totalorder %s462, 0
      %s465 = sadd.s32 %s464, 1
      %s466 = scalar_select %p463, %s464, %s465
      %p469 = pneg %p463
      %p470 = scmp.eq.s32.totalorder %s52, 3
      %p471 = por %p469, %p470
      %p472 = scmp.ne.s32.totalorder %s464, %s467
      %p473 = scmp.eq.s32.totalorder %s52, 0
      %p474 = por %p472, %p473
      %p475 = scmp.ne.s32.totalorder %s464, %s467
      %p476 = scmp.eq.s32.totalorder %s57, 3
      %p477 = por %p475, %p476
      %p478 = scmp.ne.s32.totalorder %s467, %s468
      %p479 = scmp.eq.s32.totalorder %s57, 0
      %p480 = por %p478, %p479
      %p481 = scmp.ne.s32.totalorder %s467, %s468
      %p482 = scmp.eq.s32.totalorder %s58, 3
      %p483 = por %p481, %p482
      %p485 = scmp.ne.s32.totalorder %s468, %s484
      %p486 = scmp.eq.s32.totalorder %s58, 0
      %p487 = por %p485, %p486
      %s488 = ssub.s32 %s60, %s67
      %p489 = scmp.eq.s32.totalorder %s488, 0
      %s491 = sadd.s32 %s490, 1
      %s492 = scalar_select %p489, %s490, %s491
      %p495 = pneg %p489
      %p496 = scmp.eq.s32.totalorder %s52, 3
      %p497 = por %p495, %p496
      %p498 = scmp.ne.s32.totalorder %s490, %s493
      %p499 = scmp.eq.s32.totalorder %s52, 0
      %p500 = por %p498, %p499
      %p501 = scmp.ne.s32.totalorder %s490, %s493
      %p502 = scmp.eq.s32.totalorder %s57, 3
      %p503 = por %p501, %p502
      %p504 = scmp.ne.s32.totalorder %s493, %s494
      %p505 = scmp.eq.s32.totalorder %s57, 0
      %p506 = por %p504, %p505
      %p507 = scmp.ne.s32.totalorder %s493, %s494
      %p508 = scmp.eq.s32.totalorder %s58, 3
      %p509 = por %p507, %p508
      %p511 = scmp.ne.s32.totalorder %s494, %s510
      %p512 = scmp.eq.s32.totalorder %s58, 0
      %p513 = por %p511, %p512
      %s514 = ssub.s32 %s60, %s67
      %p515 = scmp.eq.s32.totalorder %s514, 0
      %s517 = sadd.s32 %s516, 1
      %s518 = scalar_select %p515, %s516, %s517
      %p521 = pneg %p515
      %p522 = scmp.eq.s32.totalorder %s52, 3
      %p523 = por %p521, %p522
      %p524 = scmp.ne.s32.totalorder %s516, %s519
      %p525 = scmp.eq.s32.totalorder %s52, 0
      %p526 = por %p524, %p525
      %p527 = scmp.ne.s32.totalorder %s516, %s519
      %p528 = scmp.eq.s32.totalorder %s57, 3
      %p529 = por %p527, %p528
      %p530 = scmp.ne.s32.totalorder %s519, %s520
      %p531 = scmp.eq.s32.totalorder %s57, 0
      %p532 = por %p530, %p531
      %p533 = scmp.ne.s32.totalorder %s519, %s520
      %p534 = scmp.eq.s32.totalorder %s58, 3
      %p535 = por %p533, %p534
      %p537 = scmp.ne.s32.totalorder %s520, %s536
      %p538 = scmp.eq.s32.totalorder %s58, 0
      %p539 = por %p537, %p538
      %s540 = ssub.s32 %s60, %s67
      %p541 = scmp.eq.s32.totalorder %s540, 0
      %s543 = sadd.s32 %s542, 1
      %s544 = scalar_select %p541, %s542, %s543
      %p547 = pneg %p541
      %p548 = scmp.eq.s32.totalorder %s52, 3
      %p549 = por %p547, %p548
      %p550 = scmp.ne.s32.totalorder %s542, %s545
      %p551 = scmp.eq.s32.totalorder %s52, 0
      %p552 = por %p550, %p551
      %p553 = scmp.ne.s32.totalorder %s542, %s545
      %p554 = scmp.eq.s32.totalorder %s57, 3
      %p555 = por %p553, %p554
      %p556 = scmp.ne.s32.totalorder %s545, %s546
      %p557 = scmp.eq.s32.totalorder %s57, 0
      %p558 = por %p556, %p557
      %p559 = scmp.ne.s32.totalorder %s545, %s546
      %p560 = scmp.eq.s32.totalorder %s58, 3
      %p561 = por %p559, %p560
      %p563 = scmp.ne.s32.totalorder %s546, %s562
      %p564 = scmp.eq.s32.totalorder %s58, 0
      %p565 = por %p563, %p564
      %s566 = ssub.s32 %s60, %s67
      %p567 = scmp.eq.s32.totalorder %s566, 0
      %s569 = sadd.s32 %s568, 1
      %s570 = scalar_select %p567, %s568, %s569
      %p573 = pneg %p567
      %p574 = scmp.eq.s32.totalorder %s52, 3
      %p575 = por %p573, %p574
      %p576 = scmp.ne.s32.totalorder %s568, %s571
      %p577 = scmp.eq.s32.totalorder %s52, 0
      %p578 = por %p576, %p577
      %p579 = scmp.ne.s32.totalorder %s568, %s571
      %p580 = scmp.eq.s32.totalorder %s57, 3
      %p581 = por %p579, %p580
      %p582 = scmp.ne.s32.totalorder %s571, %s572
      %p583 = scmp.eq.s32.totalorder %s57, 0
      %p584 = por %p582, %p583
      %p585 = scmp.ne.s32.totalorder %s571, %s572
      %p586 = scmp.eq.s32.totalorder %s58, 3
      %p587 = por %p585, %p586
      %p589 = scmp.ne.s32.totalorder %s572, %s588
      %p590 = scmp.eq.s32.totalorder %s58, 0
      %p591 = por %p589, %p590
      %s592 = ssub.s32 %s60, %s67
      %p593 = scmp.eq.s32.totalorder %s592, 0
      %s595 = sadd.s32 %s594, 1
      %s596 = scalar_select %p593, %s594, %s595
      %p599 = pneg %p593
      %p600 = scmp.eq.s32.totalorder %s52, 3
      %p601 = por %p599, %p600
      %p602 = scmp.ne.s32.totalorder %s594, %s597
      %p603 = scmp.eq.s32.totalorder %s52, 0
      %p604 = por %p602, %p603
      %p605 = scmp.ne.s32.totalorder %s594, %s597
      %p606 = scmp.eq.s32.totalorder %s57, 3
      %p607 = por %p605, %p606
      %p608 = scmp.ne.s32.totalorder %s597, %s598
      %p609 = scmp.eq.s32.totalorder %s57, 0
      %p610 = por %p608, %p609
      %p611 = scmp.ne.s32.totalorder %s597, %s598
      %p612 = scmp.eq.s32.totalorder %s58, 3
      %p613 = por %p611, %p612
      %p615 = scmp.ne.s32.totalorder %s598, %s614
      %p616 = scmp.eq.s32.totalorder %s58, 0
      %p617 = por %p615, %p616
      %s618 = ssub.s32 %s60, %s67
      %p619 = scmp.eq.s32.totalorder %s618, 0
      %s621 = sadd.s32 %s620, 1
      %s622 = scalar_select %p619, %s620, %s621
      %p625 = pneg %p619
      %p626 = scmp.eq.s32.totalorder %s52, 3
      %p627 = por %p625, %p626
      %p628 = scmp.ne.s32.totalorder %s620, %s623
      %p629 = scmp.eq.s32.totalorder %s52, 0
      %p630 = por %p628, %p629
      %p631 = scmp.ne.s32.totalorder %s620, %s623
      %p632 = scmp.eq.s32.totalorder %s57, 3
      %p633 = por %p631, %p632
      %p634 = scmp.ne.s32.totalorder %s623, %s624
      %p635 = scmp.eq.s32.totalorder %s57, 0
      %p636 = por %p634, %p635
      %p637 = scmp.ne.s32.totalorder %s623, %s624
      %p638 = scmp.eq.s32.totalorder %s58, 3
      %p639 = por %p637, %p638
      %p641 = scmp.ne.s32.totalorder %s624, %s640
      %p642 = scmp.eq.s32.totalorder %s58, 0
      %p643 = por %p641, %p642
      %s644 = ssub.s32 %s59, %s71
      %p645 = scmp.eq.s32.totalorder %s644, 0
      %s647 = sadd.s32 %s646, 1
      %s648 = scalar_select %p645, %s646, %s647
      %p651 = pneg %p645
      %p652 = scmp.eq.s32.totalorder %s52, 3
      %p653 = por %p651, %p652
      %p654 = scmp.ne.s32.totalorder %s646, %s649
      %p655 = scmp.eq.s32.totalorder %s52, 0
      %p656 = por %p654, %p655
      %p657 = scmp.ne.s32.totalorder %s646, %s649
      %p658 = scmp.eq.s32.totalorder %s57, 3
      %p659 = por %p657, %p658
      %p660 = scmp.ne.s32.totalorder %s649, %s650
      %p661 = scmp.eq.s32.totalorder %s57, 0
      %p662 = por %p660, %p661
      %p663 = scmp.ne.s32.totalorder %s649, %s650
      %p664 = scmp.eq.s32.totalorder %s58, 3
      %p665 = por %p663, %p664
      %p667 = scmp.ne.s32.totalorder %s650, %s666
      %p668 = scmp.eq.s32.totalorder %s58, 0
      %p669 = por %p667, %p668
      %p670 = scmp.le.s32.totalorder 1, %s52
      %p671 = scmp.lt.s32.totalorder %s52, 5
      %p672 = pnand %p670, %p671
      %p673 = pneg %p672
      // Predicated region
      $region9: #{transformer_decoder_pallas.1} parent=5 // pred_check
        _
      $region10: #{transformer_decoder_pallas.1} parent=5 // pred_check_branch
        %675 = sbr.rel (%p672) target = $region12
      $region11: #{transformer_decoder_pallas.1} parent=5 // pred_region
        %s676 = ssub.s32 %s52, 1
      $region12: #{transformer_decoder_pallas.1} parent=5 // pred_fallthru
        _
      %p677 = scmp.lt.s32.totalorder %s52, 4
      // Predicated region
      $region13: #{transformer_decoder_pallas.1} parent=5 // pred_check
        %p678 = pneg %p677
      $region14: #{transformer_decoder_pallas.1} parent=5 // pred_check_branch
        %680 = sbr.rel (%p678) target = $region16
      $region15: #{transformer_decoder_pallas.1} parent=5 // pred_region
        // Predicated region
        $region17: #{transformer_decoder_pallas.1} parent=15 // pred_check
          %p681 = pneg %p84
        $region18: #{transformer_decoder_pallas.1} parent=15 // pred_check_branch
          %683 = sbr.rel (%p681) target = $region20
        $region19: #{transformer_decoder_pallas.1} parent=15 // pred_region
          %s684 = sand.u32 %s74, 1
          %s685 = scalar_lea.sflag [#allocation3], %s684
          %s686 = sand.u32 %s74, 1
          %s687 = smul.addr %s686, 8
          %s688 = scalar_lea.vmem [#allocation2], %s687
          %690 = vsyncadd %s685, 0
          %s691 = smul.addr %s59, 8
          %s692 = scalar_lea.hbm %s0, %s691
          %s694 = sshll.u32 %s692, 4
          %s695 = int_to_ptr.hbm [resolvable:$true] %s694
          %s696 = sshll.u32 %s688, 4
          %s697 = int_to_ptr.vmem [resolvable:$true] %s696
          %699 = dma.hbm_to_vmem [thread:$0]  %s695, 128, %s697, %s685
        $region20: #{transformer_decoder_pallas.1} parent=15 // pred_fallthru
          _
        // Predicated region
        $region21: #{transformer_decoder_pallas.1} parent=15 // pred_check
          %p700 = pneg %p110
        $region22: #{transformer_decoder_pallas.1} parent=15 // pred_check_branch
          %702 = sbr.rel (%p700) target = $region24
        $region23: #{transformer_decoder_pallas.1} parent=15 // pred_region
          %s703 = sand.u32 %s52, 1
          %s704 = scalar_lea.sflag [#allocation6], %s703
          %s705 = sand.u32 %s100, 1
          %s706 = smul.addr %s705, 8
          %s707 = scalar_lea.vmem [#allocation5], %s706
          %709 = vsyncadd %s704, 0
          %s710 = smul.addr %s59, 8
          %s711 = scalar_lea.hbm %s1, %s710
          %s713 = sshll.u32 %s711, 4
          %s714 = int_to_ptr.hbm [resolvable:$true] %s713
          %s715 = sshll.u32 %s707, 4
          %s716 = int_to_ptr.vmem [resolvable:$true] %s715
          %718 = dma.hbm_to_vmem [thread:$0]  %s714, 128, %s716, %s704
        $region24: #{transformer_decoder_pallas.1} parent=15 // pred_fallthru
          _
        // Predicated region
        $region25: #{transformer_decoder_pallas.1} parent=15 // pred_check
          %p719 = pneg %p136
        $region26: #{transformer_decoder_pallas.1} parent=15 // pred_check_branch
          %721 = sbr.rel (%p719) target = $region28
        $region27: #{transformer_decoder_pallas.1} parent=15 // pred_region
          %p722 = scmp.lt.s32.totalorder %s60, 1
          %s723 = scalar_select %p722, %s60, 1
          %s724 = smul.addr %s723, 4
          %s725 = smul.addr %s724, 4
          %s726 = scalar_lea.vmem %s2, %s725
        $region28: #{transformer_decoder_pallas.1} parent=15 // pred_fallthru
          _
        // Predicated region
        $region29: #{transformer_decoder_pallas.1} parent=15 // pred_check
          %p727 = pneg %p162
        $region30: #{transformer_decoder_pallas.1} parent=15 // pred_check_branch
          %729 = sbr.rel (%p727) target = $region32
        $region31: #{transformer_decoder_pallas.1} parent=15 // pred_region
          %p730 = scmp.lt.s32.totalorder %s60, 1
          %s731 = scalar_select %p730, %s60, 1
          %s732 = scalar_lea.vmem %s3, %s731
        $region32: #{transformer_decoder_pallas.1} parent=15 // pred_fallthru
          _
        // Predicated region
        $region33: #{transformer_decoder_pallas.1} parent=15 // pred_check
          %p733 = pneg %p188
        $region34: #{transformer_decoder_pallas.1} parent=15 // pred_check_branch
          %735 = sbr.rel (%p733) target = $region36
        $region35: #{transformer_decoder_pallas.1} parent=15 // pred_region
          %p736 = scmp.lt.s32.totalorder %s60, 1
          %s737 = scalar_select %p736, %s60, 1
          %s738 = smul.addr %s737, 4
          %s739 = smul.addr %s738, 4
          %s740 = scalar_lea.vmem %s4, %s739
        $region36: #{transformer_decoder_pallas.1} parent=15 // pred_fallthru
          _
        // Predicated region
        $region37: #{transformer_decoder_pallas.1} parent=15 // pred_check
          %p741 = pneg %p214
        $region38: #{transformer_decoder_pallas.1} parent=15 // pred_check_branch
          %743 = sbr.rel (%p741) target = $region40
        $region39: #{transformer_decoder_pallas.1} parent=15 // pred_region
          %p744 = scmp.lt.s32.totalorder %s60, 1
          %s745 = scalar_select %p744, %s60, 1
          %s746 = scalar_lea.vmem %s5, %s745
        $region40: #{transformer_decoder_pallas.1} parent=15 // pred_fallthru
          _
        // Predicated region
        $region41: #{transformer_decoder_pallas.1} parent=15 // pred_check
          %p747 = pneg %p240
        $region42: #{transformer_decoder_pallas.1} parent=15 // pred_check_branch
          %749 = sbr.rel (%p747) target = $region44
        $region43: #{transformer_decoder_pallas.1} parent=15 // pred_region
          %p750 = scmp.lt.s32.totalorder %s60, 1
          %s751 = scalar_select %p750, %s60, 1
          %s752 = scalar_lea.vmem %s6, %s751
        $region44: #{transformer_decoder_pallas.1} parent=15 // pred_fallthru
          _
        // Predicated region
        $region45: #{transformer_decoder_pallas.1} parent=15 // pred_check
          %p753 = pneg %p266
        $region46: #{transformer_decoder_pallas.1} parent=15 // pred_check_branch
          %755 = sbr.rel (%p753) target = $region48
        $region47: #{transformer_decoder_pallas.1} parent=15 // pred_region
          %p756 = scmp.lt.s32.totalorder %s60, 1
          %s757 = scalar_select %p756, %s60, 1
          %s758 = scalar_lea.vmem %s7, %s757
        $region48: #{transformer_decoder_pallas.1} parent=15 // pred_fallthru
          _
        // Predicated region
        $region49: #{transformer_decoder_pallas.1} parent=15 // pred_check
          %p759 = pneg %p292
        $region50: #{transformer_decoder_pallas.1} parent=15 // pred_check_branch
          %761 = sbr.rel (%p759) target = $region52
        $region51: #{transformer_decoder_pallas.1} parent=15 // pred_region
          %p762 = scmp.lt.s32.totalorder %s60, 1
          %s763 = scalar_select %p762, %s60, 1
          %s764 = smul.addr %s763, 4
          %s765 = smul.addr %s764, 4
          %s766 = scalar_lea.vmem %s8, %s765
        $region52: #{transformer_decoder_pallas.1} parent=15 // pred_fallthru
          _
        // Predicated region
        $region53: #{transformer_decoder_pallas.1} parent=15 // pred_check
          %p767 = pneg %p318
        $region54: #{transformer_decoder_pallas.1} parent=15 // pred_check_branch
          %769 = sbr.rel (%p767) target = $region56
        $region55: #{transformer_decoder_pallas.1} parent=15 // pred_region
          %s770 = sand.u32 %s52, 1
          %s771 = scalar_lea.sflag [#allocation6], %s770
          %s772 = sand.u32 %s308, 1
          %s773 = scalar_lea.vmem [#allocation7], %s772
          %775 = vsyncadd %s771, 0
          %s776 = scalar_lea.hbm %s9, %s60
          %s778 = sshll.u32 %s776, 4
          %s779 = int_to_ptr.hbm [resolvable:$true] %s778
          %s780 = sshll.u32 %s773, 4
          %s781 = int_to_ptr.vmem [resolvable:$true] %s780
          %783 = dma.hbm_to_vmem [thread:$0]  %s779, 16, %s781, %s771
        $region56: #{transformer_decoder_pallas.1} parent=15 // pred_fallthru
          _
        // Predicated region
        $region57: #{transformer_decoder_pallas.1} parent=15 // pred_check
          %p784 = pneg %p344
        $region58: #{transformer_decoder_pallas.1} parent=15 // pred_check_branch
          %786 = sbr.rel (%p784) target = $region60
        $region59: #{transformer_decoder_pallas.1} parent=15 // pred_region
          %s787 = sand.u32 %s52, 1
          %s788 = scalar_lea.sflag [#allocation9], %s787
          %s789 = sand.u32 %s334, 1
          %s790 = smul.addr %s789, 16
          %s791 = scalar_lea.vmem [#allocation8], %s790
          %793 = vsyncadd %s788, 0
          %s794 = smul.addr %s60, 4
          %s795 = smul.addr %s794, 4
          %s796 = scalar_lea.hbm %s10, %s795
          %s797 = sshll.u32 %s796, 4
          %s798 = int_to_ptr.hbm [resolvable:$true] %s797
          %s799 = sshll.u32 %s791, 4
          %s800 = int_to_ptr.vmem [resolvable:$true] %s799
          %805 = dma.hbm_to_vmem [thread:$0]  %s798, 256, %s800, %s788, 64, 64, 4
        $region60: #{transformer_decoder_pallas.1} parent=15 // pred_fallthru
          _
        // Predicated region
        $region61: #{transformer_decoder_pallas.1} parent=15 // pred_check
          %p806 = pneg %p370
        $region62: #{transformer_decoder_pallas.1} parent=15 // pred_check_branch
          %808 = sbr.rel (%p806) target = $region64
        $region63: #{transformer_decoder_pallas.1} parent=15 // pred_region
          %s809 = sand.u32 %s52, 1
          %s810 = scalar_lea.sflag [#allocation9], %s809
          %s811 = sand.u32 %s360, 1
          %s812 = scalar_lea.vmem [#allocation10], %s811
          %814 = vsyncadd %s810, 0
          %s815 = scalar_lea.hbm %s11, %s60
          %s817 = sshll.u32 %s815, 4
          %s818 = int_to_ptr.hbm [resolvable:$true] %s817
          %s819 = sshll.u32 %s812, 4
          %s820 = int_to_ptr.vmem [resolvable:$true] %s819
          %822 = dma.hbm_to_vmem [thread:$0]  %s818, 16, %s820, %s810
        $region64: #{transformer_decoder_pallas.1} parent=15 // pred_fallthru
          _
        // Predicated region
        $region65: #{transformer_decoder_pallas.1} parent=15 // pred_check
          %p823 = pneg %p396
        $region66: #{transformer_decoder_pallas.1} parent=15 // pred_check_branch
          %825 = sbr.rel (%p823) target = $region68
        $region67: #{transformer_decoder_pallas.1} parent=15 // pred_region
          %s826 = sand.u32 %s52, 1
          %s827 = scalar_lea.sflag [#allocation12], %s826
          %s828 = sand.u32 %s386, 1
          %s829 = smul.addr %s828, 16
          %s830 = scalar_lea.vmem [#allocation11], %s829
          %832 = vsyncadd %s827, 0
          %s833 = smul.addr %s60, 4
          %s834 = smul.addr %s833, 4
          %s835 = scalar_lea.hbm %s12, %s834
          %s836 = sshll.u32 %s835, 4
          %s837 = int_to_ptr.hbm [resolvable:$true] %s836
          %s838 = sshll.u32 %s830, 4
          %s839 = int_to_ptr.vmem [resolvable:$true] %s838
          %844 = dma.hbm_to_vmem [thread:$0]  %s837, 256, %s839, %s827, 64, 64, 4
        $region68: #{transformer_decoder_pallas.1} parent=15 // pred_fallthru
          _
        // Predicated region
        $region69: #{transformer_decoder_pallas.1} parent=15 // pred_check
          %p845 = pneg %p422
        $region70: #{transformer_decoder_pallas.1} parent=15 // pred_check_branch
          %847 = sbr.rel (%p845) target = $region72
        $region71: #{transformer_decoder_pallas.1} parent=15 // pred_region
          %s848 = sand.u32 %s52, 1
          %s849 = scalar_lea.sflag [#allocation12], %s848
          %s850 = sand.u32 %s412, 1
          %s851 = scalar_lea.vmem [#allocation13], %s850
          %853 = vsyncadd %s849, 0
          %s854 = scalar_lea.hbm %s13, %s60
          %s856 = sshll.u32 %s854, 4
          %s857 = int_to_ptr.hbm [resolvable:$true] %s856
          %s858 = sshll.u32 %s851, 4
          %s859 = int_to_ptr.vmem [resolvable:$true] %s858
          %861 = dma.hbm_to_vmem [thread:$0]  %s857, 16, %s859, %s849
        $region72: #{transformer_decoder_pallas.1} parent=15 // pred_fallthru
          _
        // Predicated region
        $region73: #{transformer_decoder_pallas.1} parent=15 // pred_check
          %p862 = pneg %p448
        $region74: #{transformer_decoder_pallas.1} parent=15 // pred_check_branch
          %864 = sbr.rel (%p862) target = $region76
        $region75: #{transformer_decoder_pallas.1} parent=15 // pred_region
          %p865 = scmp.lt.s32.totalorder %s60, 1
          %s866 = scalar_select %p865, %s60, 1
          %s867 = scalar_lea.vmem %s14, %s866
        $region76: #{transformer_decoder_pallas.1} parent=15 // pred_fallthru
          _
        // Predicated region
        $region77: #{transformer_decoder_pallas.1} parent=15 // pred_check
          %p868 = pneg %p474
        $region78: #{transformer_decoder_pallas.1} parent=15 // pred_check_branch
          %870 = sbr.rel (%p868) target = $region80
        $region79: #{transformer_decoder_pallas.1} parent=15 // pred_region
          %s871 = sand.u32 %s52, 1
          %s872 = scalar_lea.sflag [#allocation15], %s871
          %s873 = sand.u32 %s464, 1
          %s874 = scalar_lea.vmem [#allocation14], %s873
          %876 = vsyncadd %s872, 0
          %s877 = scalar_lea.hbm %s15, %s60
          %s879 = sshll.u32 %s877, 4
          %s880 = int_to_ptr.hbm [resolvable:$true] %s879
          %s881 = sshll.u32 %s874, 4
          %s882 = int_to_ptr.vmem [resolvable:$true] %s881
          %884 = dma.hbm_to_vmem [thread:$0]  %s880, 16, %s882, %s872
        $region80: #{transformer_decoder_pallas.1} parent=15 // pred_fallthru
          _
        // Predicated region
        $region81: #{transformer_decoder_pallas.1} parent=15 // pred_check
          %p885 = pneg %p500
        $region82: #{transformer_decoder_pallas.1} parent=15 // pred_check_branch
          %887 = sbr.rel (%p885) target = $region84
        $region83: #{transformer_decoder_pallas.1} parent=15 // pred_region
          %s888 = sand.u32 %s52, 1
          %s889 = scalar_lea.sflag [#allocation15], %s888
          %s890 = sand.u32 %s490, 1
          %s891 = smul.addr %s890, 16
          %s892 = scalar_lea.vmem [#allocation16], %s891
          %894 = vsyncadd %s889, 0
          %s895 = smul.addr %s60, 4
          %s896 = smul.addr %s895, 4
          %s897 = scalar_lea.hbm %s16, %s896
          %s898 = sshll.u32 %s897, 4
          %s899 = int_to_ptr.hbm [resolvable:$true] %s898
          %s900 = sshll.u32 %s892, 4
          %s901 = int_to_ptr.vmem [resolvable:$true] %s900
          %906 = dma.hbm_to_vmem [thread:$0]  %s899, 256, %s901, %s889, 64, 64, 4
        $region84: #{transformer_decoder_pallas.1} parent=15 // pred_fallthru
          _
        // Predicated region
        $region85: #{transformer_decoder_pallas.1} parent=15 // pred_check
          %p907 = pneg %p526
        $region86: #{transformer_decoder_pallas.1} parent=15 // pred_check_branch
          %909 = sbr.rel (%p907) target = $region88
        $region87: #{transformer_decoder_pallas.1} parent=15 // pred_region
          %s910 = sand.u32 %s52, 1
          %s911 = scalar_lea.sflag [#allocation18], %s910
          %s912 = sand.u32 %s516, 1
          %s913 = scalar_lea.vmem [#allocation17], %s912
          %915 = vsyncadd %s911, 0
          %s916 = scalar_lea.hbm %s17, %s60
          %s918 = sshll.u32 %s916, 4
          %s919 = int_to_ptr.hbm [resolvable:$true] %s918
          %s920 = sshll.u32 %s913, 4
          %s921 = int_to_ptr.vmem [resolvable:$true] %s920
          %923 = dma.hbm_to_vmem [thread:$0]  %s919, 16, %s921, %s911
        $region88: #{transformer_decoder_pallas.1} parent=15 // pred_fallthru
          _
        // Predicated region
        $region89: #{transformer_decoder_pallas.1} parent=15 // pred_check
          %p924 = pneg %p552
        $region90: #{transformer_decoder_pallas.1} parent=15 // pred_check_branch
          %926 = sbr.rel (%p924) target = $region92
        $region91: #{transformer_decoder_pallas.1} parent=15 // pred_region
          %p927 = scmp.lt.s32.totalorder %s60, 1
          %s928 = scalar_select %p927, %s60, 1
          %s929 = smul.addr %s928, 8
          %s930 = smul.addr %s929, 4
          %s931 = scalar_lea.vmem %s18, %s930
        $region92: #{transformer_decoder_pallas.1} parent=15 // pred_fallthru
          _
        // Predicated region
        $region93: #{transformer_decoder_pallas.1} parent=15 // pred_check
          %p932 = pneg %p578
        $region94: #{transformer_decoder_pallas.1} parent=15 // pred_check_branch
          %934 = sbr.rel (%p932) target = $region96
        $region95: #{transformer_decoder_pallas.1} parent=15 // pred_region
          %s935 = sand.u32 %s52, 1
          %s936 = scalar_lea.sflag [#allocation18], %s935
          %s937 = sand.u32 %s568, 1
          %s938 = scalar_lea.vmem [#allocation19], %s937
          %940 = vsyncadd %s936, 0
          %s941 = scalar_lea.hbm %s19, %s60
          %s943 = sshll.u32 %s941, 4
          %s944 = int_to_ptr.hbm [resolvable:$true] %s943
          %s945 = sshll.u32 %s938, 4
          %s946 = int_to_ptr.vmem [resolvable:$true] %s945
          %948 = dma.hbm_to_vmem [thread:$0]  %s944, 16, %s946, %s936
        $region96: #{transformer_decoder_pallas.1} parent=15 // pred_fallthru
          _
        // Predicated region
        $region97: #{transformer_decoder_pallas.1} parent=15 // pred_check
          %p949 = pneg %p604
        $region98: #{transformer_decoder_pallas.1} parent=15 // pred_check_branch
          %951 = sbr.rel (%p949) target = $region100
        $region99: #{transformer_decoder_pallas.1} parent=15 // pred_region
          %p952 = scmp.lt.s32.totalorder %s60, 1
          %s953 = scalar_select %p952, %s60, 1
          %s954 = scalar_lea.vmem %s20, %s953
        $region100: #{transformer_decoder_pallas.1} parent=15 // pred_fallthru
          _
        // Predicated region
        $region101: #{transformer_decoder_pallas.1} parent=15 // pred_check
          %p955 = pneg %p630
        $region102: #{transformer_decoder_pallas.1} parent=15 // pred_check_branch
          %957 = sbr.rel (%p955) target = $region104
        $region103: #{transformer_decoder_pallas.1} parent=15 // pred_region
          %s958 = sand.u32 %s620, 1
          %s959 = scalar_lea.sflag [#allocation21], %s958
          %s960 = sand.u32 %s620, 1
          %s961 = scalar_lea.vmem [#allocation20], %s960
          %963 = vsyncadd %s959, 0
          %s964 = scalar_lea.hbm %s21, %s60
          %s966 = sshll.u32 %s964, 4
          %s967 = int_to_ptr.hbm [resolvable:$true] %s966
          %s968 = sshll.u32 %s961, 4
          %s969 = int_to_ptr.vmem [resolvable:$true] %s968
          %971 = dma.hbm_to_vmem [thread:$0]  %s967, 16, %s969, %s959
        $region104: #{transformer_decoder_pallas.1} parent=15 // pred_fallthru
          _
      $region16: #{transformer_decoder_pallas.1} parent=5 // pred_fallthru
        _
      %p972 = scmp.le.s32.totalorder 1, %s52
      %p973 = scmp.lt.s32.totalorder %s52, 5
      %p974 = pnand %p972, %p973
      %p975 = pneg %p974
      // Predicated region
      $region105: #{transformer_decoder_pallas.1} parent=5 // pred_check
        _
      $region106: #{transformer_decoder_pallas.1} parent=5 // pred_check_branch
        %977 = sbr.rel (%p974) target = $region108
      $region107: #{transformer_decoder_pallas.1} parent=5 // pred_region
        %s978 = ssub.s32 %s52, 1
        %s979 = sand.u32 %s77, 1
        %s980 = scalar_lea.sflag [#allocation3], %s979
        %s981 = sand.u32 %s77, 1
        %s982 = smul.addr %s981, 8
        %s983 = scalar_lea.vmem [#allocation2], %s982
        // Predicated region
        $region109: #{transformer_decoder_pallas.1} parent=107 // pred_check
          %p984 = pneg %p90
        $region110: #{transformer_decoder_pallas.1} parent=107 // pred_check_branch
          %986 = sbr.rel (%p984) target = $region112
        $region111: #{transformer_decoder_pallas.1} parent=107 // pred_region
          %988 = dma.done %s980, 128
        $region112: #{transformer_decoder_pallas.1} parent=107 // pred_fallthru
          _
        %s989 = sand.u32 %s57, 1
        %s990 = scalar_lea.sflag [#allocation6], %s989
        %s991 = sand.u32 %s103, 1
        %s992 = smul.addr %s991, 8
        %s993 = scalar_lea.vmem [#allocation5], %s992
        // Predicated region
        $region113: #{transformer_decoder_pallas.1} parent=107 // pred_check
          %p994 = pneg %p116
        $region114: #{transformer_decoder_pallas.1} parent=107 // pred_check_branch
          %996 = sbr.rel (%p994) target = $region116
        $region115: #{transformer_decoder_pallas.1} parent=107 // pred_region
          %998 = dma.done %s990, 128
        $region116: #{transformer_decoder_pallas.1} parent=107 // pred_fallthru
          _
        %s999 = sand.u32 %s57, 1
        %s1000 = scalar_lea.sflag [#allocation6], %s999
        %s1001 = sand.u32 %s311, 1
        %s1002 = scalar_lea.vmem [#allocation7], %s1001
        // Predicated region
        $region117: #{transformer_decoder_pallas.1} parent=107 // pred_check
          %p1003 = pneg %p324
        $region118: #{transformer_decoder_pallas.1} parent=107 // pred_check_branch
          %1005 = sbr.rel (%p1003) target = $region120
        $region119: #{transformer_decoder_pallas.1} parent=107 // pred_region
          %1007 = dma.done %s1000, 16
        $region120: #{transformer_decoder_pallas.1} parent=107 // pred_fallthru
          _
        %s1008 = sand.u32 %s57, 1
        %s1009 = scalar_lea.sflag [#allocation9], %s1008
        %s1010 = sand.u32 %s337, 1
        %s1011 = smul.addr %s1010, 16
        %s1012 = scalar_lea.vmem [#allocation8], %s1011
        // Predicated region
        $region121: #{transformer_decoder_pallas.1} parent=107 // pred_check
          %p1013 = pneg %p350
        $region122: #{transformer_decoder_pallas.1} parent=107 // pred_check_branch
          %1015 = sbr.rel (%p1013) target = $region124
        $region123: #{transformer_decoder_pallas.1} parent=107 // pred_region
          %1017 = dma.done %s1009, 256
        $region124: #{transformer_decoder_pallas.1} parent=107 // pred_fallthru
          _
        %s1018 = sand.u32 %s57, 1
        %s1019 = scalar_lea.sflag [#allocation9], %s1018
        %s1020 = sand.u32 %s363, 1
        %s1021 = scalar_lea.vmem [#allocation10], %s1020
        // Predicated region
        $region125: #{transformer_decoder_pallas.1} parent=107 // pred_check
          %p1022 = pneg %p376
        $region126: #{transformer_decoder_pallas.1} parent=107 // pred_check_branch
          %1024 = sbr.rel (%p1022) target = $region128
        $region127: #{transformer_decoder_pallas.1} parent=107 // pred_region
          %1026 = dma.done %s1019, 16
        $region128: #{transformer_decoder_pallas.1} parent=107 // pred_fallthru
          _
        %s1027 = sand.u32 %s57, 1
        %s1028 = scalar_lea.sflag [#allocation12], %s1027
        %s1029 = sand.u32 %s389, 1
        %s1030 = smul.addr %s1029, 16
        %s1031 = scalar_lea.vmem [#allocation11], %s1030
        // Predicated region
        $region129: #{transformer_decoder_pallas.1} parent=107 // pred_check
          %p1032 = pneg %p402
        $region130: #{transformer_decoder_pallas.1} parent=107 // pred_check_branch
          %1034 = sbr.rel (%p1032) target = $region132
        $region131: #{transformer_decoder_pallas.1} parent=107 // pred_region
          %1036 = dma.done %s1028, 256
        $region132: #{transformer_decoder_pallas.1} parent=107 // pred_fallthru
          _
        %s1037 = sand.u32 %s57, 1
        %s1038 = scalar_lea.sflag [#allocation12], %s1037
        %s1039 = sand.u32 %s415, 1
        %s1040 = scalar_lea.vmem [#allocation13], %s1039
        // Predicated region
        $region133: #{transformer_decoder_pallas.1} parent=107 // pred_check
          %p1041 = pneg %p428
        $region134: #{transformer_decoder_pallas.1} parent=107 // pred_check_branch
          %1043 = sbr.rel (%p1041) target = $region136
        $region135: #{transformer_decoder_pallas.1} parent=107 // pred_region
          %1045 = dma.done %s1038, 16
        $region136: #{transformer_decoder_pallas.1} parent=107 // pred_fallthru
          _
        %s1046 = sand.u32 %s57, 1
        %s1047 = scalar_lea.sflag [#allocation15], %s1046
        %s1048 = sand.u32 %s467, 1
        %s1049 = scalar_lea.vmem [#allocation14], %s1048
        // Predicated region
        $region137: #{transformer_decoder_pallas.1} parent=107 // pred_check
          %p1050 = pneg %p480
        $region138: #{transformer_decoder_pallas.1} parent=107 // pred_check_branch
          %1052 = sbr.rel (%p1050) target = $region140
        $region139: #{transformer_decoder_pallas.1} parent=107 // pred_region
          %1054 = dma.done %s1047, 16
        $region140: #{transformer_decoder_pallas.1} parent=107 // pred_fallthru
          _
        %s1055 = sand.u32 %s57, 1
        %s1056 = scalar_lea.sflag [#allocation15], %s1055
        %s1057 = sand.u32 %s493, 1
        %s1058 = smul.addr %s1057, 16
        %s1059 = scalar_lea.vmem [#allocation16], %s1058
        // Predicated region
        $region141: #{transformer_decoder_pallas.1} parent=107 // pred_check
          %p1060 = pneg %p506
        $region142: #{transformer_decoder_pallas.1} parent=107 // pred_check_branch
          %1062 = sbr.rel (%p1060) target = $region144
        $region143: #{transformer_decoder_pallas.1} parent=107 // pred_region
          %1064 = dma.done %s1056, 256
        $region144: #{transformer_decoder_pallas.1} parent=107 // pred_fallthru
          _
        %s1065 = sand.u32 %s57, 1
        %s1066 = scalar_lea.sflag [#allocation18], %s1065
        %s1067 = sand.u32 %s519, 1
        %s1068 = scalar_lea.vmem [#allocation17], %s1067
        // Predicated region
        $region145: #{transformer_decoder_pallas.1} parent=107 // pred_check
          %p1069 = pneg %p532
        $region146: #{transformer_decoder_pallas.1} parent=107 // pred_check_branch
          %1071 = sbr.rel (%p1069) target = $region148
        $region147: #{transformer_decoder_pallas.1} parent=107 // pred_region
          %1073 = dma.done %s1066, 16
        $region148: #{transformer_decoder_pallas.1} parent=107 // pred_fallthru
          _
        %s1074 = sand.u32 %s57, 1
        %s1075 = scalar_lea.sflag [#allocation18], %s1074
        %s1076 = sand.u32 %s571, 1
        %s1077 = scalar_lea.vmem [#allocation19], %s1076
        // Predicated region
        $region149: #{transformer_decoder_pallas.1} parent=107 // pred_check
          %p1078 = pneg %p584
        $region150: #{transformer_decoder_pallas.1} parent=107 // pred_check_branch
          %1080 = sbr.rel (%p1078) target = $region152
        $region151: #{transformer_decoder_pallas.1} parent=107 // pred_region
          %1082 = dma.done %s1075, 16
        $region152: #{transformer_decoder_pallas.1} parent=107 // pred_fallthru
          _
        %s1083 = sand.u32 %s623, 1
        %s1084 = scalar_lea.sflag [#allocation21], %s1083
        %s1085 = sand.u32 %s623, 1
        %s1086 = scalar_lea.vmem [#allocation20], %s1085
        // Predicated region
        $region153: #{transformer_decoder_pallas.1} parent=107 // pred_check
          %p1087 = pneg %p636
        $region154: #{transformer_decoder_pallas.1} parent=107 // pred_check_branch
          %1089 = sbr.rel (%p1087) target = $region156
        $region155: #{transformer_decoder_pallas.1} parent=107 // pred_region
          %1091 = dma.done %s1084, 16
        $region156: #{transformer_decoder_pallas.1} parent=107 // pred_fallthru
          _
        %s1092 = sand.u32 %s77, 1
        %s1093 = scalar_lea.sflag [#allocation3], %s1092
        %s1094 = sand.u32 %s77, 1
        %s1095 = smul.addr %s1094, 8
        %s1096 = scalar_lea.vmem [#allocation2], %s1095
        %p1097 = pneg %p90
        %p1098 = pneg %p87
        %s1099 = sand.u32 %s57, 1
        %s1100 = scalar_lea.sflag [#allocation6], %s1099
        %s1101 = sand.u32 %s103, 1
        %s1102 = smul.addr %s1101, 8
        %s1103 = scalar_lea.vmem [#allocation5], %s1102
        %p1104 = pneg %p116
        %p1105 = pneg %p113
        %p1106 = scmp.lt.s32.totalorder %s62, 1
        %s1107 = scalar_select %p1106, %s62, 1
        %s1108 = smul.addr %s1107, 4
        %s1109 = smul.addr %s1108, 4
        %s1110 = scalar_lea.vmem %s2, %s1109
        %p1111 = pneg %p142
        %p1112 = pneg %p139
        %p1113 = scmp.lt.s32.totalorder %s62, 1
        %s1114 = scalar_select %p1113, %s62, 1
        %s1115 = scalar_lea.vmem %s3, %s1114
        %p1116 = pneg %p168
        %p1117 = pneg %p165
        %p1118 = scmp.lt.s32.totalorder %s62, 1
        %s1119 = scalar_select %p1118, %s62, 1
        %s1120 = smul.addr %s1119, 4
        %s1121 = smul.addr %s1120, 4
        %s1122 = scalar_lea.vmem %s4, %s1121
        %p1123 = pneg %p194
        %p1124 = pneg %p191
        %p1125 = scmp.lt.s32.totalorder %s62, 1
        %s1126 = scalar_select %p1125, %s62, 1
        %s1127 = scalar_lea.vmem %s5, %s1126
        %p1128 = pneg %p220
        %p1129 = pneg %p217
        %p1130 = scmp.lt.s32.totalorder %s62, 1
        %s1131 = scalar_select %p1130, %s62, 1
        %s1132 = scalar_lea.vmem %s6, %s1131
        %p1133 = pneg %p246
        %p1134 = pneg %p243
        %p1135 = scmp.lt.s32.totalorder %s62, 1
        %s1136 = scalar_select %p1135, %s62, 1
        %s1137 = scalar_lea.vmem %s7, %s1136
        %p1138 = pneg %p272
        %p1139 = pneg %p269
        %p1140 = scmp.lt.s32.totalorder %s62, 1
        %s1141 = scalar_select %p1140, %s62, 1
        %s1142 = smul.addr %s1141, 4
        %s1143 = smul.addr %s1142, 4
        %s1144 = scalar_lea.vmem %s8, %s1143
        %p1145 = pneg %p298
        %p1146 = pneg %p295
        %s1147 = sand.u32 %s57, 1
        %s1148 = scalar_lea.sflag [#allocation6], %s1147
        %s1149 = sand.u32 %s311, 1
        %s1150 = scalar_lea.vmem [#allocation7], %s1149
        %p1151 = pneg %p324
        %p1152 = pneg %p321
        %s1153 = sand.u32 %s57, 1
        %s1154 = scalar_lea.sflag [#allocation9], %s1153
        %s1155 = sand.u32 %s337, 1
        %s1156 = smul.addr %s1155, 16
        %s1157 = scalar_lea.vmem [#allocation8], %s1156
        %p1158 = pneg %p350
        %p1159 = pneg %p347
        %s1160 = sand.u32 %s57, 1
        %s1161 = scalar_lea.sflag [#allocation9], %s1160
        %s1162 = sand.u32 %s363, 1
        %s1163 = scalar_lea.vmem [#allocation10], %s1162
        %p1164 = pneg %p376
        %p1165 = pneg %p373
        %s1166 = sand.u32 %s57, 1
        %s1167 = scalar_lea.sflag [#allocation12], %s1166
        %s1168 = sand.u32 %s389, 1
        %s1169 = smul.addr %s1168, 16
        %s1170 = scalar_lea.vmem [#allocation11], %s1169
        %p1171 = pneg %p402
        %p1172 = pneg %p399
        %s1173 = sand.u32 %s57, 1
        %s1174 = scalar_lea.sflag [#allocation12], %s1173
        %s1175 = sand.u32 %s415, 1
        %s1176 = scalar_lea.vmem [#allocation13], %s1175
        %p1177 = pneg %p428
        %p1178 = pneg %p425
        %p1179 = scmp.lt.s32.totalorder %s62, 1
        %s1180 = scalar_select %p1179, %s62, 1
        %s1181 = scalar_lea.vmem %s14, %s1180
        %p1182 = pneg %p454
        %p1183 = pneg %p451
        %s1184 = sand.u32 %s57, 1
        %s1185 = scalar_lea.sflag [#allocation15], %s1184
        %s1186 = sand.u32 %s467, 1
        %s1187 = scalar_lea.vmem [#allocation14], %s1186
        %p1188 = pneg %p480
        %p1189 = pneg %p477
        %s1190 = sand.u32 %s57, 1
        %s1191 = scalar_lea.sflag [#allocation15], %s1190
        %s1192 = sand.u32 %s493, 1
        %s1193 = smul.addr %s1192, 16
        %s1194 = scalar_lea.vmem [#allocation16], %s1193
        %p1195 = pneg %p506
        %p1196 = pneg %p503
        %s1197 = sand.u32 %s57, 1
        %s1198 = scalar_lea.sflag [#allocation18], %s1197
        %s1199 = sand.u32 %s519, 1
        %s1200 = scalar_lea.vmem [#allocation17], %s1199
        %p1201 = pneg %p532
        %p1202 = pneg %p529
        %p1203 = scmp.lt.s32.totalorder %s62, 1
        %s1204 = scalar_select %p1203, %s62, 1
        %s1205 = smul.addr %s1204, 8
        %s1206 = smul.addr %s1205, 4
        %s1207 = scalar_lea.vmem %s18, %s1206
        %p1208 = pneg %p558
        %p1209 = pneg %p555
        %s1210 = sand.u32 %s57, 1
        %s1211 = scalar_lea.sflag [#allocation18], %s1210
        %s1212 = sand.u32 %s571, 1
        %s1213 = scalar_lea.vmem [#allocation19], %s1212
        %p1214 = pneg %p584
        %p1215 = pneg %p581
        %p1216 = scmp.lt.s32.totalorder %s62, 1
        %s1217 = scalar_select %p1216, %s62, 1
        %s1218 = scalar_lea.vmem %s20, %s1217
        %p1219 = pneg %p610
        %p1220 = pneg %p607
        %s1221 = sand.u32 %s623, 1
        %s1222 = scalar_lea.sflag [#allocation21], %s1221
        %s1223 = sand.u32 %s623, 1
        %s1224 = scalar_lea.vmem [#allocation20], %s1223
        %p1225 = pneg %p636
        %p1226 = pneg %p633
        %p1227 = pneg %p662
        %p1228 = pneg %p659
        %s1229 = sand.u32 %s649, 1
        %s1230 = scalar_lea.sflag [#allocation4], %s1229
        %s1231 = sand.u32 %s649, 1
        %s1232 = smul.addr %s1231, 8
        %s1233 = scalar_lea.vmem [#allocation22], %s1232
        %p1234 = scmp.lt.s32.totalorder %s62, 1
        %s1235 = scalar_select %p1234, %s62, 1
        %s1236 = smul.addr %s1235, 4
        %s1237 = smul.addr %s1236, 4
        %s1238 = scalar_lea.vmem %s2, %s1237
        %p1239 = scmp.lt.s32.totalorder %s62, 1
        %s1240 = scalar_select %p1239, %s62, 1
        %s1241 = scalar_lea.vmem %s3, %s1240
        %p1242 = scmp.lt.s32.totalorder %s62, 1
        %s1243 = scalar_select %p1242, %s62, 1
        %s1244 = smul.addr %s1243, 4
        %s1245 = smul.addr %s1244, 4
        %s1246 = scalar_lea.vmem %s4, %s1245
        %p1247 = scmp.lt.s32.totalorder %s62, 1
        %s1248 = scalar_select %p1247, %s62, 1
        %s1249 = scalar_lea.vmem %s5, %s1248
        %p1250 = scmp.lt.s32.totalorder %s62, 1
        %s1251 = scalar_select %p1250, %s62, 1
        %s1252 = scalar_lea.vmem %s6, %s1251
        %p1253 = scmp.lt.s32.totalorder %s62, 1
        %s1254 = scalar_select %p1253, %s62, 1
        %s1255 = scalar_lea.vmem %s7, %s1254
        %p1256 = scmp.lt.s32.totalorder %s62, 1
        %s1257 = scalar_select %p1256, %s62, 1
        %s1258 = smul.addr %s1257, 4
        %s1259 = smul.addr %s1258, 4
        %s1260 = scalar_lea.vmem %s8, %s1259
        %p1261 = scmp.lt.s32.totalorder %s62, 1
        %s1262 = scalar_select %p1261, %s62, 1
        %s1263 = scalar_lea.vmem %s14, %s1262
        %p1264 = scmp.lt.s32.totalorder %s62, 1
        %s1265 = scalar_select %p1264, %s62, 1
        %s1266 = smul.addr %s1265, 8
        %s1267 = smul.addr %s1266, 4
        %s1268 = scalar_lea.vmem %s18, %s1267
        %p1269 = scmp.lt.s32.totalorder %s62, 1
        %s1270 = scalar_select %p1269, %s62, 1
        %s1271 = scalar_lea.vmem %s20, %s1270
        %p1273 = scmp.eq.s32.totalorder %s62, 0
        // Predicated region
        $region157: #{transformer_decoder_pallas.1} parent=107 // pred_check
          %p1274 = pneg %p1273
        $region158: #{transformer_decoder_pallas.1} parent=107 // pred_check_branch
          %1276 = sbr.rel (%p1274) target = $region160
        $region159: #{transformer_decoder_pallas.1} parent=107 // pred_region
          %v1277 = vld [vmem:[%s983] sm:$0xff]
          %vm1278 = vcmask 261120
          %1279 = vst.msk [vmem:[%s1233] sm:$0xff] %vm1278, %v1277
        $region160: #{transformer_decoder_pallas.1} parent=107 // pred_fallthru
          _
        %v1280 = vld [vmem:[%s1233] sm:$0xff]
        %v1281 = vld [vmem:[%s993] sm:$0xff]
        %v1282 = vpack.c.bf16 %v1280, %v1280
        %v1283 = vld [vmem:[%s1238] sm:$0xf]
        %v1284 = vld [vmem:[%s1238 + $0x4] sm:$0xf]
        %v1285 = vld [vmem:[%s1238 + $0x8] sm:$0xf]
        %v1286 = vld [vmem:[%s1238 + $0xc] sm:$0xf]
        %v1287 = vld [vmem:[%s1241] sm:$0x1]
        %v1289 = vperm.slane %v1287, 0
        %v1295 = vunpack.c.l.b16 %v1283
        %v1296 = vunpack.c.l.b16 %v1284
        %v1297 = vunpack.c.l.b16 %v1285
        %v1298 = vunpack.c.l.b16 %v1286
        %v1299 = vpack.c.b16 %v1296, %v1295
        %v1300 = vpack.c.b16 %v1298, %v1297
        %vm1303 = vcmask 261120
        %v1305 = vsel %vm1303, %v1282, 0
        %1307 = vmatpush.bf16.msra.mxu0 0
        %1308 = vmatpush.bf16.msra.mxu0 0
        %1309 = vmatpush.bf16.msra.mxu0 0
        %1310 = vmatpush.bf16.msra.mxu0 0
        %1311 = vmatpush.bf16.msra.mxu0 0
        %1312 = vmatpush.bf16.msra.mxu0 0
        %1313 = vmatpush.bf16.msra.mxu0 %v1300
        %1314 = vmatpush.bf16.msra.mxu0 %v1299
        %1315 = vmatmul.bf16.gmra.mxu0 %v1305
        %v1316 = vpop.f32.mrf.mxu0
        %v1317 = vadd.f32 %v1289, %v1316
        %v1318 = vpop.f32.mrf.mxu0
        %1319 = vdwg.mxu0
        %1321 = vrot.lane.b32.xlu0 %v1317, 120
        %v1322 = vpop.permute.xlu0 %1321
        %1324 = vrot.lane.b32.xlu0 %v1317, 112
        %v1325 = vpop.permute.xlu0 %1324
        %1327 = vrot.lane.b32.xlu0 %v1317, 104
        %v1328 = vpop.permute.xlu0 %1327
        %v1330 = vrot.slane %v1325, 4
        %vm1331 = vcmask 1047556
        %v1332 = vsel %vm1331, %v1330, %v1317
        %v1333 = vrot.slane %v1317, 4
        %v1334 = vsel %vm1331, %v1325, %v1333
        %v1336 = vunpack.c.l.s4 1983009808
        %v1337 = vunpack.c.0.s8 %v1336
        %v1338 = vperm.slane %v1332, %v1337
        %v1340 = vunpack.c.l.s4 1983009808
        %v1341 = vunpack.c.0.s8 %v1340
        %v1342 = vperm.slane %v1334, %v1341
        %v1343 = vrot.slane %v1328, 4
        %v1344 = vsel %vm1331, %v1343, %v1322
        %v1345 = vrot.slane %v1322, 4
        %v1346 = vsel %vm1331, %v1328, %v1345
        %v1348 = vunpack.c.l.s4 1983009808
        %v1349 = vunpack.c.0.s8 %v1348
        %v1350 = vperm.slane %v1344, %v1349
        %v1352 = vunpack.c.l.s4 1983009808
        %v1353 = vunpack.c.0.s8 %v1352
        %v1354 = vperm.slane %v1346, %v1353
        %v1355 = vrot.slane %v1350, 4
        %v1356 = vsel %vm1331, %v1355, %v1338
        %v1357 = vrot.slane %v1338, 4
        %v1358 = vsel %vm1331, %v1350, %v1357
        %v1360 = vunpack.c.l.s4 1934713408
        %v1361 = vunpack.c.0.s8 %v1360
        %v1362 = vperm.slane %v1356, %v1361
        %v1364 = vunpack.c.l.s4 1934713408
        %v1365 = vunpack.c.0.s8 %v1364
        %v1366 = vperm.slane %v1358, %v1365
        %v1367 = vrot.slane %v1354, 4
        %v1368 = vsel %vm1331, %v1367, %v1342
        %v1369 = vrot.slane %v1342, 4
        %v1370 = vsel %vm1331, %v1354, %v1369
        %v1372 = vunpack.c.l.s4 1934713408
        %v1373 = vunpack.c.0.s8 %v1372
        %v1374 = vperm.slane %v1368, %v1373
        %v1376 = vunpack.c.l.s4 1934713408
        %v1377 = vunpack.c.0.s8 %v1376
        %v1378 = vperm.slane %v1370, %v1377
        %v1379 = vrot.slane %v1362, 4
        %v1380 = vsel %vm1331, 0.0, %v1379
        %v1381 = vrot.slane %v1366, 4
        %v1382 = vsel %vm1331, 0.0, %v1381
        %v1383 = vrot.slane %v1374, 4
        %v1384 = vsel %vm1331, 0.0, %v1383
        %v1385 = vrot.slane %v1378, 4
        %v1386 = vsel %vm1331, 0.0, %v1385
        %v1387 = vsel %vm1331, %v1381, %v1362
        %v1389 = vunpack.c.l.s4 1983009808
        %v1390 = vunpack.c.0.s8 %v1389
        %v1391 = vperm.slane %v1387, %v1390
        %v1392 = vrot.slane %v1382, 4
        %v1393 = vsel %vm1331, %v1392, %v1380
        %v1395 = vunpack.c.l.s4 1983009808
        %v1396 = vunpack.c.0.s8 %v1395
        %v1397 = vperm.slane %v1393, %v1396
        %v1398 = vsel %vm1331, %v1385, %v1374
        %v1400 = vunpack.c.l.s4 1983009808
        %v1401 = vunpack.c.0.s8 %v1400
        %v1402 = vperm.slane %v1398, %v1401
        %v1403 = vrot.slane %v1386, 4
        %v1404 = vsel %vm1331, %v1403, %v1384
        %v1406 = vunpack.c.l.s4 1983009808
        %v1407 = vunpack.c.0.s8 %v1406
        %v1408 = vperm.slane %v1404, %v1407
        %v1409 = vrot.slane %v1397, 4
        %v1410 = vsel %vm1331, %v1409, %v1391
        %v1411 = vrot.slane %v1391, 4
        %v1412 = vsel %vm1331, %v1397, %v1411
        %v1414 = vunpack.c.l.s4 1934713408
        %v1415 = vunpack.c.0.s8 %v1414
        %v1416 = vperm.slane %v1410, %v1415
        %v1418 = vunpack.c.l.s4 1934713408
        %v1419 = vunpack.c.0.s8 %v1418
        %v1420 = vperm.slane %v1412, %v1419
        %v1421 = vrot.slane %v1408, 4
        %v1422 = vsel %vm1331, %v1421, %v1402
        %v1423 = vrot.slane %v1402, 4
        %v1424 = vsel %vm1331, %v1408, %v1423
        %v1426 = vunpack.c.l.s4 1934713408
        %v1427 = vunpack.c.0.s8 %v1426
        %v1428 = vperm.slane %v1422, %v1427
        %v1430 = vunpack.c.l.s4 1934713408
        %v1431 = vunpack.c.0.s8 %v1430
        %v1432 = vperm.slane %v1424, %v1431
        %v1433 = vrot.slane %v1428, 4
        %v1434 = vsel %vm1331, %v1433, %v1416
        %v1435 = vrot.slane %v1416, 4
        %v1436 = vsel %vm1331, %v1428, %v1435
        %v1437 = vrot.slane %v1432, 4
        %v1438 = vsel %vm1331, %v1437, %v1420
        %v1439 = vrot.slane %v1420, 4
        %v1440 = vsel %vm1331, %v1432, %v1439
        %v1441 = vpack.c.bf16 %v1434, %v1434
        %v1442 = vpack.c.bf16 %v1436, %v1436
        %v1443 = vpack.c.bf16 %v1438, %v1438
        %v1444 = vpack.c.bf16 %v1440, %v1440
        %1445 = vrot.lane.b32.xlu0 %v1317, 96
        %v1446 = vpop.permute.xlu0 %1445
        %1447 = vrot.lane.b32.xlu0 %v1322, 96
        %v1448 = vpop.permute.xlu0 %1447
        %1449 = vrot.lane.b32.xlu0 %v1325, 96
        %v1450 = vpop.permute.xlu0 %1449
        %1451 = vrot.lane.b32.xlu0 %v1328, 96
        %v1452 = vpop.permute.xlu0 %1451
        %v1457 = vrot.slane %v1450, 4
        %v1458 = vsel %vm1331, %v1457, %v1446
        %v1459 = vrot.slane %v1446, 4
        %v1460 = vsel %vm1331, %v1450, %v1459
        %v1462 = vunpack.c.l.s4 1983009808
        %v1463 = vunpack.c.0.s8 %v1462
        %v1464 = vperm.slane %v1458, %v1463
        %v1466 = vunpack.c.l.s4 1983009808
        %v1467 = vunpack.c.0.s8 %v1466
        %v1468 = vperm.slane %v1460, %v1467
        %v1469 = vrot.slane %v1452, 4
        %v1470 = vsel %vm1331, %v1469, %v1448
        %v1471 = vrot.slane %v1448, 4
        %v1472 = vsel %vm1331, %v1452, %v1471
        %v1474 = vunpack.c.l.s4 1983009808
        %v1475 = vunpack.c.0.s8 %v1474
        %v1476 = vperm.slane %v1470, %v1475
        %v1478 = vunpack.c.l.s4 1983009808
        %v1479 = vunpack.c.0.s8 %v1478
        %v1480 = vperm.slane %v1472, %v1479
        %v1481 = vrot.slane %v1476, 4
        %v1482 = vsel %vm1331, %v1481, %v1464
        %v1483 = vrot.slane %v1464, 4
        %v1484 = vsel %vm1331, %v1476, %v1483
        %v1486 = vunpack.c.l.s4 1934713408
        %v1487 = vunpack.c.0.s8 %v1486
        %v1488 = vperm.slane %v1482, %v1487
        %v1490 = vunpack.c.l.s4 1934713408
        %v1491 = vunpack.c.0.s8 %v1490
        %v1492 = vperm.slane %v1484, %v1491
        %v1493 = vrot.slane %v1480, 4
        %v1494 = vsel %vm1331, %v1493, %v1468
        %v1495 = vrot.slane %v1468, 4
        %v1496 = vsel %vm1331, %v1480, %v1495
        %v1498 = vunpack.c.l.s4 1934713408
        %v1499 = vunpack.c.0.s8 %v1498
        %v1500 = vperm.slane %v1494, %v1499
        %v1502 = vunpack.c.l.s4 1934713408
        %v1503 = vunpack.c.0.s8 %v1502
        %v1504 = vperm.slane %v1496, %v1503
        %v1505 = vrot.slane %v1488, 4
        %v1506 = vsel %vm1331, 0.0, %v1505
        %v1507 = vrot.slane %v1492, 4
        %v1508 = vsel %vm1331, 0.0, %v1507
        %v1509 = vrot.slane %v1500, 4
        %v1510 = vsel %vm1331, 0.0, %v1509
        %v1511 = vrot.slane %v1504, 4
        %v1512 = vsel %vm1331, 0.0, %v1511
        %v1513 = vsel %vm1331, %v1507, %v1488
        %v1515 = vunpack.c.l.s4 1983009808
        %v1516 = vunpack.c.0.s8 %v1515
        %v1517 = vperm.slane %v1513, %v1516
        %v1518 = vrot.slane %v1508, 4
        %v1519 = vsel %vm1331, %v1518, %v1506
        %v1521 = vunpack.c.l.s4 1983009808
        %v1522 = vunpack.c.0.s8 %v1521
        %v1523 = vperm.slane %v1519, %v1522
        %v1524 = vsel %vm1331, %v1511, %v1500
        %v1526 = vunpack.c.l.s4 1983009808
        %v1527 = vunpack.c.0.s8 %v1526
        %v1528 = vperm.slane %v1524, %v1527
        %v1529 = vrot.slane %v1512, 4
        %v1530 = vsel %vm1331, %v1529, %v1510
        %v1532 = vunpack.c.l.s4 1983009808
        %v1533 = vunpack.c.0.s8 %v1532
        %v1534 = vperm.slane %v1530, %v1533
        %v1535 = vrot.slane %v1523, 4
        %v1536 = vsel %vm1331, %v1535, %v1517
        %v1537 = vrot.slane %v1517, 4
        %v1538 = vsel %vm1331, %v1523, %v1537
        %v1540 = vunpack.c.l.s4 1934713408
        %v1541 = vunpack.c.0.s8 %v1540
        %v1542 = vperm.slane %v1536, %v1541
        %v1544 = vunpack.c.l.s4 1934713408
        %v1545 = vunpack.c.0.s8 %v1544
        %v1546 = vperm.slane %v1538, %v1545
        %v1547 = vrot.slane %v1534, 4
        %v1548 = vsel %vm1331, %v1547, %v1528
        %v1549 = vrot.slane %v1528, 4
        %v1550 = vsel %vm1331, %v1534, %v1549
        %v1552 = vunpack.c.l.s4 1934713408
        %v1553 = vunpack.c.0.s8 %v1552
        %v1554 = vperm.slane %v1548, %v1553
        %v1556 = vunpack.c.l.s4 1934713408
        %v1557 = vunpack.c.0.s8 %v1556
        %v1558 = vperm.slane %v1550, %v1557
        %v1559 = vrot.slane %v1554, 4
        %v1560 = vsel %vm1331, %v1559, %v1542
        %v1561 = vrot.slane %v1542, 4
        %v1562 = vsel %vm1331, %v1554, %v1561
        %v1563 = vrot.slane %v1558, 4
        %v1564 = vsel %vm1331, %v1563, %v1546
        %v1565 = vrot.slane %v1546, 4
        %v1566 = vsel %vm1331, %v1558, %v1565
        %v1567 = vpack.c.bf16 %v1560, %v1560
        %v1568 = vpack.c.bf16 %v1562, %v1562
        %v1569 = vpack.c.bf16 %v1564, %v1564
        %v1570 = vpack.c.bf16 %v1566, %v1566
        %1571 = vrot.lane.b32.xlu0 %v1317, 64
        %v1572 = vpop.permute.xlu0 %1571
        %1573 = vrot.lane.b32.xlu0 %v1322, 64
        %v1574 = vpop.permute.xlu0 %1573
        %1575 = vrot.lane.b32.xlu0 %v1325, 64
        %v1576 = vpop.permute.xlu0 %1575
        %1577 = vrot.lane.b32.xlu0 %v1328, 64
        %v1578 = vpop.permute.xlu0 %1577
        %v1583 = vrot.slane %v1576, 4
        %v1584 = vsel %vm1331, %v1583, %v1572
        %v1585 = vrot.slane %v1572, 4
        %v1586 = vsel %vm1331, %v1576, %v1585
        %v1588 = vunpack.c.l.s4 1983009808
        %v1589 = vunpack.c.0.s8 %v1588
        %v1590 = vperm.slane %v1584, %v1589
        %v1592 = vunpack.c.l.s4 1983009808
        %v1593 = vunpack.c.0.s8 %v1592
        %v1594 = vperm.slane %v1586, %v1593
        %v1595 = vrot.slane %v1578, 4
        %v1596 = vsel %vm1331, %v1595, %v1574
        %v1597 = vrot.slane %v1574, 4
        %v1598 = vsel %vm1331, %v1578, %v1597
        %v1600 = vunpack.c.l.s4 1983009808
        %v1601 = vunpack.c.0.s8 %v1600
        %v1602 = vperm.slane %v1596, %v1601
        %v1604 = vunpack.c.l.s4 1983009808
        %v1605 = vunpack.c.0.s8 %v1604
        %v1606 = vperm.slane %v1598, %v1605
        %v1607 = vrot.slane %v1602, 4
        %v1608 = vsel %vm1331, %v1607, %v1590
        %v1609 = vrot.slane %v1590, 4
        %v1610 = vsel %vm1331, %v1602, %v1609
        %v1612 = vunpack.c.l.s4 1934713408
        %v1613 = vunpack.c.0.s8 %v1612
        %v1614 = vperm.slane %v1608, %v1613
        %v1616 = vunpack.c.l.s4 1934713408
        %v1617 = vunpack.c.0.s8 %v1616
        %v1618 = vperm.slane %v1610, %v1617
        %v1619 = vrot.slane %v1606, 4
        %v1620 = vsel %vm1331, %v1619, %v1594
        %v1621 = vrot.slane %v1594, 4
        %v1622 = vsel %vm1331, %v1606, %v1621
        %v1624 = vunpack.c.l.s4 1934713408
        %v1625 = vunpack.c.0.s8 %v1624
        %v1626 = vperm.slane %v1620, %v1625
        %v1628 = vunpack.c.l.s4 1934713408
        %v1629 = vunpack.c.0.s8 %v1628
        %v1630 = vperm.slane %v1622, %v1629
        %v1631 = vrot.slane %v1614, 4
        %v1632 = vsel %vm1331, 0.0, %v1631
        %v1633 = vrot.slane %v1618, 4
        %v1634 = vsel %vm1331, 0.0, %v1633
        %v1635 = vrot.slane %v1626, 4
        %v1636 = vsel %vm1331, 0.0, %v1635
        %v1637 = vrot.slane %v1630, 4
        %v1638 = vsel %vm1331, 0.0, %v1637
        %v1639 = vsel %vm1331, %v1633, %v1614
        %v1641 = vunpack.c.l.s4 1983009808
        %v1642 = vunpack.c.0.s8 %v1641
        %v1643 = vperm.slane %v1639, %v1642
        %v1644 = vrot.slane %v1634, 4
        %v1645 = vsel %vm1331, %v1644, %v1632
        %v1647 = vunpack.c.l.s4 1983009808
        %v1648 = vunpack.c.0.s8 %v1647
        %v1649 = vperm.slane %v1645, %v1648
        %v1650 = vsel %vm1331, %v1637, %v1626
        %v1652 = vunpack.c.l.s4 1983009808
        %v1653 = vunpack.c.0.s8 %v1652
        %v1654 = vperm.slane %v1650, %v1653
        %v1655 = vrot.slane %v1638, 4
        %v1656 = vsel %vm1331, %v1655, %v1636
        %v1658 = vunpack.c.l.s4 1983009808
        %v1659 = vunpack.c.0.s8 %v1658
        %v1660 = vperm.slane %v1656, %v1659
        %v1661 = vrot.slane %v1649, 4
        %v1662 = vsel %vm1331, %v1661, %v1643
        %v1663 = vrot.slane %v1643, 4
        %v1664 = vsel %vm1331, %v1649, %v1663
        %v1666 = vunpack.c.l.s4 1934713408
        %v1667 = vunpack.c.0.s8 %v1666
        %v1668 = vperm.slane %v1662, %v1667
        %v1670 = vunpack.c.l.s4 1934713408
        %v1671 = vunpack.c.0.s8 %v1670
        %v1672 = vperm.slane %v1664, %v1671
        %v1673 = vrot.slane %v1660, 4
        %v1674 = vsel %vm1331, %v1673, %v1654
        %v1675 = vrot.slane %v1654, 4
        %v1676 = vsel %vm1331, %v1660, %v1675
        %v1678 = vunpack.c.l.s4 1934713408
        %v1679 = vunpack.c.0.s8 %v1678
        %v1680 = vperm.slane %v1674, %v1679
        %v1682 = vunpack.c.l.s4 1934713408
        %v1683 = vunpack.c.0.s8 %v1682
        %v1684 = vperm.slane %v1676, %v1683
        %v1685 = vrot.slane %v1680, 4
        %v1686 = vsel %vm1331, %v1685, %v1668
        %v1687 = vrot.slane %v1668, 4
        %v1688 = vsel %vm1331, %v1680, %v1687
        %v1689 = vrot.slane %v1684, 4
        %v1690 = vsel %vm1331, %v1689, %v1672
        %v1691 = vrot.slane %v1672, 4
        %v1692 = vsel %vm1331, %v1684, %v1691
        %v1693 = vpack.c.bf16 %v1686, %v1686
        %v1694 = vpack.c.bf16 %v1688, %v1688
        %v1695 = vpack.c.bf16 %v1690, %v1690
        %v1696 = vpack.c.bf16 %v1692, %v1692
        %vm1697 = vcmask 64512
        %v1699 = vsel %vm1697, %v1441, 0
        %v1702 = vsel %vm1697, %v1567, 0
        %1704 = vmatpush.bf16.xpose.msra.mxu0 0
        %1705 = vmatpush.bf16.xpose.msra.mxu0 0
        %1706 = vmatpush.bf16.xpose.msra.mxu0 0
        %1707 = vmatpush.bf16.xpose.msra.mxu0 0
        %1708 = vmatpush.bf16.xpose.msra.mxu0 0
        %1709 = vmatpush.bf16.xpose.msra.mxu0 0
        %1710 = vmatpush.bf16.xpose.msra.mxu0 0
        %1711 = vmatpush.bf16.xpose.msra.mxu0 %v1702
        %1712 = vmatmul.bf16.gmra.mxu0 %v1699
        %v1713 = vpop.f32.mrf.mxu0
        %v1714 = vadd.f32 0.0, %v1713
        %v1715 = vpop.f32.mrf.mxu0
        %1716 = vdwg.mxu0
        %v1718 = vsel %vm1697, %v1442, 0
        %v1721 = vsel %vm1697, %v1568, 0
        %1723 = vmatpush.bf16.xpose.msra.mxu0 0
        %1724 = vmatpush.bf16.xpose.msra.mxu0 0
        %1725 = vmatpush.bf16.xpose.msra.mxu0 0
        %1726 = vmatpush.bf16.xpose.msra.mxu0 0
        %1727 = vmatpush.bf16.xpose.msra.mxu0 0
        %1728 = vmatpush.bf16.xpose.msra.mxu0 0
        %1729 = vmatpush.bf16.xpose.msra.mxu0 0
        %1730 = vmatpush.bf16.xpose.msra.mxu0 %v1721
        %1731 = vmatmul.bf16.gmra.mxu0 %v1718
        %v1732 = vpop.f32.mrf.mxu0
        %v1733 = vadd.f32 0.0, %v1732
        %v1734 = vpop.f32.mrf.mxu0
        %1735 = vdwg.mxu0
        %v1737 = vsel %vm1697, %v1443, 0
        %v1740 = vsel %vm1697, %v1569, 0
        %1742 = vmatpush.bf16.xpose.msra.mxu0 0
        %1743 = vmatpush.bf16.xpose.msra.mxu0 0
        %1744 = vmatpush.bf16.xpose.msra.mxu0 0
        %1745 = vmatpush.bf16.xpose.msra.mxu0 0
        %1746 = vmatpush.bf16.xpose.msra.mxu0 0
        %1747 = vmatpush.bf16.xpose.msra.mxu0 0
        %1748 = vmatpush.bf16.xpose.msra.mxu0 0
        %1749 = vmatpush.bf16.xpose.msra.mxu0 %v1740
        %1750 = vmatmul.bf16.gmra.mxu0 %v1737
        %v1751 = vpop.f32.mrf.mxu0
        %v1752 = vadd.f32 0.0, %v1751
        %v1753 = vpop.f32.mrf.mxu0
        %1754 = vdwg.mxu0
        %v1756 = vsel %vm1697, %v1444, 0
        %v1759 = vsel %vm1697, %v1570, 0
        %1761 = vmatpush.bf16.xpose.msra.mxu0 0
        %1762 = vmatpush.bf16.xpose.msra.mxu0 0
        %1763 = vmatpush.bf16.xpose.msra.mxu0 0
        %1764 = vmatpush.bf16.xpose.msra.mxu0 0
        %1765 = vmatpush.bf16.xpose.msra.mxu0 0
        %1766 = vmatpush.bf16.xpose.msra.mxu0 0
        %1767 = vmatpush.bf16.xpose.msra.mxu0 0
        %1768 = vmatpush.bf16.xpose.msra.mxu0 %v1759
        %1769 = vmatmul.bf16.gmra.mxu0 %v1756
        %v1770 = vpop.f32.mrf.mxu0
        %v1771 = vadd.f32 0.0, %v1770
        %v1772 = vpop.f32.mrf.mxu0
        %1773 = vdwg.mxu0
        %v1774 = vmul.f32 %v1714, 0.35355338
        %v1775 = vmul.f32 %v1733, 0.35355338
        %v1776 = vmul.f32 %v1752, 0.35355338
        %v1777 = vmul.f32 %v1771, 0.35355338
        %v1778 = vsel %vm1697, %v1774, -inf
        %1779 = vmax.xlane.f32.xlu0 %v1778
        %v1780 = vpop.xlane.xlu0 %1779
        %v1781 = vsel %vm1697, %v1775, -inf
        %1782 = vmax.xlane.f32.xlu0 %v1781
        %v1783 = vpop.xlane.xlu0 %1782
        %v1784 = vsel %vm1697, %v1776, -inf
        %1785 = vmax.xlane.f32.xlu0 %v1784
        %v1786 = vpop.xlane.xlu0 %1785
        %v1787 = vsel %vm1697, %v1777, -inf
        %1788 = vmax.xlane.f32.xlu0 %v1787
        %v1789 = vpop.xlane.xlu0 %1788
        %v1790 = vsub.f32 %v1774, %v1780
        %v1791 = vsub.f32 %v1775, %v1783
        %v1792 = vsub.f32 %v1776, %v1786
        %v1793 = vsub.f32 %v1777, %v1789
        %v1794 = vmul.f32 %v1790, 1.442695
        %v1795 = vpow.pop %v1794
        %v1796 = vmul.f32 %v1791, 1.442695
        %v1797 = vpow.pop %v1796
        %v1798 = vmul.f32 %v1792, 1.442695
        %v1799 = vpow.pop %v1798
        %v1800 = vmul.f32 %v1793, 1.442695
        %v1801 = vpow.pop %v1800
        %v1802 = vsel %vm1697, %v1795, 0.0
        %1803 = vadd.xlane.f32.xlu0 %v1802
        %v1804 = vpop.xlane.xlu0 %1803
        %v1805 = vsel %vm1697, %v1797, 0.0
        %1806 = vadd.xlane.f32.xlu0 %v1805
        %v1807 = vpop.xlane.xlu0 %1806
        %v1808 = vsel %vm1697, %v1799, 0.0
        %1809 = vadd.xlane.f32.xlu0 %v1808
        %v1810 = vpop.xlane.xlu0 %1809
        %v1811 = vsel %vm1697, %v1801, 0.0
        %1812 = vadd.xlane.f32.xlu0 %v1811
        %v1813 = vpop.xlane.xlu0 %1812
        %v1814 = vrcp.pop %v1804
        %v1815 = vmul.f32 %v1804, %v1814
        %v1816 = vsub.f32 1.0, %v1815
        %v1817 = vmul.f32 %v1814, %v1816
        %v1818 = vadd.f32 %v1814, %v1817
        %vm1819 = vweird.f32 %v1804
        %vm1820 = vweird.f32 %v1814
        %vm1821 = vmor %vm1819, %vm1820
        %v1822 = vsel %vm1821, %v1814, %v1818
        %v1823 = vand.u32 2147483647, %v1804
        %vm1824 = vcmp.eq.f32.partialorder %v1823, 8.507059e+37
        %v1825 = vand.u32 %v1804, 2147483648
        %v1826 = vor.u32 1.1754944e-38, %v1825
        %v1827 = vsel %vm1824, %v1826, %v1822
        %v1828 = vmul.f32 %v1795, %v1827
        %v1829 = vrcp.pop %v1807
        %v1830 = vmul.f32 %v1807, %v1829
        %v1831 = vsub.f32 1.0, %v1830
        %v1832 = vmul.f32 %v1829, %v1831
        %v1833 = vadd.f32 %v1829, %v1832
        %vm1834 = vweird.f32 %v1807
        %vm1835 = vweird.f32 %v1829
        %vm1836 = vmor %vm1834, %vm1835
        %v1837 = vsel %vm1836, %v1829, %v1833
        %v1838 = vand.u32 2147483647, %v1807
        %vm1839 = vcmp.eq.f32.partialorder %v1838, 8.507059e+37
        %v1840 = vand.u32 %v1807, 2147483648
        %v1841 = vor.u32 1.1754944e-38, %v1840
        %v1842 = vsel %vm1839, %v1841, %v1837
        %v1843 = vmul.f32 %v1797, %v1842
        %v1844 = vrcp.pop %v1810
        %v1845 = vmul.f32 %v1810, %v1844
        %v1846 = vsub.f32 1.0, %v1845
        %v1847 = vmul.f32 %v1844, %v1846
        %v1848 = vadd.f32 %v1844, %v1847
        %vm1849 = vweird.f32 %v1810
        %vm1850 = vweird.f32 %v1844
        %vm1851 = vmor %vm1849, %vm1850
        %v1852 = vsel %vm1851, %v1844, %v1848
        %v1853 = vand.u32 2147483647, %v1810
        %vm1854 = vcmp.eq.f32.partialorder %v1853, 8.507059e+37
        %v1855 = vand.u32 %v1810, 2147483648
        %v1856 = vor.u32 1.1754944e-38, %v1855
        %v1857 = vsel %vm1854, %v1856, %v1852
        %v1858 = vmul.f32 %v1799, %v1857
        %v1859 = vrcp.pop %v1813
        %v1860 = vmul.f32 %v1813, %v1859
        %v1861 = vsub.f32 1.0, %v1860
        %v1862 = vmul.f32 %v1859, %v1861
        %v1863 = vadd.f32 %v1859, %v1862
        %vm1864 = vweird.f32 %v1813
        %vm1865 = vweird.f32 %v1859
        %vm1866 = vmor %vm1864, %vm1865
        %v1867 = vsel %vm1866, %v1859, %v1863
        %v1868 = vand.u32 2147483647, %v1813
        %vm1869 = vcmp.eq.f32.partialorder %v1868, 8.507059e+37
        %v1870 = vand.u32 %v1813, 2147483648
        %v1871 = vor.u32 1.1754944e-38, %v1870
        %v1872 = vsel %vm1869, %v1871, %v1867
        %v1873 = vmul.f32 %v1801, %v1872
        %v1874 = vpack.c.bf16 %v1828, %v1828
        %v1875 = vpack.c.bf16 %v1843, %v1843
        %v1876 = vpack.c.bf16 %v1858, %v1858
        %v1877 = vpack.c.bf16 %v1873, %v1873
        %v1879 = vsel %vm1697, %v1874, 0
        %vm1881 = vcmask 1043456
        %v1883 = vsel %vm1881, %v1693, 0
        %1885 = vmatpush.bf16.msra.mxu0 0
        %1886 = vmatpush.bf16.msra.mxu0 0
        %1887 = vmatpush.bf16.msra.mxu0 0
        %1888 = vmatpush.bf16.msra.mxu0 0
        %1889 = vmatpush.bf16.msra.mxu0 0
        %1890 = vmatpush.bf16.msra.mxu0 0
        %1891 = vmatpush.bf16.msra.mxu0 0
        %1892 = vmatpush.bf16.msra.mxu0 %v1883
        %1893 = vmatmul.bf16.gmra.mxu0 %v1879
        %v1894 = vpop.f32.mrf.mxu0
        %v1895 = vadd.f32 0.0, %v1894
        %v1896 = vpop.f32.mrf.mxu0
        %1897 = vdwg.mxu0
        %v1899 = vsel %vm1697, %v1875, 0
        %v1902 = vsel %vm1881, %v1694, 0
        %1904 = vmatpush.bf16.msra.mxu0 0
        %1905 = vmatpush.bf16.msra.mxu0 0
        %1906 = vmatpush.bf16.msra.mxu0 0
        %1907 = vmatpush.bf16.msra.mxu0 0
        %1908 = vmatpush.bf16.msra.mxu0 0
        %1909 = vmatpush.bf16.msra.mxu0 0
        %1910 = vmatpush.bf16.msra.mxu0 0
        %1911 = vmatpush.bf16.msra.mxu0 %v1902
        %1912 = vmatmul.bf16.gmra.mxu0 %v1899
        %v1913 = vpop.f32.mrf.mxu0
        %v1914 = vadd.f32 0.0, %v1913
        %v1915 = vpop.f32.mrf.mxu0
        %1916 = vdwg.mxu0
        %v1918 = vsel %vm1697, %v1876, 0
        %v1921 = vsel %vm1881, %v1695, 0
        %1923 = vmatpush.bf16.msra.mxu0 0
        %1924 = vmatpush.bf16.msra.mxu0 0
        %1925 = vmatpush.bf16.msra.mxu0 0
        %1926 = vmatpush.bf16.msra.mxu0 0
        %1927 = vmatpush.bf16.msra.mxu0 0
        %1928 = vmatpush.bf16.msra.mxu0 0
        %1929 = vmatpush.bf16.msra.mxu0 0
        %1930 = vmatpush.bf16.msra.mxu0 %v1921
        %1931 = vmatmul.bf16.gmra.mxu0 %v1918
        %v1932 = vpop.f32.mrf.mxu0
        %v1933 = vadd.f32 0.0, %v1932
        %v1934 = vpop.f32.mrf.mxu0
        %1935 = vdwg.mxu0
        %v1937 = vsel %vm1697, %v1877, 0
        %v1940 = vsel %vm1881, %v1696, 0
        %1942 = vmatpush.bf16.msra.mxu0 0
        %1943 = vmatpush.bf16.msra.mxu0 0
        %1944 = vmatpush.bf16.msra.mxu0 0
        %1945 = vmatpush.bf16.msra.mxu0 0
        %1946 = vmatpush.bf16.msra.mxu0 0
        %1947 = vmatpush.bf16.msra.mxu0 0
        %1948 = vmatpush.bf16.msra.mxu0 0
        %1949 = vmatpush.bf16.msra.mxu0 %v1940
        %1950 = vmatmul.bf16.gmra.mxu0 %v1937
        %v1951 = vpop.f32.mrf.mxu0
        %v1952 = vadd.f32 0.0, %v1951
        %v1953 = vpop.f32.mrf.mxu0
        %1954 = vdwg.mxu0
        %v1955 = vrot.slane %v1933, 4
        %v1956 = vsel %vm1331, %v1955, %v1895
        %v1957 = vrot.slane %v1895, 4
        %v1958 = vsel %vm1331, %v1933, %v1957
        %v1960 = vunpack.c.l.s4 1983009808
        %v1961 = vunpack.c.0.s8 %v1960
        %v1962 = vperm.slane %v1956, %v1961
        %v1964 = vunpack.c.l.s4 1983009808
        %v1965 = vunpack.c.0.s8 %v1964
        %v1966 = vperm.slane %v1958, %v1965
        %v1967 = vrot.slane %v1952, 4
        %v1968 = vsel %vm1331, %v1967, %v1914
        %v1969 = vrot.slane %v1914, 4
        %v1970 = vsel %vm1331, %v1952, %v1969
        %v1972 = vunpack.c.l.s4 1983009808
        %v1973 = vunpack.c.0.s8 %v1972
        %v1974 = vperm.slane %v1968, %v1973
        %v1976 = vunpack.c.l.s4 1983009808
        %v1977 = vunpack.c.0.s8 %v1976
        %v1978 = vperm.slane %v1970, %v1977
        %v1979 = vrot.slane %v1974, 4
        %v1980 = vsel %vm1331, %v1979, %v1962
        %v1981 = vrot.slane %v1962, 4
        %v1982 = vsel %vm1331, %v1974, %v1981
        %v1984 = vunpack.c.l.s4 1934713408
        %v1985 = vunpack.c.0.s8 %v1984
        %v1986 = vperm.slane %v1980, %v1985
        %v1988 = vunpack.c.l.s4 1934713408
        %v1989 = vunpack.c.0.s8 %v1988
        %v1990 = vperm.slane %v1982, %v1989
        %v1991 = vrot.slane %v1978, 4
        %v1992 = vsel %vm1331, %v1991, %v1966
        %v1993 = vrot.slane %v1966, 4
        %v1994 = vsel %vm1331, %v1978, %v1993
        %v1996 = vunpack.c.l.s4 1934713408
        %v1997 = vunpack.c.0.s8 %v1996
        %v1998 = vperm.slane %v1992, %v1997
        %v2000 = vunpack.c.l.s4 1934713408
        %v2001 = vunpack.c.0.s8 %v2000
        %v2002 = vperm.slane %v1994, %v2001
        %v2003 = vrot.slane %v1986, 4
        %v2004 = vsel %vm1331, 0.0, %v2003
        %v2005 = vrot.slane %v1990, 4
        %v2006 = vsel %vm1331, 0.0, %v2005
        %v2007 = vrot.slane %v1998, 4
        %v2008 = vsel %vm1331, 0.0, %v2007
        %v2009 = vrot.slane %v2002, 4
        %v2010 = vsel %vm1331, 0.0, %v2009
        %v2011 = vsel %vm1331, %v2005, %v1986
        %v2013 = vunpack.c.l.s4 1983009808
        %v2014 = vunpack.c.0.s8 %v2013
        %v2015 = vperm.slane %v2011, %v2014
        %v2016 = vrot.slane %v2006, 4
        %v2017 = vsel %vm1331, %v2016, %v2004
        %v2019 = vunpack.c.l.s4 1983009808
        %v2020 = vunpack.c.0.s8 %v2019
        %v2021 = vperm.slane %v2017, %v2020
        %v2022 = vsel %vm1331, %v2009, %v1998
        %v2024 = vunpack.c.l.s4 1983009808
        %v2025 = vunpack.c.0.s8 %v2024
        %v2026 = vperm.slane %v2022, %v2025
        %v2027 = vrot.slane %v2010, 4
        %v2028 = vsel %vm1331, %v2027, %v2008
        %v2030 = vunpack.c.l.s4 1983009808
        %v2031 = vunpack.c.0.s8 %v2030
        %v2032 = vperm.slane %v2028, %v2031
        %v2033 = vrot.slane %v2021, 4
        %v2034 = vsel %vm1331, %v2033, %v2015
        %v2035 = vrot.slane %v2015, 4
        %v2036 = vsel %vm1331, %v2021, %v2035
        %v2038 = vunpack.c.l.s4 1934713408
        %v2039 = vunpack.c.0.s8 %v2038
        %v2040 = vperm.slane %v2034, %v2039
        %v2042 = vunpack.c.l.s4 1934713408
        %v2043 = vunpack.c.0.s8 %v2042
        %v2044 = vperm.slane %v2036, %v2043
        %v2045 = vrot.slane %v2032, 4
        %v2046 = vsel %vm1331, %v2045, %v2026
        %v2047 = vrot.slane %v2026, 4
        %v2048 = vsel %vm1331, %v2032, %v2047
        %v2050 = vunpack.c.l.s4 1934713408
        %v2051 = vunpack.c.0.s8 %v2050
        %v2052 = vperm.slane %v2046, %v2051
        %v2054 = vunpack.c.l.s4 1934713408
        %v2055 = vunpack.c.0.s8 %v2054
        %v2056 = vperm.slane %v2048, %v2055
        %v2057 = vrot.slane %v2052, 4
        %v2058 = vsel %vm1331, %v2057, %v2040
        %v2059 = vrot.slane %v2040, 4
        %v2060 = vsel %vm1331, %v2052, %v2059
        %v2061 = vrot.slane %v2056, 4
        %v2062 = vsel %vm1331, %v2061, %v2044
        %v2063 = vrot.slane %v2044, 4
        %v2064 = vsel %vm1331, %v2056, %v2063
        %2066 = vrot.lane.b32.xlu0 %v2060, 8
        %v2067 = vpop.permute.xlu0 %2066
        %2070 = vrot.lane.b32.xlu0 %v2062, 16
        %v2071 = vpop.permute.xlu0 %2070
        %2074 = vrot.lane.b32.xlu0 %v2064, 24
        %v2075 = vpop.permute.xlu0 %2074
        %v2077 = vsel %vm1697, %v2058, %v2067
        %vm2078 = vcmask 130048
        %v2079 = vsel %vm2078, %v2077, %v2071
        %vm2080 = vcmask 195584
        %v2081 = vsel %vm2080, %v2079, %v2075
        %v2082 = vpack.c.bf16 %v2081, %v2081
        %v2083 = vld [vmem:[%s1246] sm:$0xf]
        %v2084 = vld [vmem:[%s1246 + $0x4] sm:$0xf]
        %v2085 = vld [vmem:[%s1246 + $0x8] sm:$0xf]
        %v2086 = vld [vmem:[%s1246 + $0xc] sm:$0xf]
        %v2087 = vld [vmem:[%s1249] sm:$0x1]
        %v2089 = vperm.slane %v2087, 0
        %v2095 = vunpack.c.l.b16 %v2083
        %v2096 = vunpack.c.l.b16 %v2084
        %v2097 = vunpack.c.l.b16 %v2085
        %v2098 = vunpack.c.l.b16 %v2086
        %v2099 = vpack.c.b16 %v2096, %v2095
        %v2100 = vpack.c.b16 %v2098, %v2097
        %v2104 = vsel %vm1303, %v2082, 0
        %2106 = vmatpush.bf16.msra.mxu0 0
        %2107 = vmatpush.bf16.msra.mxu0 0
        %2108 = vmatpush.bf16.msra.mxu0 0
        %2109 = vmatpush.bf16.msra.mxu0 0
        %2110 = vmatpush.bf16.msra.mxu0 0
        %2111 = vmatpush.bf16.msra.mxu0 0
        %2112 = vmatpush.bf16.msra.mxu0 %v2100
        %2113 = vmatpush.bf16.msra.mxu0 %v2099
        %2114 = vmatmul.bf16.gmra.mxu0 %v2104
        %v2115 = vpop.f32.mrf.mxu0
        %v2116 = vadd.f32 %v2089, %v2115
        %v2117 = vpop.f32.mrf.mxu0
        %2118 = vdwg.mxu0
        %v2119 = vadd.f32 %v1280, %v2116
        %v2120 = vld [vmem:[%s1252] sm:$0x1]
        %v2121 = vld [vmem:[%s1255] sm:$0x1]
        %v2122 = vsel %vm1303, %v2119, 0.0
        %2123 = vadd.xlane.f32.xlu0 %v2122
        %v2124 = vpop.xlane.xlu0 %2123
        %v2125 = vrcp.pop 32.0
        %v2126 = vmul.f32 32.0, %v2125
        %v2127 = vsub.f32 1.0, %v2126
        %v2128 = vmul.f32 %v2125, %v2127
        %v2129 = vadd.f32 %v2125, %v2128
        %vm2130 = vweird.f32 %v2125
        %v2131 = vsel %vm2130, %v2125, %v2129
        %v2132 = vmul.f32 %v2124, %v2131
        %v2133 = vsub.f32 %v2119, %v2132
        %v2134 = vmul.f32 %v2133, %v2133
        %v2135 = vsel %vm1303, %v2134, 0.0
        %2136 = vadd.xlane.f32.xlu0 %v2135
        %v2137 = vpop.xlane.xlu0 %2136
        %v2138 = vmul.f32 %v2137, %v2131
        %v2139 = vadd.f32 %v2138, 1e-05
        %v2140 = vrsqrt.pop %v2139
        %v2141 = vmul.f32 %v2140, %v2139
        %v2142 = vmul.f32 %v2141, %v2140
        %v2143 = vmul.f32 0.5, %v2142
        %v2144 = vsub.f32 1.5, %v2143
        %v2145 = vmul.f32 %v2140, %v2144
        %vm2146 = vweird.f32 %v2139
        %vm2147 = vweird.f32 %v2140
        %vm2148 = vmor %vm2146, %vm2147
        %v2149 = vsel %vm2148, %v2140, %v2145
        %v2150 = vmul.f32 %v2133, %v2149
        %v2152 = vperm.slane %v2120, 0
        %v2154 = vmul.f32 %v2150, %v2152
        %v2156 = vperm.slane %v2121, 0
        %v2158 = vadd.f32 %v2154, %v2156
        %v2159 = vpack.c.bf16 %v2158, %v2158
        %v2160 = vld [vmem:[%s1260] sm:$0xf]
        %v2161 = vld [vmem:[%s1260 + $0x4] sm:$0xf]
        %v2162 = vld [vmem:[%s1260 + $0x8] sm:$0xf]
        %v2163 = vld [vmem:[%s1260 + $0xc] sm:$0xf]
        %v2164 = vld [vmem:[%s1002] sm:$0x1]
        %v2166 = vperm.slane %v2164, 0
        %v2172 = vunpack.c.l.b16 %v2160
        %v2173 = vunpack.c.l.b16 %v2161
        %v2174 = vunpack.c.l.b16 %v2162
        %v2175 = vunpack.c.l.b16 %v2163
        %v2176 = vpack.c.b16 %v2173, %v2172
        %v2177 = vpack.c.b16 %v2175, %v2174
        %v2181 = vsel %vm1303, %v2159, 0
        %2183 = vmatpush.bf16.msra.mxu0 0
        %2184 = vmatpush.bf16.msra.mxu0 0
        %2185 = vmatpush.bf16.msra.mxu0 0
        %2186 = vmatpush.bf16.msra.mxu0 0
        %2187 = vmatpush.bf16.msra.mxu0 0
        %2188 = vmatpush.bf16.msra.mxu0 0
        %2189 = vmatpush.bf16.msra.mxu0 %v2177
        %2190 = vmatpush.bf16.msra.mxu0 %v2176
        %2191 = vmatmul.bf16.gmra.mxu0 %v2181
        %v2192 = vpop.f32.mrf.mxu0
        %v2193 = vadd.f32 %v2166, %v2192
        %v2194 = vpop.f32.mrf.mxu0
        %2195 = vdwg.mxu0
        %v2196 = vpack.c.bf16 %v1281, %v1281
        %v2197 = vld [vmem:[%s1012] sm:$0xf]
        %v2198 = vld [vmem:[%s1012 + $0x4] sm:$0xf]
        %v2199 = vld [vmem:[%s1012 + $0x8] sm:$0xf]
        %v2200 = vld [vmem:[%s1012 + $0xc] sm:$0xf]
        %v2201 = vld [vmem:[%s1021] sm:$0x1]
        %v2203 = vperm.slane %v2201, 0
        %v2209 = vunpack.c.l.b16 %v2197
        %v2210 = vunpack.c.l.b16 %v2198
        %v2211 = vunpack.c.l.b16 %v2199
        %v2212 = vunpack.c.l.b16 %v2200
        %v2213 = vpack.c.b16 %v2210, %v2209
        %v2214 = vpack.c.b16 %v2212, %v2211
        %v2218 = vsel %vm1303, %v2196, 0
        %2220 = vmatpush.bf16.msra.mxu0 0
        %2221 = vmatpush.bf16.msra.mxu0 0
        %2222 = vmatpush.bf16.msra.mxu0 0
        %2223 = vmatpush.bf16.msra.mxu0 0
        %2224 = vmatpush.bf16.msra.mxu0 0
        %2225 = vmatpush.bf16.msra.mxu0 0
        %2226 = vmatpush.bf16.msra.mxu0 %v2214
        %2227 = vmatpush.bf16.msra.mxu0 %v2213
        %2228 = vmatmul.bf16.gmra.mxu0 %v2218
        %v2229 = vpop.f32.mrf.mxu0
        %v2230 = vadd.f32 %v2203, %v2229
        %v2231 = vpop.f32.mrf.mxu0
        %2232 = vdwg.mxu0
        %2234 = vrot.lane.b32.xlu0 %v2193, 120
        %v2235 = vpop.permute.xlu0 %2234
        %2237 = vrot.lane.b32.xlu0 %v2193, 112
        %v2238 = vpop.permute.xlu0 %2237
        %2240 = vrot.lane.b32.xlu0 %v2193, 104
        %v2241 = vpop.permute.xlu0 %2240
        %v2243 = vrot.slane %v2238, 4
        %v2244 = vsel %vm1331, %v2243, %v2193
        %v2245 = vrot.slane %v2193, 4
        %v2246 = vsel %vm1331, %v2238, %v2245
        %v2248 = vunpack.c.l.s4 1983009808
        %v2249 = vunpack.c.0.s8 %v2248
        %v2250 = vperm.slane %v2244, %v2249
        %v2252 = vunpack.c.l.s4 1983009808
        %v2253 = vunpack.c.0.s8 %v2252
        %v2254 = vperm.slane %v2246, %v2253
        %v2255 = vrot.slane %v2241, 4
        %v2256 = vsel %vm1331, %v2255, %v2235
        %v2257 = vrot.slane %v2235, 4
        %v2258 = vsel %vm1331, %v2241, %v2257
        %v2260 = vunpack.c.l.s4 1983009808
        %v2261 = vunpack.c.0.s8 %v2260
        %v2262 = vperm.slane %v2256, %v2261
        %v2264 = vunpack.c.l.s4 1983009808
        %v2265 = vunpack.c.0.s8 %v2264
        %v2266 = vperm.slane %v2258, %v2265
        %v2267 = vrot.slane %v2262, 4
        %v2268 = vsel %vm1331, %v2267, %v2250
        %v2269 = vrot.slane %v2250, 4
        %v2270 = vsel %vm1331, %v2262, %v2269
        %v2272 = vunpack.c.l.s4 1934713408
        %v2273 = vunpack.c.0.s8 %v2272
        %v2274 = vperm.slane %v2268, %v2273
        %v2276 = vunpack.c.l.s4 1934713408
        %v2277 = vunpack.c.0.s8 %v2276
        %v2278 = vperm.slane %v2270, %v2277
        %v2279 = vrot.slane %v2266, 4
        %v2280 = vsel %vm1331, %v2279, %v2254
        %v2281 = vrot.slane %v2254, 4
        %v2282 = vsel %vm1331, %v2266, %v2281
        %v2284 = vunpack.c.l.s4 1934713408
        %v2285 = vunpack.c.0.s8 %v2284
        %v2286 = vperm.slane %v2280, %v2285
        %v2288 = vunpack.c.l.s4 1934713408
        %v2289 = vunpack.c.0.s8 %v2288
        %v2290 = vperm.slane %v2282, %v2289
        %v2291 = vrot.slane %v2274, 4
        %v2292 = vsel %vm1331, 0.0, %v2291
        %v2293 = vrot.slane %v2278, 4
        %v2294 = vsel %vm1331, 0.0, %v2293
        %v2295 = vrot.slane %v2286, 4
        %v2296 = vsel %vm1331, 0.0, %v2295
        %v2297 = vrot.slane %v2290, 4
        %v2298 = vsel %vm1331, 0.0, %v2297
        %v2299 = vsel %vm1331, %v2293, %v2274
        %v2301 = vunpack.c.l.s4 1983009808
        %v2302 = vunpack.c.0.s8 %v2301
        %v2303 = vperm.slane %v2299, %v2302
        %v2304 = vrot.slane %v2294, 4
        %v2305 = vsel %vm1331, %v2304, %v2292
        %v2307 = vunpack.c.l.s4 1983009808
        %v2308 = vunpack.c.0.s8 %v2307
        %v2309 = vperm.slane %v2305, %v2308
        %v2310 = vsel %vm1331, %v2297, %v2286
        %v2312 = vunpack.c.l.s4 1983009808
        %v2313 = vunpack.c.0.s8 %v2312
        %v2314 = vperm.slane %v2310, %v2313
        %v2315 = vrot.slane %v2298, 4
        %v2316 = vsel %vm1331, %v2315, %v2296
        %v2318 = vunpack.c.l.s4 1983009808
        %v2319 = vunpack.c.0.s8 %v2318
        %v2320 = vperm.slane %v2316, %v2319
        %v2321 = vrot.slane %v2309, 4
        %v2322 = vsel %vm1331, %v2321, %v2303
        %v2323 = vrot.slane %v2303, 4
        %v2324 = vsel %vm1331, %v2309, %v2323
        %v2326 = vunpack.c.l.s4 1934713408
        %v2327 = vunpack.c.0.s8 %v2326
        %v2328 = vperm.slane %v2322, %v2327
        %v2330 = vunpack.c.l.s4 1934713408
        %v2331 = vunpack.c.0.s8 %v2330
        %v2332 = vperm.slane %v2324, %v2331
        %v2333 = vrot.slane %v2320, 4
        %v2334 = vsel %vm1331, %v2333, %v2314
        %v2335 = vrot.slane %v2314, 4
        %v2336 = vsel %vm1331, %v2320, %v2335
        %v2338 = vunpack.c.l.s4 1934713408
        %v2339 = vunpack.c.0.s8 %v2338
        %v2340 = vperm.slane %v2334, %v2339
        %v2342 = vunpack.c.l.s4 1934713408
        %v2343 = vunpack.c.0.s8 %v2342
        %v2344 = vperm.slane %v2336, %v2343
        %v2345 = vrot.slane %v2340, 4
        %v2346 = vsel %vm1331, %v2345, %v2328
        %v2347 = vrot.slane %v2328, 4
        %v2348 = vsel %vm1331, %v2340, %v2347
        %v2349 = vrot.slane %v2344, 4
        %v2350 = vsel %vm1331, %v2349, %v2332
        %v2351 = vrot.slane %v2332, 4
        %v2352 = vsel %vm1331, %v2344, %v2351
        %v2353 = vpack.c.bf16 %v2346, %v2346
        %v2354 = vpack.c.bf16 %v2348, %v2348
        %v2355 = vpack.c.bf16 %v2350, %v2350
        %v2356 = vpack.c.bf16 %v2352, %v2352
        %2358 = vrot.lane.b32.xlu0 %v2230, 120
        %v2359 = vpop.permute.xlu0 %2358
        %2361 = vrot.lane.b32.xlu0 %v2230, 112
        %v2362 = vpop.permute.xlu0 %2361
        %2364 = vrot.lane.b32.xlu0 %v2230, 104
        %v2365 = vpop.permute.xlu0 %2364
        %v2367 = vrot.slane %v2362, 4
        %v2368 = vsel %vm1331, %v2367, %v2230
        %v2369 = vrot.slane %v2230, 4
        %v2370 = vsel %vm1331, %v2362, %v2369
        %v2372 = vunpack.c.l.s4 1983009808
        %v2373 = vunpack.c.0.s8 %v2372
        %v2374 = vperm.slane %v2368, %v2373
        %v2376 = vunpack.c.l.s4 1983009808
        %v2377 = vunpack.c.0.s8 %v2376
        %v2378 = vperm.slane %v2370, %v2377
        %v2379 = vrot.slane %v2365, 4
        %v2380 = vsel %vm1331, %v2379, %v2359
        %v2381 = vrot.slane %v2359, 4
        %v2382 = vsel %vm1331, %v2365, %v2381
        %v2384 = vunpack.c.l.s4 1983009808
        %v2385 = vunpack.c.0.s8 %v2384
        %v2386 = vperm.slane %v2380, %v2385
        %v2388 = vunpack.c.l.s4 1983009808
        %v2389 = vunpack.c.0.s8 %v2388
        %v2390 = vperm.slane %v2382, %v2389
        %v2391 = vrot.slane %v2386, 4
        %v2392 = vsel %vm1331, %v2391, %v2374
        %v2393 = vrot.slane %v2374, 4
        %v2394 = vsel %vm1331, %v2386, %v2393
        %v2396 = vunpack.c.l.s4 1934713408
        %v2397 = vunpack.c.0.s8 %v2396
        %v2398 = vperm.slane %v2392, %v2397
        %v2400 = vunpack.c.l.s4 1934713408
        %v2401 = vunpack.c.0.s8 %v2400
        %v2402 = vperm.slane %v2394, %v2401
        %v2403 = vrot.slane %v2390, 4
        %v2404 = vsel %vm1331, %v2403, %v2378
        %v2405 = vrot.slane %v2378, 4
        %v2406 = vsel %vm1331, %v2390, %v2405
        %v2408 = vunpack.c.l.s4 1934713408
        %v2409 = vunpack.c.0.s8 %v2408
        %v2410 = vperm.slane %v2404, %v2409
        %v2412 = vunpack.c.l.s4 1934713408
        %v2413 = vunpack.c.0.s8 %v2412
        %v2414 = vperm.slane %v2406, %v2413
        %v2415 = vrot.slane %v2398, 4
        %v2416 = vsel %vm1331, 0.0, %v2415
        %v2417 = vrot.slane %v2402, 4
        %v2418 = vsel %vm1331, 0.0, %v2417
        %v2419 = vrot.slane %v2410, 4
        %v2420 = vsel %vm1331, 0.0, %v2419
        %v2421 = vrot.slane %v2414, 4
        %v2422 = vsel %vm1331, 0.0, %v2421
        %v2423 = vsel %vm1331, %v2417, %v2398
        %v2425 = vunpack.c.l.s4 1983009808
        %v2426 = vunpack.c.0.s8 %v2425
        %v2427 = vperm.slane %v2423, %v2426
        %v2428 = vrot.slane %v2418, 4
        %v2429 = vsel %vm1331, %v2428, %v2416
        %v2431 = vunpack.c.l.s4 1983009808
        %v2432 = vunpack.c.0.s8 %v2431
        %v2433 = vperm.slane %v2429, %v2432
        %v2434 = vsel %vm1331, %v2421, %v2410
        %v2436 = vunpack.c.l.s4 1983009808
        %v2437 = vunpack.c.0.s8 %v2436
        %v2438 = vperm.slane %v2434, %v2437
        %v2439 = vrot.slane %v2422, 4
        %v2440 = vsel %vm1331, %v2439, %v2420
        %v2442 = vunpack.c.l.s4 1983009808
        %v2443 = vunpack.c.0.s8 %v2442
        %v2444 = vperm.slane %v2440, %v2443
        %v2445 = vrot.slane %v2433, 4
        %v2446 = vsel %vm1331, %v2445, %v2427
        %v2447 = vrot.slane %v2427, 4
        %v2448 = vsel %vm1331, %v2433, %v2447
        %v2450 = vunpack.c.l.s4 1934713408
        %v2451 = vunpack.c.0.s8 %v2450
        %v2452 = vperm.slane %v2446, %v2451
        %v2454 = vunpack.c.l.s4 1934713408
        %v2455 = vunpack.c.0.s8 %v2454
        %v2456 = vperm.slane %v2448, %v2455
        %v2457 = vrot.slane %v2444, 4
        %v2458 = vsel %vm1331, %v2457, %v2438
        %v2459 = vrot.slane %v2438, 4
        %v2460 = vsel %vm1331, %v2444, %v2459
        %v2462 = vunpack.c.l.s4 1934713408
        %v2463 = vunpack.c.0.s8 %v2462
        %v2464 = vperm.slane %v2458, %v2463
        %v2466 = vunpack.c.l.s4 1934713408
        %v2467 = vunpack.c.0.s8 %v2466
        %v2468 = vperm.slane %v2460, %v2467
        %v2469 = vrot.slane %v2464, 4
        %v2470 = vsel %vm1331, %v2469, %v2452
        %v2471 = vrot.slane %v2452, 4
        %v2472 = vsel %vm1331, %v2464, %v2471
        %v2473 = vrot.slane %v2468, 4
        %v2474 = vsel %vm1331, %v2473, %v2456
        %v2475 = vrot.slane %v2456, 4
        %v2476 = vsel %vm1331, %v2468, %v2475
        %v2477 = vpack.c.bf16 %v2470, %v2470
        %v2478 = vpack.c.bf16 %v2472, %v2472
        %v2479 = vpack.c.bf16 %v2474, %v2474
        %v2480 = vpack.c.bf16 %v2476, %v2476
        %2481 = vrot.lane.b32.xlu0 %v2230, 96
        %v2482 = vpop.permute.xlu0 %2481
        %2483 = vrot.lane.b32.xlu0 %v2359, 96
        %v2484 = vpop.permute.xlu0 %2483
        %2485 = vrot.lane.b32.xlu0 %v2362, 96
        %v2486 = vpop.permute.xlu0 %2485
        %2487 = vrot.lane.b32.xlu0 %v2365, 96
        %v2488 = vpop.permute.xlu0 %2487
        %v2493 = vrot.slane %v2486, 4
        %v2494 = vsel %vm1331, %v2493, %v2482
        %v2495 = vrot.slane %v2482, 4
        %v2496 = vsel %vm1331, %v2486, %v2495
        %v2498 = vunpack.c.l.s4 1983009808
        %v2499 = vunpack.c.0.s8 %v2498
        %v2500 = vperm.slane %v2494, %v2499
        %v2502 = vunpack.c.l.s4 1983009808
        %v2503 = vunpack.c.0.s8 %v2502
        %v2504 = vperm.slane %v2496, %v2503
        %v2505 = vrot.slane %v2488, 4
        %v2506 = vsel %vm1331, %v2505, %v2484
        %v2507 = vrot.slane %v2484, 4
        %v2508 = vsel %vm1331, %v2488, %v2507
        %v2510 = vunpack.c.l.s4 1983009808
        %v2511 = vunpack.c.0.s8 %v2510
        %v2512 = vperm.slane %v2506, %v2511
        %v2514 = vunpack.c.l.s4 1983009808
        %v2515 = vunpack.c.0.s8 %v2514
        %v2516 = vperm.slane %v2508, %v2515
        %v2517 = vrot.slane %v2512, 4
        %v2518 = vsel %vm1331, %v2517, %v2500
        %v2519 = vrot.slane %v2500, 4
        %v2520 = vsel %vm1331, %v2512, %v2519
        %v2522 = vunpack.c.l.s4 1934713408
        %v2523 = vunpack.c.0.s8 %v2522
        %v2524 = vperm.slane %v2518, %v2523
        %v2526 = vunpack.c.l.s4 1934713408
        %v2527 = vunpack.c.0.s8 %v2526
        %v2528 = vperm.slane %v2520, %v2527
        %v2529 = vrot.slane %v2516, 4
        %v2530 = vsel %vm1331, %v2529, %v2504
        %v2531 = vrot.slane %v2504, 4
        %v2532 = vsel %vm1331, %v2516, %v2531
        %v2534 = vunpack.c.l.s4 1934713408
        %v2535 = vunpack.c.0.s8 %v2534
        %v2536 = vperm.slane %v2530, %v2535
        %v2538 = vunpack.c.l.s4 1934713408
        %v2539 = vunpack.c.0.s8 %v2538
        %v2540 = vperm.slane %v2532, %v2539
        %v2541 = vrot.slane %v2524, 4
        %v2542 = vsel %vm1331, 0.0, %v2541
        %v2543 = vrot.slane %v2528, 4
        %v2544 = vsel %vm1331, 0.0, %v2543
        %v2545 = vrot.slane %v2536, 4
        %v2546 = vsel %vm1331, 0.0, %v2545
        %v2547 = vrot.slane %v2540, 4
        %v2548 = vsel %vm1331, 0.0, %v2547
        %v2549 = vsel %vm1331, %v2543, %v2524
        %v2551 = vunpack.c.l.s4 1983009808
        %v2552 = vunpack.c.0.s8 %v2551
        %v2553 = vperm.slane %v2549, %v2552
        %v2554 = vrot.slane %v2544, 4
        %v2555 = vsel %vm1331, %v2554, %v2542
        %v2557 = vunpack.c.l.s4 1983009808
        %v2558 = vunpack.c.0.s8 %v2557
        %v2559 = vperm.slane %v2555, %v2558
        %v2560 = vsel %vm1331, %v2547, %v2536
        %v2562 = vunpack.c.l.s4 1983009808
        %v2563 = vunpack.c.0.s8 %v2562
        %v2564 = vperm.slane %v2560, %v2563
        %v2565 = vrot.slane %v2548, 4
        %v2566 = vsel %vm1331, %v2565, %v2546
        %v2568 = vunpack.c.l.s4 1983009808
        %v2569 = vunpack.c.0.s8 %v2568
        %v2570 = vperm.slane %v2566, %v2569
        %v2571 = vrot.slane %v2559, 4
        %v2572 = vsel %vm1331, %v2571, %v2553
        %v2573 = vrot.slane %v2553, 4
        %v2574 = vsel %vm1331, %v2559, %v2573
        %v2576 = vunpack.c.l.s4 1934713408
        %v2577 = vunpack.c.0.s8 %v2576
        %v2578 = vperm.slane %v2572, %v2577
        %v2580 = vunpack.c.l.s4 1934713408
        %v2581 = vunpack.c.0.s8 %v2580
        %v2582 = vperm.slane %v2574, %v2581
        %v2583 = vrot.slane %v2570, 4
        %v2584 = vsel %vm1331, %v2583, %v2564
        %v2585 = vrot.slane %v2564, 4
        %v2586 = vsel %vm1331, %v2570, %v2585
        %v2588 = vunpack.c.l.s4 1934713408
        %v2589 = vunpack.c.0.s8 %v2588
        %v2590 = vperm.slane %v2584, %v2589
        %v2592 = vunpack.c.l.s4 1934713408
        %v2593 = vunpack.c.0.s8 %v2592
        %v2594 = vperm.slane %v2586, %v2593
        %v2595 = vrot.slane %v2590, 4
        %v2596 = vsel %vm1331, %v2595, %v2578
        %v2597 = vrot.slane %v2578, 4
        %v2598 = vsel %vm1331, %v2590, %v2597
        %v2599 = vrot.slane %v2594, 4
        %v2600 = vsel %vm1331, %v2599, %v2582
        %v2601 = vrot.slane %v2582, 4
        %v2602 = vsel %vm1331, %v2594, %v2601
        %v2603 = vpack.c.bf16 %v2596, %v2596
        %v2604 = vpack.c.bf16 %v2598, %v2598
        %v2605 = vpack.c.bf16 %v2600, %v2600
        %v2606 = vpack.c.bf16 %v2602, %v2602
        %v2608 = vsel %vm1697, %v2353, 0
        %v2611 = vsel %vm1697, %v2477, 0
        %2613 = vmatpush.bf16.xpose.msra.mxu0 0
        %2614 = vmatpush.bf16.xpose.msra.mxu0 0
        %2615 = vmatpush.bf16.xpose.msra.mxu0 0
        %2616 = vmatpush.bf16.xpose.msra.mxu0 0
        %2617 = vmatpush.bf16.xpose.msra.mxu0 0
        %2618 = vmatpush.bf16.xpose.msra.mxu0 0
        %2619 = vmatpush.bf16.xpose.msra.mxu0 0
        %2620 = vmatpush.bf16.xpose.msra.mxu0 %v2611
        %2621 = vmatmul.bf16.gmra.mxu0 %v2608
        %v2622 = vpop.f32.mrf.mxu0
        %v2623 = vadd.f32 0.0, %v2622
        %v2624 = vpop.f32.mrf.mxu0
        %2625 = vdwg.mxu0
        %v2627 = vsel %vm1697, %v2354, 0
        %v2630 = vsel %vm1697, %v2478, 0
        %2632 = vmatpush.bf16.xpose.msra.mxu0 0
        %2633 = vmatpush.bf16.xpose.msra.mxu0 0
        %2634 = vmatpush.bf16.xpose.msra.mxu0 0
        %2635 = vmatpush.bf16.xpose.msra.mxu0 0
        %2636 = vmatpush.bf16.xpose.msra.mxu0 0
        %2637 = vmatpush.bf16.xpose.msra.mxu0 0
        %2638 = vmatpush.bf16.xpose.msra.mxu0 0
        %2639 = vmatpush.bf16.xpose.msra.mxu0 %v2630
        %2640 = vmatmul.bf16.gmra.mxu0 %v2627
        %v2641 = vpop.f32.mrf.mxu0
        %v2642 = vadd.f32 0.0, %v2641
        %v2643 = vpop.f32.mrf.mxu0
        %2644 = vdwg.mxu0
        %v2646 = vsel %vm1697, %v2355, 0
        %v2649 = vsel %vm1697, %v2479, 0
        %2651 = vmatpush.bf16.xpose.msra.mxu0 0
        %2652 = vmatpush.bf16.xpose.msra.mxu0 0
        %2653 = vmatpush.bf16.xpose.msra.mxu0 0
        %2654 = vmatpush.bf16.xpose.msra.mxu0 0
        %2655 = vmatpush.bf16.xpose.msra.mxu0 0
        %2656 = vmatpush.bf16.xpose.msra.mxu0 0
        %2657 = vmatpush.bf16.xpose.msra.mxu0 0
        %2658 = vmatpush.bf16.xpose.msra.mxu0 %v2649
        %2659 = vmatmul.bf16.gmra.mxu0 %v2646
        %v2660 = vpop.f32.mrf.mxu0
        %v2661 = vadd.f32 0.0, %v2660
        %v2662 = vpop.f32.mrf.mxu0
        %2663 = vdwg.mxu0
        %v2665 = vsel %vm1697, %v2356, 0
        %v2668 = vsel %vm1697, %v2480, 0
        %2670 = vmatpush.bf16.xpose.msra.mxu0 0
        %2671 = vmatpush.bf16.xpose.msra.mxu0 0
        %2672 = vmatpush.bf16.xpose.msra.mxu0 0
        %2673 = vmatpush.bf16.xpose.msra.mxu0 0
        %2674 = vmatpush.bf16.xpose.msra.mxu0 0
        %2675 = vmatpush.bf16.xpose.msra.mxu0 0
        %2676 = vmatpush.bf16.xpose.msra.mxu0 0
        %2677 = vmatpush.bf16.xpose.msra.mxu0 %v2668
        %2678 = vmatmul.bf16.gmra.mxu0 %v2665
        %v2679 = vpop.f32.mrf.mxu0
        %v2680 = vadd.f32 0.0, %v2679
        %v2681 = vpop.f32.mrf.mxu0
        %2682 = vdwg.mxu0
        %v2683 = vmul.f32 %v2623, 0.35355338
        %v2684 = vmul.f32 %v2642, 0.35355338
        %v2685 = vmul.f32 %v2661, 0.35355338
        %v2686 = vmul.f32 %v2680, 0.35355338
        %v2687 = vsel %vm1697, %v2683, -inf
        %2688 = vmax.xlane.f32.xlu0 %v2687
        %v2689 = vpop.xlane.xlu0 %2688
        %v2690 = vsel %vm1697, %v2684, -inf
        %2691 = vmax.xlane.f32.xlu0 %v2690
        %v2692 = vpop.xlane.xlu0 %2691
        %v2693 = vsel %vm1697, %v2685, -inf
        %2694 = vmax.xlane.f32.xlu0 %v2693
        %v2695 = vpop.xlane.xlu0 %2694
        %v2696 = vsel %vm1697, %v2686, -inf
        %2697 = vmax.xlane.f32.xlu0 %v2696
        %v2698 = vpop.xlane.xlu0 %2697
        %v2699 = vsub.f32 %v2683, %v2689
        %v2700 = vsub.f32 %v2684, %v2692
        %v2701 = vsub.f32 %v2685, %v2695
        %v2702 = vsub.f32 %v2686, %v2698
        %v2703 = vmul.f32 %v2699, 1.442695
        %v2704 = vpow.pop %v2703
        %v2705 = vmul.f32 %v2700, 1.442695
        %v2706 = vpow.pop %v2705
        %v2707 = vmul.f32 %v2701, 1.442695
        %v2708 = vpow.pop %v2707
        %v2709 = vmul.f32 %v2702, 1.442695
        %v2710 = vpow.pop %v2709
        %v2711 = vsel %vm1697, %v2704, 0.0
        %2712 = vadd.xlane.f32.xlu0 %v2711
        %v2713 = vpop.xlane.xlu0 %2712
        %v2714 = vsel %vm1697, %v2706, 0.0
        %2715 = vadd.xlane.f32.xlu0 %v2714
        %v2716 = vpop.xlane.xlu0 %2715
        %v2717 = vsel %vm1697, %v2708, 0.0
        %2718 = vadd.xlane.f32.xlu0 %v2717
        %v2719 = vpop.xlane.xlu0 %2718
        %v2720 = vsel %vm1697, %v2710, 0.0
        %2721 = vadd.xlane.f32.xlu0 %v2720
        %v2722 = vpop.xlane.xlu0 %2721
        %v2723 = vrcp.pop %v2713
        %v2724 = vmul.f32 %v2713, %v2723
        %v2725 = vsub.f32 1.0, %v2724
        %v2726 = vmul.f32 %v2723, %v2725
        %v2727 = vadd.f32 %v2723, %v2726
        %vm2728 = vweird.f32 %v2713
        %vm2729 = vweird.f32 %v2723
        %vm2730 = vmor %vm2728, %vm2729
        %v2731 = vsel %vm2730, %v2723, %v2727
        %v2732 = vand.u32 2147483647, %v2713
        %vm2733 = vcmp.eq.f32.partialorder %v2732, 8.507059e+37
        %v2734 = vand.u32 %v2713, 2147483648
        %v2735 = vor.u32 1.1754944e-38, %v2734
        %v2736 = vsel %vm2733, %v2735, %v2731
        %v2737 = vmul.f32 %v2704, %v2736
        %v2738 = vrcp.pop %v2716
        %v2739 = vmul.f32 %v2716, %v2738
        %v2740 = vsub.f32 1.0, %v2739
        %v2741 = vmul.f32 %v2738, %v2740
        %v2742 = vadd.f32 %v2738, %v2741
        %vm2743 = vweird.f32 %v2716
        %vm2744 = vweird.f32 %v2738
        %vm2745 = vmor %vm2743, %vm2744
        %v2746 = vsel %vm2745, %v2738, %v2742
        %v2747 = vand.u32 2147483647, %v2716
        %vm2748 = vcmp.eq.f32.partialorder %v2747, 8.507059e+37
        %v2749 = vand.u32 %v2716, 2147483648
        %v2750 = vor.u32 1.1754944e-38, %v2749
        %v2751 = vsel %vm2748, %v2750, %v2746
        %v2752 = vmul.f32 %v2706, %v2751
        %v2753 = vrcp.pop %v2719
        %v2754 = vmul.f32 %v2719, %v2753
        %v2755 = vsub.f32 1.0, %v2754
        %v2756 = vmul.f32 %v2753, %v2755
        %v2757 = vadd.f32 %v2753, %v2756
        %vm2758 = vweird.f32 %v2719
        %vm2759 = vweird.f32 %v2753
        %vm2760 = vmor %vm2758, %vm2759
        %v2761 = vsel %vm2760, %v2753, %v2757
        %v2762 = vand.u32 2147483647, %v2719
        %vm2763 = vcmp.eq.f32.partialorder %v2762, 8.507059e+37
        %v2764 = vand.u32 %v2719, 2147483648
        %v2765 = vor.u32 1.1754944e-38, %v2764
        %v2766 = vsel %vm2763, %v2765, %v2761
        %v2767 = vmul.f32 %v2708, %v2766
        %v2768 = vrcp.pop %v2722
        %v2769 = vmul.f32 %v2722, %v2768
        %v2770 = vsub.f32 1.0, %v2769
        %v2771 = vmul.f32 %v2768, %v2770
        %v2772 = vadd.f32 %v2768, %v2771
        %vm2773 = vweird.f32 %v2722
        %vm2774 = vweird.f32 %v2768
        %vm2775 = vmor %vm2773, %vm2774
        %v2776 = vsel %vm2775, %v2768, %v2772
        %v2777 = vand.u32 2147483647, %v2722
        %vm2778 = vcmp.eq.f32.partialorder %v2777, 8.507059e+37
        %v2779 = vand.u32 %v2722, 2147483648
        %v2780 = vor.u32 1.1754944e-38, %v2779
        %v2781 = vsel %vm2778, %v2780, %v2776
        %v2782 = vmul.f32 %v2710, %v2781
        %v2783 = vpack.c.bf16 %v2737, %v2737
        %v2784 = vpack.c.bf16 %v2752, %v2752
        %v2785 = vpack.c.bf16 %v2767, %v2767
        %v2786 = vpack.c.bf16 %v2782, %v2782
        %v2788 = vsel %vm1697, %v2783, 0
        %v2791 = vsel %vm1881, %v2603, 0
        %2793 = vmatpush.bf16.msra.mxu0 0
        %2794 = vmatpush.bf16.msra.mxu0 0
        %2795 = vmatpush.bf16.msra.mxu0 0
        %2796 = vmatpush.bf16.msra.mxu0 0
        %2797 = vmatpush.bf16.msra.mxu0 0
        %2798 = vmatpush.bf16.msra.mxu0 0
        %2799 = vmatpush.bf16.msra.mxu0 0
        %2800 = vmatpush.bf16.msra.mxu0 %v2791
        %2801 = vmatmul.bf16.gmra.mxu0 %v2788
        %v2802 = vpop.f32.mrf.mxu0
        %v2803 = vadd.f32 0.0, %v2802
        %v2804 = vpop.f32.mrf.mxu0
        %2805 = vdwg.mxu0
        %v2807 = vsel %vm1697, %v2784, 0
        %v2810 = vsel %vm1881, %v2604, 0
        %2812 = vmatpush.bf16.msra.mxu0 0
        %2813 = vmatpush.bf16.msra.mxu0 0
        %2814 = vmatpush.bf16.msra.mxu0 0
        %2815 = vmatpush.bf16.msra.mxu0 0
        %2816 = vmatpush.bf16.msra.mxu0 0
        %2817 = vmatpush.bf16.msra.mxu0 0
        %2818 = vmatpush.bf16.msra.mxu0 0
        %2819 = vmatpush.bf16.msra.mxu0 %v2810
        %2820 = vmatmul.bf16.gmra.mxu0 %v2807
        %v2821 = vpop.f32.mrf.mxu0
        %v2822 = vadd.f32 0.0, %v2821
        %v2823 = vpop.f32.mrf.mxu0
        %2824 = vdwg.mxu0
        %v2826 = vsel %vm1697, %v2785, 0
        %v2829 = vsel %vm1881, %v2605, 0
        %2831 = vmatpush.bf16.msra.mxu0 0
        %2832 = vmatpush.bf16.msra.mxu0 0
        %2833 = vmatpush.bf16.msra.mxu0 0
        %2834 = vmatpush.bf16.msra.mxu0 0
        %2835 = vmatpush.bf16.msra.mxu0 0
        %2836 = vmatpush.bf16.msra.mxu0 0
        %2837 = vmatpush.bf16.msra.mxu0 0
        %2838 = vmatpush.bf16.msra.mxu0 %v2829
        %2839 = vmatmul.bf16.gmra.mxu0 %v2826
        %v2840 = vpop.f32.mrf.mxu0
        %v2841 = vadd.f32 0.0, %v2840
        %v2842 = vpop.f32.mrf.mxu0
        %2843 = vdwg.mxu0
        %v2845 = vsel %vm1697, %v2786, 0
        %v2848 = vsel %vm1881, %v2606, 0
        %2850 = vmatpush.bf16.msra.mxu0 0
        %2851 = vmatpush.bf16.msra.mxu0 0
        %2852 = vmatpush.bf16.msra.mxu0 0
        %2853 = vmatpush.bf16.msra.mxu0 0
        %2854 = vmatpush.bf16.msra.mxu0 0
        %2855 = vmatpush.bf16.msra.mxu0 0
        %2856 = vmatpush.bf16.msra.mxu0 0
        %2857 = vmatpush.bf16.msra.mxu0 %v2848
        %2858 = vmatmul.bf16.gmra.mxu0 %v2845
        %v2859 = vpop.f32.mrf.mxu0
        %v2860 = vadd.f32 0.0, %v2859
        %v2861 = vpop.f32.mrf.mxu0
        %2862 = vdwg.mxu0
        %v2863 = vrot.slane %v2841, 4
        %v2864 = vsel %vm1331, %v2863, %v2803
        %v2865 = vrot.slane %v2803, 4
        %v2866 = vsel %vm1331, %v2841, %v2865
        %v2868 = vunpack.c.l.s4 1983009808
        %v2869 = vunpack.c.0.s8 %v2868
        %v2870 = vperm.slane %v2864, %v2869
        %v2872 = vunpack.c.l.s4 1983009808
        %v2873 = vunpack.c.0.s8 %v2872
        %v2874 = vperm.slane %v2866, %v2873
        %v2875 = vrot.slane %v2860, 4
        %v2876 = vsel %vm1331, %v2875, %v2822
        %v2877 = vrot.slane %v2822, 4
        %v2878 = vsel %vm1331, %v2860, %v2877
        %v2880 = vunpack.c.l.s4 1983009808
        %v2881 = vunpack.c.0.s8 %v2880
        %v2882 = vperm.slane %v2876, %v2881
        %v2884 = vunpack.c.l.s4 1983009808
        %v2885 = vunpack.c.0.s8 %v2884
        %v2886 = vperm.slane %v2878, %v2885
        %v2887 = vrot.slane %v2882, 4
        %v2888 = vsel %vm1331, %v2887, %v2870
        %v2889 = vrot.slane %v2870, 4
        %v2890 = vsel %vm1331, %v2882, %v2889
        %v2892 = vunpack.c.l.s4 1934713408
        %v2893 = vunpack.c.0.s8 %v2892
        %v2894 = vperm.slane %v2888, %v2893
        %v2896 = vunpack.c.l.s4 1934713408
        %v2897 = vunpack.c.0.s8 %v2896
        %v2898 = vperm.slane %v2890, %v2897
        %v2899 = vrot.slane %v2886, 4
        %v2900 = vsel %vm1331, %v2899, %v2874
        %v2901 = vrot.slane %v2874, 4
        %v2902 = vsel %vm1331, %v2886, %v2901
        %v2904 = vunpack.c.l.s4 1934713408
        %v2905 = vunpack.c.0.s8 %v2904
        %v2906 = vperm.slane %v2900, %v2905
        %v2908 = vunpack.c.l.s4 1934713408
        %v2909 = vunpack.c.0.s8 %v2908
        %v2910 = vperm.slane %v2902, %v2909
        %v2911 = vrot.slane %v2894, 4
        %v2912 = vsel %vm1331, 0.0, %v2911
        %v2913 = vrot.slane %v2898, 4
        %v2914 = vsel %vm1331, 0.0, %v2913
        %v2915 = vrot.slane %v2906, 4
        %v2916 = vsel %vm1331, 0.0, %v2915
        %v2917 = vrot.slane %v2910, 4
        %v2918 = vsel %vm1331, 0.0, %v2917
        %v2919 = vsel %vm1331, %v2913, %v2894
        %v2921 = vunpack.c.l.s4 1983009808
        %v2922 = vunpack.c.0.s8 %v2921
        %v2923 = vperm.slane %v2919, %v2922
        %v2924 = vrot.slane %v2914, 4
        %v2925 = vsel %vm1331, %v2924, %v2912
        %v2927 = vunpack.c.l.s4 1983009808
        %v2928 = vunpack.c.0.s8 %v2927
        %v2929 = vperm.slane %v2925, %v2928
        %v2930 = vsel %vm1331, %v2917, %v2906
        %v2932 = vunpack.c.l.s4 1983009808
        %v2933 = vunpack.c.0.s8 %v2932
        %v2934 = vperm.slane %v2930, %v2933
        %v2935 = vrot.slane %v2918, 4
        %v2936 = vsel %vm1331, %v2935, %v2916
        %v2938 = vunpack.c.l.s4 1983009808
        %v2939 = vunpack.c.0.s8 %v2938
        %v2940 = vperm.slane %v2936, %v2939
        %v2941 = vrot.slane %v2929, 4
        %v2942 = vsel %vm1331, %v2941, %v2923
        %v2943 = vrot.slane %v2923, 4
        %v2944 = vsel %vm1331, %v2929, %v2943
        %v2946 = vunpack.c.l.s4 1934713408
        %v2947 = vunpack.c.0.s8 %v2946
        %v2948 = vperm.slane %v2942, %v2947
        %v2950 = vunpack.c.l.s4 1934713408
        %v2951 = vunpack.c.0.s8 %v2950
        %v2952 = vperm.slane %v2944, %v2951
        %v2953 = vrot.slane %v2940, 4
        %v2954 = vsel %vm1331, %v2953, %v2934
        %v2955 = vrot.slane %v2934, 4
        %v2956 = vsel %vm1331, %v2940, %v2955
        %v2958 = vunpack.c.l.s4 1934713408
        %v2959 = vunpack.c.0.s8 %v2958
        %v2960 = vperm.slane %v2954, %v2959
        %v2962 = vunpack.c.l.s4 1934713408
        %v2963 = vunpack.c.0.s8 %v2962
        %v2964 = vperm.slane %v2956, %v2963
        %v2965 = vrot.slane %v2960, 4
        %v2966 = vsel %vm1331, %v2965, %v2948
        %v2967 = vrot.slane %v2948, 4
        %v2968 = vsel %vm1331, %v2960, %v2967
        %v2969 = vrot.slane %v2964, 4
        %v2970 = vsel %vm1331, %v2969, %v2952
        %v2971 = vrot.slane %v2952, 4
        %v2972 = vsel %vm1331, %v2964, %v2971
        %2974 = vrot.lane.b32.xlu0 %v2968, 8
        %v2975 = vpop.permute.xlu0 %2974
        %2978 = vrot.lane.b32.xlu0 %v2970, 16
        %v2979 = vpop.permute.xlu0 %2978
        %2982 = vrot.lane.b32.xlu0 %v2972, 24
        %v2983 = vpop.permute.xlu0 %2982
        %v2985 = vsel %vm1697, %v2966, %v2975
        %v2986 = vsel %vm2078, %v2985, %v2979
        %v2987 = vsel %vm2080, %v2986, %v2983
        %v2988 = vpack.c.bf16 %v2987, %v2987
        %v2989 = vld [vmem:[%s1031] sm:$0xf]
        %v2990 = vld [vmem:[%s1031 + $0x4] sm:$0xf]
        %v2991 = vld [vmem:[%s1031 + $0x8] sm:$0xf]
        %v2992 = vld [vmem:[%s1031 + $0xc] sm:$0xf]
        %v2993 = vld [vmem:[%s1040] sm:$0x1]
        %v2995 = vperm.slane %v2993, 0
        %v3001 = vunpack.c.l.b16 %v2989
        %v3002 = vunpack.c.l.b16 %v2990
        %v3003 = vunpack.c.l.b16 %v2991
        %v3004 = vunpack.c.l.b16 %v2992
        %v3005 = vpack.c.b16 %v3002, %v3001
        %v3006 = vpack.c.b16 %v3004, %v3003
        %v3010 = vsel %vm1303, %v2988, 0
        %3012 = vmatpush.bf16.msra.mxu0 0
        %3013 = vmatpush.bf16.msra.mxu0 0
        %3014 = vmatpush.bf16.msra.mxu0 0
        %3015 = vmatpush.bf16.msra.mxu0 0
        %3016 = vmatpush.bf16.msra.mxu0 0
        %3017 = vmatpush.bf16.msra.mxu0 0
        %3018 = vmatpush.bf16.msra.mxu0 %v3006
        %3019 = vmatpush.bf16.msra.mxu0 %v3005
        %3020 = vmatmul.bf16.gmra.mxu0 %v3010
        %v3021 = vpop.f32.mrf.mxu0
        %v3022 = vadd.f32 %v2995, %v3021
        %v3023 = vpop.f32.mrf.mxu0
        %3024 = vdwg.mxu0
        %v3025 = vadd.f32 %v2158, %v3022
        %v3026 = vld [vmem:[%s1263] sm:$0x1]
        %v3027 = vld [vmem:[%s1049] sm:$0x1]
        %v3028 = vsel %vm1303, %v3025, 0.0
        %3029 = vadd.xlane.f32.xlu0 %v3028
        %v3030 = vpop.xlane.xlu0 %3029
        %v3031 = vmul.f32 %v3030, %v2131
        %v3032 = vsub.f32 %v3025, %v3031
        %v3033 = vmul.f32 %v3032, %v3032
        %v3034 = vsel %vm1303, %v3033, 0.0
        %3035 = vadd.xlane.f32.xlu0 %v3034
        %v3036 = vpop.xlane.xlu0 %3035
        %v3037 = vmul.f32 %v3036, %v2131
        %v3038 = vadd.f32 %v3037, 1e-05
        %v3039 = vrsqrt.pop %v3038
        %v3040 = vmul.f32 %v3039, %v3038
        %v3041 = vmul.f32 %v3040, %v3039
        %v3042 = vmul.f32 0.5, %v3041
        %v3043 = vsub.f32 1.5, %v3042
        %v3044 = vmul.f32 %v3039, %v3043
        %vm3045 = vweird.f32 %v3038
        %vm3046 = vweird.f32 %v3039
        %vm3047 = vmor %vm3045, %vm3046
        %v3048 = vsel %vm3047, %v3039, %v3044
        %v3049 = vmul.f32 %v3032, %v3048
        %v3051 = vperm.slane %v3026, 0
        %v3053 = vmul.f32 %v3049, %v3051
        %v3055 = vperm.slane %v3027, 0
        %v3057 = vadd.f32 %v3053, %v3055
        %v3058 = vpack.c.bf16 %v3057, %v3057
        %v3059 = vld [vmem:[%s1059] sm:$0xf]
        %v3060 = vld [vmem:[%s1059 + $0x4] sm:$0xf]
        %v3061 = vld [vmem:[%s1059 + $0x8] sm:$0xf]
        %v3062 = vld [vmem:[%s1059 + $0xc] sm:$0xf]
        %v3063 = vld [vmem:[%s1068] sm:$0x1]
        %v3065 = vperm.slane %v3063, 0
        %v3071 = vunpack.c.l.b16 %v3059
        %v3072 = vunpack.c.l.b16 %v3060
        %v3073 = vunpack.c.l.b16 %v3061
        %v3074 = vunpack.c.l.b16 %v3062
        %v3075 = vpack.c.b16 %v3072, %v3071
        %v3076 = vpack.c.b16 %v3074, %v3073
        %v3080 = vsel %vm1303, %v3058, 0
        %3082 = vmatpush.bf16.msra.mxu0 0
        %3083 = vmatpush.bf16.msra.mxu0 0
        %3084 = vmatpush.bf16.msra.mxu0 0
        %3085 = vmatpush.bf16.msra.mxu0 0
        %3086 = vmatpush.bf16.msra.mxu0 0
        %3087 = vmatpush.bf16.msra.mxu0 0
        %3088 = vmatpush.bf16.msra.mxu0 %v3076
        %3089 = vmatpush.bf16.msra.mxu0 %v3075
        %3090 = vmatmul.bf16.gmra.mxu0 %v3080
        %v3091 = vpop.f32.mrf.mxu0
        %v3092 = vadd.f32 %v3065, %v3091
        %v3093 = vpop.f32.mrf.mxu0
        %3094 = vdwg.mxu0
        %v3095 = vmax.f32 %v3092, 0.0
        %v3096 = vpack.c.bf16 %v3095, %v3095
        %v3097 = vld [vmem:[%s1268] sm:$0xf]
        %v3098 = vld [vmem:[%s1268 + $0x4] sm:$0xf]
        %v3099 = vld [vmem:[%s1268 + $0x8] sm:$0xf]
        %v3100 = vld [vmem:[%s1268 + $0xc] sm:$0xf]
        %v3101 = vld [vmem:[%s1268 + $0x10] sm:$0xf]
        %v3102 = vld [vmem:[%s1268 + $0x14] sm:$0xf]
        %v3103 = vld [vmem:[%s1268 + $0x18] sm:$0xf]
        %v3104 = vld [vmem:[%s1268 + $0x1c] sm:$0xf]
        %v3105 = vld [vmem:[%s1077] sm:$0x1]
        %v3107 = vperm.slane %v3105, 0
        %v3117 = vunpack.c.l.b16 %v3097
        %v3118 = vunpack.c.l.b16 %v3098
        %v3119 = vunpack.c.l.b16 %v3099
        %v3120 = vunpack.c.l.b16 %v3100
        %v3121 = vunpack.c.l.b16 %v3101
        %v3122 = vunpack.c.l.b16 %v3102
        %v3123 = vunpack.c.l.b16 %v3103
        %v3124 = vunpack.c.l.b16 %v3104
        %v3125 = vpack.c.b16 %v3118, %v3117
        %v3126 = vpack.c.b16 %v3120, %v3119
        %v3127 = vpack.c.b16 %v3122, %v3121
        %v3128 = vpack.c.b16 %v3124, %v3123
        %vm3133 = vcmask 523264
        %v3135 = vsel %vm3133, %v3096, 0
        %3137 = vmatpush.bf16.msra.mxu0 0
        %3138 = vmatpush.bf16.msra.mxu0 0
        %3139 = vmatpush.bf16.msra.mxu0 0
        %3140 = vmatpush.bf16.msra.mxu0 0
        %3141 = vmatpush.bf16.msra.mxu0 %v3128
        %3142 = vmatpush.bf16.msra.mxu0 %v3127
        %3143 = vmatpush.bf16.msra.mxu0 %v3126
        %3144 = vmatpush.bf16.msra.mxu0 %v3125
        %3145 = vmatmul.bf16.gmra.mxu0 %v3135
        %v3146 = vpop.f32.mrf.mxu0
        %v3147 = vadd.f32 %v3107, %v3146
        %v3148 = vpop.f32.mrf.mxu0
        %3149 = vdwg.mxu0
        %v3150 = vadd.f32 %v3057, %v3147
        %v3151 = vld [vmem:[%s1271] sm:$0x1]
        %v3152 = vld [vmem:[%s1086] sm:$0x1]
        %v3153 = vsel %vm1303, %v3150, 0.0
        %3154 = vadd.xlane.f32.xlu0 %v3153
        %v3155 = vpop.xlane.xlu0 %3154
        %v3156 = vmul.f32 %v3155, %v2131
        %v3157 = vsub.f32 %v3150, %v3156
        %v3158 = vmul.f32 %v3157, %v3157
        %v3159 = vsel %vm1303, %v3158, 0.0
        %3160 = vadd.xlane.f32.xlu0 %v3159
        %v3161 = vpop.xlane.xlu0 %3160
        %v3162 = vmul.f32 %v3161, %v2131
        %v3163 = vadd.f32 %v3162, 1e-05
        %v3164 = vrsqrt.pop %v3163
        %v3165 = vmul.f32 %v3164, %v3163
        %v3166 = vmul.f32 %v3165, %v3164
        %v3167 = vmul.f32 0.5, %v3166
        %v3168 = vsub.f32 1.5, %v3167
        %v3169 = vmul.f32 %v3164, %v3168
        %vm3170 = vweird.f32 %v3163
        %vm3171 = vweird.f32 %v3164
        %vm3172 = vmor %vm3170, %vm3171
        %v3173 = vsel %vm3172, %v3164, %v3169
        %v3174 = vmul.f32 %v3157, %v3173
        %v3176 = vperm.slane %v3151, 0
        %v3178 = vmul.f32 %v3174, %v3176
        %v3180 = vperm.slane %v3152, 0
        %v3182 = vadd.f32 %v3178, %v3180
        %3183 = vst.msk [vmem:[%s1233] sm:$0xff] %vm1303, %v3182
        %s3184 = sand.u32 %s649, 1
        %s3185 = scalar_lea.sflag [#allocation4], %s3184
        %s3186 = sand.u32 %s649, 1
        %s3187 = smul.addr %s3186, 8
        %s3188 = scalar_lea.vmem [#allocation22], %s3187
        // Predicated region
        $region161: #{transformer_decoder_pallas.1} parent=107 // pred_check
          %p3189 = pneg %p659
        $region162: #{transformer_decoder_pallas.1} parent=107 // pred_check_branch
          %3191 = sbr.rel (%p3189) target = $region164
        $region163: #{transformer_decoder_pallas.1} parent=107 // pred_region
          %3193 = vsyncadd %s3185, 0
          %s3194 = smul.addr %s61, 8
          %s3195 = scalar_lea.hbm %s22, %s3194
          %s3197 = sshll.u32 %s3188, 4
          %s3198 = int_to_ptr.vmem [resolvable:$true] %s3197
          %s3199 = sshll.u32 %s3195, 4
          %s3200 = int_to_ptr.hbm [resolvable:$true] %s3199
          %3202 = dma.vmem_to_hbm [thread:$0]  %s3198, 128, %s3200, %s3185
        $region164: #{transformer_decoder_pallas.1} parent=107 // pred_fallthru
          _
      $region108: #{transformer_decoder_pallas.1} parent=5 // pred_fallthru
        _
      %p3203 = scmp.le.s32.totalorder 2, %s52
      // Predicated region
      $region165: #{transformer_decoder_pallas.1} parent=5 // pred_check
        %p3204 = pneg %p3203
      $region166: #{transformer_decoder_pallas.1} parent=5 // pred_check_branch
        %3206 = sbr.rel (%p3204) target = $region168
      $region167: #{transformer_decoder_pallas.1} parent=5 // pred_region
        %s3207 = ssub.s32 %s52, 2
        // Predicated region
        $region169: #{transformer_decoder_pallas.1} parent=167 // pred_check
          %p3208 = pneg %p665
        $region170: #{transformer_decoder_pallas.1} parent=167 // pred_check_branch
          %3210 = sbr.rel (%p3208) target = $region172
        $region171: #{transformer_decoder_pallas.1} parent=167 // pred_region
          %s3211 = sand.u32 %s650, 1
          %s3212 = scalar_lea.sflag [#allocation4], %s3211
          %s3213 = sand.u32 %s650, 1
          %s3214 = smul.addr %s3213, 8
          %s3215 = scalar_lea.vmem [#allocation22], %s3214
          %3217 = dma.done %s3212, 128
        $region172: #{transformer_decoder_pallas.1} parent=167 // pred_fallthru
          _
      $region168: #{transformer_decoder_pallas.1} parent=5 // pred_fallthru
        _
    $region6: #{transformer_decoder_pallas.1} parent=1 // loop_footer
      %s56 = sadd.s32 1, %s52
    $region7: #{transformer_decoder_pallas.1} parent=1 // loop_footer_branch
      %51 = sbr.rel target = $region3
    $region8: #{transformer_decoder_pallas.1} parent=1 // loop_exit
      _
    %3218 = vsyncpa [#allocation3], 1
    %s3219 = scalar_lea.sflag [#allocation3], 1
    %3220 = vsyncpa %s3219, 1
    %3221 = vsyncpa [#allocation6], 1
    %s3222 = scalar_lea.sflag [#allocation6], 1
    %3223 = vsyncpa %s3222, 1
    %3224 = vsyncpa [#allocation9], 1
    %s3225 = scalar_lea.sflag [#allocation9], 1
    %3226 = vsyncpa %s3225, 1
    %3227 = vsyncpa [#allocation12], 1
    %s3228 = scalar_lea.sflag [#allocation12], 1
    %3229 = vsyncpa %s3228, 1
    %3230 = vsyncpa [#allocation15], 1
    %s3231 = scalar_lea.sflag [#allocation15], 1
    %3232 = vsyncpa %s3231, 1
    %3233 = vsyncpa [#allocation18], 1
    %s3234 = scalar_lea.sflag [#allocation18], 1
    %3235 = vsyncpa %s3234, 1
    %3236 = vsyncpa [#allocation21], 1
    %s3237 = scalar_lea.sflag [#allocation21], 1
    %3238 = vsyncpa %s3237, 1
    %3239 = vsyncpa [#allocation4], 1
    %s3240 = scalar_lea.sflag [#allocation4], 1
    %3241 = vsyncpa %s3240, 1

</llo_original>
